<compile_context>
chip_gen: v7x
topology: tpu7x:2x2x1
jax: 0.10.0
libtpu: 0.0.40
codegen_flags: <defaults>
</compile_context>

<pallas_src>
import functools
import math

import jax
import jax.numpy as jnp
from jax import lax
from jax.experimental import pallas as pl
from jax.experimental.pallas import tpu as pltpu


def _fold_rows_to_lanes(v, tile_h, w, hid):
    """(tile_h*w, hid) -> (tile_h, w*hid); equivalent to v.reshape(tile_h, w*hid).

    Implemented with a leading-dim reshape + lane concatenation only, which
    Mosaic lowers robustly (a direct minor-dim-changing reshape may not)."""
    v3 = v.reshape(tile_h, w, hid)
    return jnp.concatenate([v3[:, i, :] for i in range(w)], axis=-1)


def convlstm_kernel(slab_ref, w_ref, b_ref, c_ref, h_out_ref, c_out_ref,
                    patch_ref, *, kh, kw):
    """One (batch, H-tile) step of the ConvLSTM cell.

    slab_ref  : (1, 1, tile_h+kh-1, Wp, Cin_t) halo slab of padded [x ; h], bf16
    w_ref     : (kh*kw*Cin_t, 4*hid)           conv weight (HWIO-flattened), bf16
    b_ref     : (1, 4*hid)                     conv bias, f32
    c_ref     : (1, tile_h*W, hid)             c_cur tile, f32
    h_out_ref : (1, tile_h, W*hid)             h_next tile (lane-dense), f32
    c_out_ref : (1, tile_h, W*hid)             c_next tile (lane-dense), f32
    patch_ref : (tile_h, W, kh*kw*Cin_t)       persistent im2col scratch, bf16
    """
    cin_t = slab_ref.shape[-1]
    Wp = slab_ref.shape[-2]
    W = Wp - (kw - 1)
    R = c_ref.shape[1]
    tile_h = R // W
    hid = c_ref.shape[-1]
    K = kh * kw * cin_t

    # im2col into the persistent VMEM scratch: one shifted (tile_h, W, Cin_t)
    # window per (ky, kx) tap, at a static channel offset (tap-major,
    # channel-minor => matches torch.cat([x, h], dim=1) + OIHW->HWIO weight).
    tap = 0
    for ky in range(kh):
        for kx in range(kw):
            patch_ref[:, :, tap * cin_t:(tap + 1) * cin_t] = (
                slab_ref[0, 0, ky:ky + tile_h, kx:kx + W, :])
            tap += 1

    # Single MXU matmul with f32 accumulation.  (tile_h, W, K) -> (R, K) is a
    # leading-dim collapse (minor dim unchanged) => layout-friendly.
    patch = patch_ref[...].reshape(R, K)
    acc = jnp.dot(patch, w_ref[...], preferred_element_type=jnp.float32)
    acc = acc + b_ref[...]                                  # (R, 4*hid) f32

    # Gates, torch.split order i, f, o, g — one fused sigmoid over i|f|o.
    sig = jax.nn.sigmoid(acc[:, :3 * hid])
    g = jnp.tanh(acc[:, 3 * hid:])
    i = sig[:, 0 * hid:1 * hid]
    f = sig[:, 1 * hid:2 * hid]
    o = sig[:, 2 * hid:3 * hid]

    c_cur = c_ref[0]                                        # (R, hid) f32
    c_next = f * c_cur + i * g
    h_next = o * jnp.tanh(c_next)

    # Lane-dense stores: fold (R, hid) -> (tile_h, W*hid) and store whole rows.
    h_out_ref[0] = _fold_rows_to_lanes(h_next, tile_h, W, hid)
    c_out_ref[0] = _fold_rows_to_lanes(c_next, tile_h, W, hid)


def _pick_tile_h(H, W, max_rows=256):
    """Largest multiple-of-8 divisor of H with tile_h*W <= max_rows (up to 256
    rows per MXU pass on v6e/v7x); falls back to the smallest such divisor or
    the full H (both are always legal block shapes)."""
    divs8 = [d for d in range(8, H + 1, 8) if H % d == 0]
    fit = [d for d in divs8 if d * W <= max_rows]
    if fit:
        return max(fit)
    if divs8:
        return min(divs8)
    return H


def conv_lstm_cell_nhwc(x, h_cur, c_cur, weight_oihw, bias, kernel_size):
    """ConvLSTMCell forward, channels-last (NHWC) hot path."""
    kh, kw = kernel_size
    assert kh % 2 == 1 and kw % 2 == 1, "padding=k//2 is 'same' only for odd kernels"
    ph, pw = kh // 2, kw // 2

    B, H, W, cin_x = x.shape
    hid = h_cur.shape[-1]
    cin_t = cin_x + hid
    cout = 4 * hid
    K = kh * kw * cin_t

    tile_h = _pick_tile_h(H, W)
    HT = H // tile_h
    Hs = tile_h + kh - 1
    R = tile_h * W
    Wp = W + kw - 1

    # Wrapper-side channel concat + 'same' padding (bf16 MXU operands), then a
    # row gather materializing one halo slab per H-tile, so every grid step
    # DMAs/holds only its own slab.  All of this fuses into one XLA pass.
    comb = jnp.concatenate([x, h_cur], axis=-1).astype(jnp.bfloat16)
    comb_pad = jnp.pad(comb, ((0, 0), (ph, ph), (pw, pw), (0, 0)))
    rows = jnp.arange(HT)[:, None] * tile_h + jnp.arange(Hs)[None, :]
    slabs = comb_pad[:, rows]                               # (B, HT, Hs, Wp, Cin_t)

    # c state: lane-sparse (B, H*W, hid) on the *input* side (loads are cheap
    # and need no in-kernel unfold); outputs are lane-dense (B, H, W*hid).
    # Both are free row-major reshapes of NHWC.
    c2 = c_cur.astype(jnp.float32).reshape(B, H * W, hid)

    # (Cout, Cin_t, kh, kw) -> (kh, kw, Cin_t, Cout) -> (kh*kw*Cin_t, Cout):
    # tap-major, channel-minor with x-channels before h-channels.
    w = jnp.transpose(weight_oihw, (2, 3, 1, 0)).reshape(K, cout).astype(jnp.bfloat16)
    b2 = bias.reshape(1, cout).astype(jnp.float32)

    # VMEM budget from the real footprint: double-buffered pipelined blocks +
    # weights/bias, im2col scratch and in-kernel f32 temporaries; capped at
    # 40 MiB so it also fits v7x's 64 MiB VMEM per TensorCore.
    slab_blk = Hs * Wp * cin_t * 2
    state_blk = R * hid * 4
    fixed = K * cout * 2 + cout * 4
    scratch = R * K * 2
    temps = R * cout * 4 + 8 * R * hid * 4
    footprint = 2 * (slab_blk + 3 * state_blk + fixed) + scratch + temps
    vmem_limit = int(min(max(4 * footprint, 32 * 1024 * 1024), 40 * 1024 * 1024))

    kern = functools.partial(convlstm_kernel, kh=kh, kw=kw)
    h_out, c_out = pl.pallas_call(
        kern,
        grid=(B, HT),
        in_specs=[
            # Halo slab for this (batch, H-tile): only this slab is resident.
            pl.BlockSpec((1, 1, Hs, Wp, cin_t), lambda b, t: (b, t, 0, 0, 0)),
            # Weight / bias: constant index map (re-visited, not re-fetched).
            # At production hid sizes single-buffer these (pl.Buffered(1)).
            pl.BlockSpec((K, cout), lambda b, t: (0, 0)),
            pl.BlockSpec((1, cout), lambda b, t: (0, 0)),
            # c_cur tile.
            pl.BlockSpec((1, R, hid), lambda b, t: (b, t, 0)),
        ],
        out_specs=(
            pl.BlockSpec((1, tile_h, W * hid), lambda b, t: (b, t, 0)),  # h_next
            pl.BlockSpec((1, tile_h, W * hid), lambda b, t: (b, t, 0)),  # c_next
        ),
        out_shape=(
            jax.ShapeDtypeStruct((B, H, W * hid), jnp.float32),
            jax.ShapeDtypeStruct((B, H, W * hid), jnp.float32),
        ),
        scratch_shapes=[pltpu.VMEM((tile_h, W, K), jnp.bfloat16)],
        compiler_params=pltpu.CompilerParams(
            dimension_semantics=("parallel", "parallel"),
            vmem_limit_bytes=vmem_limit,
        ),
    )(slabs, w, b2, c2)

    return (h_out.reshape(B, H, W, hid), c_out.reshape(B, H, W, hid))


@functools.partial(jax.jit, static_argnames=("kernel_size",))
def conv_lstm_cell(x_nchw, h_nchw, c_nchw, weight_oihw, bias, kernel_size):
    """PyTorch-parity entry point (NCHW in / NCHW out).

    The transposes are boundary glue: in a sequence model keep x/h/c in NHWC
    (or directly in (B, H, W*hid)) across timesteps and call
    conv_lstm_cell_nhwc per step.
    """
    x = jnp.transpose(x_nchw, (0, 2, 3, 1))
    h = jnp.transpose(h_nchw, (0, 2, 3, 1))
    c = jnp.transpose(c_nchw, (0, 2, 3, 1))
    h_next, c_next = conv_lstm_cell_nhwc(x, h, c, weight_oihw, bias, kernel_size)
    return (jnp.transpose(h_next, (0, 3, 1, 2)),
            jnp.transpose(c_next, (0, 3, 1, 2)))


def _reference(x_nchw, h_nchw, c_nchw, weight_oihw, bias):
    """Pure-JAX f32 reference matching the PyTorch forward."""
    combined = jnp.concatenate([x_nchw, h_nchw], axis=1)
    conv = lax.conv_general_dilated(
        combined, weight_oihw, window_strides=(1, 1), padding="SAME",
        dimension_numbers=("NCHW", "OIHW", "NCHW"))
    conv = conv + bias[None, :, None, None]
    hid = h_nchw.shape[1]
    cc_i, cc_f, cc_o, cc_g = jnp.split(conv, 4, axis=1)
    i = jax.nn.sigmoid(cc_i)
    f = jax.nn.sigmoid(cc_f)
    o = jax.nn.sigmoid(cc_o)
    g = jnp.tanh(cc_g)
    c_next = f * c_nchw + i * g
    h_next = o * jnp.tanh(c_next)
    return h_next, c_next


if __name__ == "__main__":
    batch, input_dim, hidden_dim = 2, 4, 32
    H = W = 16
    kernel_size = (3, 3)

    key = jax.random.PRNGKey(0)
    kx, kh_, kc, kw_, kb = jax.random.split(key, 5)

    x = jax.random.normal(kx, (batch, input_dim, H, W), jnp.float32)          # NCHW
    h_cur = jax.random.normal(kh_, (batch, hidden_dim, H, W), jnp.float32)
    c_cur = jax.random.normal(kc, (batch, hidden_dim, H, W), jnp.float32)

    cin_total = input_dim + hidden_dim
    cout = 4 * hidden_dim
    fan_in = cin_total * kernel_size[0] * kernel_size[1]
    bound = 1.0 / math.sqrt(fan_in)
    weight = jax.random.uniform(kw_, (cout, cin_total, *kernel_size),
                                jnp.float32, -bound, bound)                    # OIHW
    bias = jax.random.uniform(kb, (cout,), jnp.float32, -bound, bound)

    h_next, c_next = conv_lstm_cell(x, h_cur, c_cur, weight, bias, kernel_size)
    jax.block_until_ready((h_next, c_next))

    h_ref, c_ref = _reference(x, h_cur, c_cur, weight, bias)
    assert h_next.shape == (batch, hidden_dim, H, W)
    assert c_next.shape == (batch, hidden_dim, H, W)
    # bf16 MXU operands with f32 accumulation -> small tolerance vs f32 reference.
    assert jnp.allclose(h_next, h_ref, atol=5e-2, rtol=5e-2)
    assert jnp.allclose(c_next, c_ref, atol=5e-2, rtol=5e-2)

    print("KERNEL_OK")
</pallas_src>

<mosaic_0001>
module attributes {stable_mosaic.version = 11 : i64} {
  func.func @convlstm_kernel(%arg0: i32, %arg1: i32, %arg2: memref<1x1x18x18x36xbf16, #tpu.memory_space<vmem>>, %arg3: memref<324x128xbf16, #tpu.memory_space<vmem>>, %arg4: memref<1x128xf32, #tpu.memory_space<vmem>>, %arg5: memref<1x256x32xf32, #tpu.memory_space<vmem>>, %arg6: memref<1x16x512xf32, #tpu.memory_space<vmem>>, %arg7: memref<1x16x512xf32, #tpu.memory_space<vmem>>, %arg8: memref<16x16x324xbf16, #tpu.memory_space<vmem>>) attributes {dimension_semantics = [#tpu.dimension_semantics<parallel>, #tpu.dimension_semantics<parallel>], iteration_bounds = array<i64: 2, 1>, scalar_prefetch = 0 : i64, scratch_operands = 1 : i64, tpu.core_type = #tpu.core_type<tc>, window_params = [{transform_indices = @transform_0, window_bounds = array<i64: 1, 1, 18, 18, 36>}, {pipeline_mode = #tpu.pipeline_mode<synchronous>, transform_indices = @transform_1, window_bounds = array<i64: 324, 128>}, {pipeline_mode = #tpu.pipeline_mode<synchronous>, transform_indices = @transform_2, window_bounds = array<i64: 1, 128>}, {transform_indices = @transform_3, window_bounds = array<i64: 1, 256, 32>}, {transform_indices = @transform_4, window_bounds = array<i64: 1, 16, 512>}, {transform_indices = @transform_5, window_bounds = array<i64: 1, 16, 512>}]} {
    %c0 = arith.constant 0 : index
    %c0_0 = arith.constant 0 : index
    %c0_1 = arith.constant 0 : index
    %c0_2 = arith.constant 0 : index
    %c0_3 = arith.constant 0 : index
    %0 = vector.load %arg2[%c0, %c0_0, %c0_1, %c0_2, %c0_3] : memref<1x1x18x18x36xbf16, #tpu.memory_space<vmem>>, vector<1x1x16x16x36xbf16>
    %1 = vector.shape_cast %0 : vector<1x1x16x16x36xbf16> to vector<16x16x36xbf16>
    %c0_4 = arith.constant 0 : index
    %c0_5 = arith.constant 0 : index
    %c0_6 = arith.constant 0 : index
    %2 = vector.load %arg8[%c0_4, %c0_5, %c0_6] : memref<16x16x324xbf16, #tpu.memory_space<vmem>>, vector<16x16x36xbf16>
    tpu.vector_store %arg8[%c0_4, %c0_5, %c0_6], %1 {strides = array<i32>} : memref<16x16x324xbf16, #tpu.memory_space<vmem>>, vector<16x16x36xbf16>,
    %c0_7 = arith.constant 0 : index
    %c0_8 = arith.constant 0 : index
    %c0_9 = arith.constant 0 : index
    %c1 = arith.constant 1 : index
    %c0_10 = arith.constant 0 : index
    %3 = vector.load %arg2[%c0_7, %c0_8, %c0_9, %c1, %c0_10] : memref<1x1x18x18x36xbf16, #tpu.memory_space<vmem>>, vector<1x1x16x16x36xbf16>
    %4 = vector.shape_cast %3 : vector<1x1x16x16x36xbf16> to vector<16x16x36xbf16>
    %c0_11 = arith.constant 0 : index
    %c0_12 = arith.constant 0 : index
    %c36 = arith.constant 36 : index
    %5 = vector.load %arg8[%c0_11, %c0_12, %c36] : memref<16x16x324xbf16, #tpu.memory_space<vmem>>, vector<16x16x36xbf16>
    tpu.vector_store %arg8[%c0_11, %c0_12, %c36], %4 {strides = array<i32>} : memref<16x16x324xbf16, #tpu.memory_space<vmem>>, vector<16x16x36xbf16>,
    %c0_13 = arith.constant 0 : index
    %c0_14 = arith.constant 0 : index
    %c0_15 = arith.constant 0 : index
    %c2 = arith.constant 2 : index
    %c0_16 = arith.constant 0 : index
    %6 = vector.load %arg2[%c0_13, %c0_14, %c0_15, %c2, %c0_16] : memref<1x1x18x18x36xbf16, #tpu.memory_space<vmem>>, vector<1x1x16x16x36xbf16>
    %7 = vector.shape_cast %6 : vector<1x1x16x16x36xbf16> to vector<16x16x36xbf16>
    %c0_17 = arith.constant 0 : index
    %c0_18 = arith.constant 0 : index
    %c72 = arith.constant 72 : index
    %8 = vector.load %arg8[%c0_17, %c0_18, %c72] : memref<16x16x324xbf16, #tpu.memory_space<vmem>>, vector<16x16x36xbf16>
    tpu.vector_store %arg8[%c0_17, %c0_18, %c72], %7 {strides = array<i32>} : memref<16x16x324xbf16, #tpu.memory_space<vmem>>, vector<16x16x36xbf16>,
    %c0_19 = arith.constant 0 : index
    %c0_20 = arith.constant 0 : index
    %c1_21 = arith.constant 1 : index
    %c0_22 = arith.constant 0 : index
    %c0_23 = arith.constant 0 : index
    %9 = vector.load %arg2[%c0_19, %c0_20, %c1_21, %c0_22, %c0_23] : memref<1x1x18x18x36xbf16, #tpu.memory_space<vmem>>, vector<1x1x16x16x36xbf16>
    %10 = vector.shape_cast %9 : vector<1x1x16x16x36xbf16> to vector<16x16x36xbf16>
    %c0_24 = arith.constant 0 : index
    %c0_25 = arith.constant 0 : index
    %c108 = arith.constant 108 : index
    %11 = vector.load %arg8[%c0_24, %c0_25, %c108] : memref<16x16x324xbf16, #tpu.memory_space<vmem>>, vector<16x16x36xbf16>
    tpu.vector_store %arg8[%c0_24, %c0_25, %c108], %10 {strides = array<i32>} : memref<16x16x324xbf16, #tpu.memory_space<vmem>>, vector<16x16x36xbf16>,
    %c0_26 = arith.constant 0 : index
    %c0_27 = arith.constant 0 : index
    %c1_28 = arith.constant 1 : index
    %c1_29 = arith.constant 1 : index
    %c0_30 = arith.constant 0 : index
    %12 = vector.load %arg2[%c0_26, %c0_27, %c1_28, %c1_29, %c0_30] : memref<1x1x18x18x36xbf16, #tpu.memory_space<vmem>>, vector<1x1x16x16x36xbf16>
    %13 = vector.shape_cast %12 : vector<1x1x16x16x36xbf16> to vector<16x16x36xbf16>
    %c0_31 = arith.constant 0 : index
    %c0_32 = arith.constant 0 : index
    %c144 = arith.constant 144 : index
    %14 = vector.load %arg8[%c0_31, %c0_32, %c144] : memref<16x16x324xbf16, #tpu.memory_space<vmem>>, vector<16x16x36xbf16>
    tpu.vector_store %arg8[%c0_31, %c0_32, %c144], %13 {strides = array<i32>} : memref<16x16x324xbf16, #tpu.memory_space<vmem>>, vector<16x16x36xbf16>,
    %c0_33 = arith.constant 0 : index
    %c0_34 = arith.constant 0 : index
    %c1_35 = arith.constant 1 : index
    %c2_36 = arith.constant 2 : index
    %c0_37 = arith.constant 0 : index
    %15 = vector.load %arg2[%c0_33, %c0_34, %c1_35, %c2_36, %c0_37] : memref<1x1x18x18x36xbf16, #tpu.memory_space<vmem>>, vector<1x1x16x16x36xbf16>
    %16 = vector.shape_cast %15 : vector<1x1x16x16x36xbf16> to vector<16x16x36xbf16>
    %c0_38 = arith.constant 0 : index
    %c0_39 = arith.constant 0 : index
    %c180 = arith.constant 180 : index
    %17 = vector.load %arg8[%c0_38, %c0_39, %c180] : memref<16x16x324xbf16, #tpu.memory_space<vmem>>, vector<16x16x36xbf16>
    tpu.vector_store %arg8[%c0_38, %c0_39, %c180], %16 {strides = array<i32>} : memref<16x16x324xbf16, #tpu.memory_space<vmem>>, vector<16x16x36xbf16>,
    %c0_40 = arith.constant 0 : index
    %c0_41 = arith.constant 0 : index
    %c2_42 = arith.constant 2 : index
    %c0_43 = arith.constant 0 : index
    %c0_44 = arith.constant 0 : index
    %18 = vector.load %arg2[%c0_40, %c0_41, %c2_42, %c0_43, %c0_44] : memref<1x1x18x18x36xbf16, #tpu.memory_space<vmem>>, vector<1x1x16x16x36xbf16>
    %19 = vector.shape_cast %18 : vector<1x1x16x16x36xbf16> to vector<16x16x36xbf16>
    %c0_45 = arith.constant 0 : index
    %c0_46 = arith.constant 0 : index
    %c216 = arith.constant 216 : index
    %20 = vector.load %arg8[%c0_45, %c0_46, %c216] : memref<16x16x324xbf16, #tpu.memory_space<vmem>>, vector<16x16x36xbf16>
    tpu.vector_store %arg8[%c0_45, %c0_46, %c216], %19 {strides = array<i32>} : memref<16x16x324xbf16, #tpu.memory_space<vmem>>, vector<16x16x36xbf16>,
    %c0_47 = arith.constant 0 : index
    %c0_48 = arith.constant 0 : index
    %c2_49 = arith.constant 2 : index
    %c1_50 = arith.constant 1 : index
    %c0_51 = arith.constant 0 : index
    %21 = vector.load %arg2[%c0_47, %c0_48, %c2_49, %c1_50, %c0_51] : memref<1x1x18x18x36xbf16, #tpu.memory_space<vmem>>, vector<1x1x16x16x36xbf16>
    %22 = vector.shape_cast %21 : vector<1x1x16x16x36xbf16> to vector<16x16x36xbf16>
    %c0_52 = arith.constant 0 : index
    %c0_53 = arith.constant 0 : index
    %c252 = arith.constant 252 : index
    %23 = vector.load %arg8[%c0_52, %c0_53, %c252] : memref<16x16x324xbf16, #tpu.memory_space<vmem>>, vector<16x16x36xbf16>
    tpu.vector_store %arg8[%c0_52, %c0_53, %c252], %22 {strides = array<i32>} : memref<16x16x324xbf16, #tpu.memory_space<vmem>>, vector<16x16x36xbf16>,
    %c0_54 = arith.constant 0 : index
    %c0_55 = arith.constant 0 : index
    %c2_56 = arith.constant 2 : index
    %c2_57 = arith.constant 2 : index
    %c0_58 = arith.constant 0 : index
    %24 = vector.load %arg2[%c0_54, %c0_55, %c2_56, %c2_57, %c0_58] : memref<1x1x18x18x36xbf16, #tpu.memory_space<vmem>>, vector<1x1x16x16x36xbf16>
    %25 = vector.shape_cast %24 : vector<1x1x16x16x36xbf16> to vector<16x16x36xbf16>
    %c0_59 = arith.constant 0 : index
    %c0_60 = arith.constant 0 : index
    %c288 = arith.constant 288 : index
    %26 = vector.load %arg8[%c0_59, %c0_60, %c288] : memref<16x16x324xbf16, #tpu.memory_space<vmem>>, vector<16x16x36xbf16>
    tpu.vector_store %arg8[%c0_59, %c0_60, %c288], %25 {strides = array<i32>} : memref<16x16x324xbf16, #tpu.memory_space<vmem>>, vector<16x16x36xbf16>,
    %c0_61 = arith.constant 0 : index
    %c0_62 = arith.constant 0 : index
    %c0_63 = arith.constant 0 : index
    %27 = vector.load %arg8[%c0_61, %c0_62, %c0_63] : memref<16x16x324xbf16, #tpu.memory_space<vmem>>, vector<16x16x324xbf16>
    %28 = vector.shape_cast %27 : vector<16x16x324xbf16> to vector<256x324xbf16>
    %c0_64 = arith.constant 0 : index
    %c0_65 = arith.constant 0 : index
    %29 = vector.load %arg3[%c0_64, %c0_65] : memref<324x128xbf16, #tpu.memory_space<vmem>>, vector<324x128xbf16>
    %cst = arith.constant dense<0.000000e+00> : vector<256x128xf32>
    %30 = tpu.matmul %28, %29, %cst {dimension_numbers = #tpu.dot_dimension_numbers<[1], [0], [0], [1], [0, 0, 1, 1], [], []>} : vector<256x324xbf16>, vector<324x128xbf16>, vector<256x128xf32> -> vector<256x128xf32>
    %c0_66 = arith.constant 0 : index
    %c0_67 = arith.constant 0 : index
    %31 = vector.load %arg4[%c0_66, %c0_67] : memref<1x128xf32, #tpu.memory_space<vmem>>, vector<1x128xf32>
    %32 = vector.broadcast %31 : vector<1x128xf32> to vector<256x128xf32>
    %33 = arith.addf %30, %32 : vector<256x128xf32>
    %34 = vector.extract_strided_slice %33 {offsets = [0, 0], sizes = [256, 96], strides = [1, 1]} : vector<256x128xf32> to vector<256x96xf32>
    %35 = arith.negf %34 : vector<256x96xf32>
    %36 = math.exp %35 : vector<256x96xf32>
    %cst_68 = arith.constant 1.000000e+00 : f32
    %37 = vector.broadcast %cst_68 : f32 to vector<256x96xf32>
    %38 = arith.addf %37, %36 : vector<256x96xf32>
    %39 = arith.divf %37, %38 : vector<256x96xf32>
    %40 = vector.extract_strided_slice %33 {offsets = [0, 96], sizes = [256, 32], strides = [1, 1]} : vector<256x128xf32> to vector<256x32xf32>
    %41 = math.tanh %40 : vector<256x32xf32>
    %42 = vector.extract_strided_slice %39 {offsets = [0, 0], sizes = [256, 32], strides = [1, 1]} : vector<256x96xf32> to vector<256x32xf32>
    %43 = vector.extract_strided_slice %39 {offsets = [0, 32], sizes = [256, 32], strides = [1, 1]} : vector<256x96xf32> to vector<256x32xf32>
    %44 = vector.extract_strided_slice %39 {offsets = [0, 64], sizes = [256, 32], strides = [1, 1]} : vector<256x96xf32> to vector<256x32xf32>
    %c0_69 = arith.constant 0 : index
    %c0_70 = arith.constant 0 : index
    %c0_71 = arith.constant 0 : index
    %45 = vector.load %arg5[%c0_69, %c0_70, %c0_71] : memref<1x256x32xf32, #tpu.memory_space<vmem>>, vector<1x256x32xf32>
    %46 = vector.shape_cast %45 : vector<1x256x32xf32> to vector<256x32xf32>
    %47 = arith.mulf %43, %46 : vector<256x32xf32>
    %48 = arith.mulf %42, %41 : vector<256x32xf32>
    %49 = arith.addf %47, %48 : vector<256x32xf32>
    %50 = math.tanh %49 : vector<256x32xf32>
    %51 = arith.mulf %44, %50 : vector<256x32xf32>
    %52 = vector.shape_cast %51 : vector<256x32xf32> to vector<16x16x32xf32>
    %53 = vector.extract_strided_slice %52 {offsets = [0, 0, 0], sizes = [16, 1, 32], strides = [1, 1, 1]} : vector<16x16x32xf32> to vector<16x1x32xf32>
    %54 = vector.shape_cast %53 : vector<16x1x32xf32> to vector<16x32xf32>
    %55 = vector.extract_strided_slice %52 {offsets = [0, 1, 0], sizes = [16, 1, 32], strides = [1, 1, 1]} : vector<16x16x32xf32> to vector<16x1x32xf32>
    %56 = vector.shape_cast %55 : vector<16x1x32xf32> to vector<16x32xf32>
    %57 = vector.extract_strided_slice %52 {offsets = [0, 2, 0], sizes = [16, 1, 32], strides = [1, 1, 1]} : vector<16x16x32xf32> to vector<16x1x32xf32>
    %58 = vector.shape_cast %57 : vector<16x1x32xf32> to vector<16x32xf32>
    %59 = vector.extract_strided_slice %52 {offsets = [0, 3, 0], sizes = [16, 1, 32], strides = [1, 1, 1]} : vector<16x16x32xf32> to vector<16x1x32xf32>
    %60 = vector.shape_cast %59 : vector<16x1x32xf32> to vector<16x32xf32>
    %61 = vector.extract_strided_slice %52 {offsets = [0, 4, 0], sizes = [16, 1, 32], strides = [1, 1, 1]} : vector<16x16x32xf32> to vector<16x1x32xf32>
    %62 = vector.shape_cast %61 : vector<16x1x32xf32> to vector<16x32xf32>
    %63 = vector.extract_strided_slice %52 {offsets = [0, 5, 0], sizes = [16, 1, 32], strides = [1, 1, 1]} : vector<16x16x32xf32> to vector<16x1x32xf32>
    %64 = vector.shape_cast %63 : vector<16x1x32xf32> to vector<16x32xf32>
    %65 = vector.extract_strided_slice %52 {offsets = [0, 6, 0], sizes = [16, 1, 32], strides = [1, 1, 1]} : vector<16x16x32xf32> to vector<16x1x32xf32>
    %66 = vector.shape_cast %65 : vector<16x1x32xf32> to vector<16x32xf32>
    %67 = vector.extract_strided_slice %52 {offsets = [0, 7, 0], sizes = [16, 1, 32], strides = [1, 1, 1]} : vector<16x16x32xf32> to vector<16x1x32xf32>
    %68 = vector.shape_cast %67 : vector<16x1x32xf32> to vector<16x32xf32>
    %69 = vector.extract_strided_slice %52 {offsets = [0, 8, 0], sizes = [16, 1, 32], strides = [1, 1, 1]} : vector<16x16x32xf32> to vector<16x1x32xf32>
    %70 = vector.shape_cast %69 : vector<16x1x32xf32> to vector<16x32xf32>
    %71 = vector.extract_strided_slice %52 {offsets = [0, 9, 0], sizes = [16, 1, 32], strides = [1, 1, 1]} : vector<16x16x32xf32> to vector<16x1x32xf32>
    %72 = vector.shape_cast %71 : vector<16x1x32xf32> to vector<16x32xf32>
    %73 = vector.extract_strided_slice %52 {offsets = [0, 10, 0], sizes = [16, 1, 32], strides = [1, 1, 1]} : vector<16x16x32xf32> to vector<16x1x32xf32>
    %74 = vector.shape_cast %73 : vector<16x1x32xf32> to vector<16x32xf32>
    %75 = vector.extract_strided_slice %52 {offsets = [0, 11, 0], sizes = [16, 1, 32], strides = [1, 1, 1]} : vector<16x16x32xf32> to vector<16x1x32xf32>
    %76 = vector.shape_cast %75 : vector<16x1x32xf32> to vector<16x32xf32>
    %77 = vector.extract_strided_slice %52 {offsets = [0, 12, 0], sizes = [16, 1, 32], strides = [1, 1, 1]} : vector<16x16x32xf32> to vector<16x1x32xf32>
    %78 = vector.shape_cast %77 : vector<16x1x32xf32> to vector<16x32xf32>
    %79 = vector.extract_strided_slice %52 {offsets = [0, 13, 0], sizes = [16, 1, 32], strides = [1, 1, 1]} : vector<16x16x32xf32> to vector<16x1x32xf32>
    %80 = vector.shape_cast %79 : vector<16x1x32xf32> to vector<16x32xf32>
    %81 = vector.extract_strided_slice %52 {offsets = [0, 14, 0], sizes = [16, 1, 32], strides = [1, 1, 1]} : vector<16x16x32xf32> to vector<16x1x32xf32>
    %82 = vector.shape_cast %81 : vector<16x1x32xf32> to vector<16x32xf32>
    %83 = vector.extract_strided_slice %52 {offsets = [0, 15, 0], sizes = [16, 1, 32], strides = [1, 1, 1]} : vector<16x16x32xf32> to vector<16x1x32xf32>
    %84 = vector.shape_cast %83 : vector<16x1x32xf32> to vector<16x32xf32>
    %85 = tpu.concatenate %54, %56, %58, %60, %62, %64, %66, %68, %70, %72, %74, %76, %78, %80, %82, %84 in 1 : vector<16x32xf32>, vector<16x32xf32>, vector<16x32xf32>, vector<16x32xf32>, vector<16x32xf32>, vector<16x32xf32>, vector<16x32xf32>, vector<16x32xf32>, vector<16x32xf32>, vector<16x32xf32>, vector<16x32xf32>, vector<16x32xf32>, vector<16x32xf32>, vector<16x32xf32>, vector<16x32xf32>, vector<16x32xf32> -> vector<16x512xf32>
    %c0_72 = arith.constant 0 : index
    %c0_73 = arith.constant 0 : index
    %c0_74 = arith.constant 0 : index
    %86 = vector.load %arg6[%c0_72, %c0_73, %c0_74] : memref<1x16x512xf32, #tpu.memory_space<vmem>>, vector<1x16x512xf32>
    %87 = vector.shape_cast %86 : vector<1x16x512xf32> to vector<16x512xf32>
    %88 = vector.shape_cast %85 : vector<16x512xf32> to vector<1x16x512xf32>
    tpu.vector_store %arg6[%c0_72, %c0_73, %c0_74], %88 {strides = array<i32>} : memref<1x16x512xf32, #tpu.memory_space<vmem>>, vector<1x16x512xf32>,
    %89 = vector.shape_cast %49 : vector<256x32xf32> to vector<16x16x32xf32>
    %90 = vector.extract_strided_slice %89 {offsets = [0, 0, 0], sizes = [16, 1, 32], strides = [1, 1, 1]} : vector<16x16x32xf32> to vector<16x1x32xf32>
    %91 = vector.shape_cast %90 : vector<16x1x32xf32> to vector<16x32xf32>
    %92 = vector.extract_strided_slice %89 {offsets = [0, 1, 0], sizes = [16, 1, 32], strides = [1, 1, 1]} : vector<16x16x32xf32> to vector<16x1x32xf32>
    %93 = vector.shape_cast %92 : vector<16x1x32xf32> to vector<16x32xf32>
    %94 = vector.extract_strided_slice %89 {offsets = [0, 2, 0], sizes = [16, 1, 32], strides = [1, 1, 1]} : vector<16x16x32xf32> to vector<16x1x32xf32>
    %95 = vector.shape_cast %94 : vector<16x1x32xf32> to vector<16x32xf32>
    %96 = vector.extract_strided_slice %89 {offsets = [0, 3, 0], sizes = [16, 1, 32], strides = [1, 1, 1]} : vector<16x16x32xf32> to vector<16x1x32xf32>
    %97 = vector.shape_cast %96 : vector<16x1x32xf32> to vector<16x32xf32>
    %98 = vector.extract_strided_slice %89 {offsets = [0, 4, 0], sizes = [16, 1, 32], strides = [1, 1, 1]} : vector<16x16x32xf32> to vector<16x1x32xf32>
    %99 = vector.shape_cast %98 : vector<16x1x32xf32> to vector<16x32xf32>
    %100 = vector.extract_strided_slice %89 {offsets = [0, 5, 0], sizes = [16, 1, 32], strides = [1, 1, 1]} : vector<16x16x32xf32> to vector<16x1x32xf32>
    %101 = vector.shape_cast %100 : vector<16x1x32xf32> to vector<16x32xf32>
    %102 = vector.extract_strided_slice %89 {offsets = [0, 6, 0], sizes = [16, 1, 32], strides = [1, 1, 1]} : vector<16x16x32xf32> to vector<16x1x32xf32>
    %103 = vector.shape_cast %102 : vector<16x1x32xf32> to vector<16x32xf32>
    %104 = vector.extract_strided_slice %89 {offsets = [0, 7, 0], sizes = [16, 1, 32], strides = [1, 1, 1]} : vector<16x16x32xf32> to vector<16x1x32xf32>
    %105 = vector.shape_cast %104 : vector<16x1x32xf32> to vector<16x32xf32>
    %106 = vector.extract_strided_slice %89 {offsets = [0, 8, 0], sizes = [16, 1, 32], strides = [1, 1, 1]} : vector<16x16x32xf32> to vector<16x1x32xf32>
    %107 = vector.shape_cast %106 : vector<16x1x32xf32> to vector<16x32xf32>
    %108 = vector.extract_strided_slice %89 {offsets = [0, 9, 0], sizes = [16, 1, 32], strides = [1, 1, 1]} : vector<16x16x32xf32> to vector<16x1x32xf32>
    %109 = vector.shape_cast %108 : vector<16x1x32xf32> to vector<16x32xf32>
    %110 = vector.extract_strided_slice %89 {offsets = [0, 10, 0], sizes = [16, 1, 32], strides = [1, 1, 1]} : vector<16x16x32xf32> to vector<16x1x32xf32>
    %111 = vector.shape_cast %110 : vector<16x1x32xf32> to vector<16x32xf32>
    %112 = vector.extract_strided_slice %89 {offsets = [0, 11, 0], sizes = [16, 1, 32], strides = [1, 1, 1]} : vector<16x16x32xf32> to vector<16x1x32xf32>
    %113 = vector.shape_cast %112 : vector<16x1x32xf32> to vector<16x32xf32>
    %114 = vector.extract_strided_slice %89 {offsets = [0, 12, 0], sizes = [16, 1, 32], strides = [1, 1, 1]} : vector<16x16x32xf32> to vector<16x1x32xf32>
    %115 = vector.shape_cast %114 : vector<16x1x32xf32> to vector<16x32xf32>
    %116 = vector.extract_strided_slice %89 {offsets = [0, 13, 0], sizes = [16, 1, 32], strides = [1, 1, 1]} : vector<16x16x32xf32> to vector<16x1x32xf32>
    %117 = vector.shape_cast %116 : vector<16x1x32xf32> to vector<16x32xf32>
    %118 = vector.extract_strided_slice %89 {offsets = [0, 14, 0], sizes = [16, 1, 32], strides = [1, 1, 1]} : vector<16x16x32xf32> to vector<16x1x32xf32>
    %119 = vector.shape_cast %118 : vector<16x1x32xf32> to vector<16x32xf32>
    %120 = vector.extract_strided_slice %89 {offsets = [0, 15, 0], sizes = [16, 1, 32], strides = [1, 1, 1]} : vector<16x16x32xf32> to vector<16x1x32xf32>
    %121 = vector.shape_cast %120 : vector<16x1x32xf32> to vector<16x32xf32>
    %122 = tpu.concatenate %91, %93, %95, %97, %99, %101, %103, %105, %107, %109, %111, %113, %115, %117, %119, %121 in 1 : vector<16x32xf32>, vector<16x32xf32>, vector<16x32xf32>, vector<16x32xf32>, vector<16x32xf32>, vector<16x32xf32>, vector<16x32xf32>, vector<16x32xf32>, vector<16x32xf32>, vector<16x32xf32>, vector<16x32xf32>, vector<16x32xf32>, vector<16x32xf32>, vector<16x32xf32>, vector<16x32xf32>, vector<16x32xf32> -> vector<16x512xf32>
    %c0_75 = arith.constant 0 : index
    %c0_76 = arith.constant 0 : index
    %c0_77 = arith.constant 0 : index
    %123 = vector.load %arg7[%c0_75, %c0_76, %c0_77] : memref<1x16x512xf32, #tpu.memory_space<vmem>>, vector<1x16x512xf32>
    %124 = vector.shape_cast %123 : vector<1x16x512xf32> to vector<16x512xf32>
    %125 = vector.shape_cast %122 : vector<16x512xf32> to vector<1x16x512xf32>
    tpu.vector_store %arg7[%c0_75, %c0_76, %c0_77], %125 {strides = array<i32>} : memref<1x16x512xf32, #tpu.memory_space<vmem>>, vector<1x16x512xf32>,
    return
  }
  func.func @transform_0(%arg0: i32, %arg1: i32) -> (i32, i32, i32, i32, i32) {
    %c0_i32 = arith.constant 0 : i32
    %c0_i32_0 = arith.constant 0 : i32
    %c0_i32_1 = arith.constant 0 : i32
    %c0_i32_2 = arith.constant 0 : i32
    return %arg0, %arg1, %c0_i32, %c0_i32_0, %c0_i32_1 : i32, i32, i32, i32, i32
  }
  func.func @transform_1(%arg0: i32, %arg1: i32) -> (i32, i32) {
    %c0_i32 = arith.constant 0 : i32
    %c0_i32_0 = arith.constant 0 : i32
    %c0_i32_1 = arith.constant 0 : i32
    return %c0_i32, %c0_i32_0 : i32, i32
  }
  func.func @transform_2(%arg0: i32, %arg1: i32) -> (i32, i32) {
    %c0_i32 = arith.constant 0 : i32
    %c0_i32_0 = arith.constant 0 : i32
    %c0_i32_1 = arith.constant 0 : i32
    return %c0_i32, %c0_i32_0 : i32, i32
  }
  func.func @transform_3(%arg0: i32, %arg1: i32) -> (i32, i32, i32) {
    %c0_i32 = arith.constant 0 : i32
    %c0_i32_0 = arith.constant 0 : i32
    return %arg0, %arg1, %c0_i32 : i32, i32, i32
  }
  func.func @transform_4(%arg0: i32, %arg1: i32) -> (i32, i32, i32) {
    %c0_i32 = arith.constant 0 : i32
    %c0_i32_0 = arith.constant 0 : i32
    return %arg0, %arg1, %c0_i32 : i32, i32, i32
  }
  func.func @transform_5(%arg0: i32, %arg1: i32) -> (i32, i32, i32) {
    %c0_i32 = arith.constant 0 : i32
    %c0_i32_0 = arith.constant 0 : i32
    return %arg0, %arg1, %c0_i32 : i32, i32, i32
  }
}

</mosaic_0001>

<llo_original>
// kernel: conv_lstm_cell.1
$region0: #{conv_lstm_cell.1}
  #allocation0 [shape = 'u32[]', space=smem, size = 0x4, offset = 0x4, fixed_abs, tag = 'smem constant byte address 0x4 - core index']
  #allocation1 [shape = 'u32[144,128]{1,0:T(1,128)}', space=vmem, size = 0x12000, scoped, tag = 'internal scratch']
  #allocation2 [shape = 'bf16[16,16,324]{2,1,0:T(16,128)(2,1)}', space=vmem, size = 0x30000, scoped, tag = 'scratch operand']
  %s0 = inlined_call_operand.vmem [shape: bf16[2,1,18,18,36], index: 0, kind: input, shape index: {}]
  %s1 = inlined_call_operand.vmem [shape: bf16[324,128], index: 1, kind: input, shape index: {}]
  %s2 = inlined_call_operand.vmem [shape: f32[1,128], index: 2, kind: input, shape index: {}]
  %s3 = inlined_call_operand.vmem [shape: f32[2,256,32], index: 3, kind: input, shape index: {}]
  %s4 = inlined_call_operand.vmem [shape: f32[2,16,512], index: 4, kind: output, shape index: {0}]
  %s5 = inlined_call_operand.vmem [shape: f32[2,16,512], index: 5, kind: output, shape index: {1}]
  %6 = xla_tuple %s4, %s5
  %s7 = sld [smem:[#allocation0]]
  $region57: #{conv_lstm_cell.1} parent=0
    _
  %s9 = ssub.s32 1, %s7
  %s10 = scalar_select 0, %s9, %s7
  loop: start=0, step=1, limit=4
  $region2: #{conv_lstm_cell.1} parent=0 // loop_pre_header
    _
  $region3: #{conv_lstm_cell.1} parent=0 // loop_header
    %s12 = sphi 0, %s16
    %p13 = scmp.ge.s32.totalorder %s12, 4
    %s19 = sphi 0, %s31
    %s20 = sphi 0, %s27
    %s21 = sphi 0, %s19
    %s22 = sphi 0, %s20
    %s23 = sphi 0, %s21
    %s24 = sphi 0, %s22
    %s36 = sphi 0, %s38
    %s39 = sphi 0, %s36
    %s40 = sphi 0, %s39
    %s56 = sphi 0, %s40
    %s60 = sphi 0, %s60
    %s62 = sphi 0, %s60
    %s63 = sphi 0, %s62
    %s77 = sphi 0, %s63
    %s81 = sphi 0, %s81
    %s83 = sphi 0, %s81
    %s84 = sphi 0, %s83
    %s98 = sphi 0, %s84
    %s106 = sphi 0, %s108
    %s109 = sphi 0, %s106
    %s110 = sphi 0, %s109
    %s126 = sphi 0, %s110
    %s134 = sphi 0, %s136
    %s137 = sphi 0, %s134
    %s138 = sphi 0, %s137
    %s154 = sphi 0, %s138
    %s162 = sphi 0, %s164
    %s165 = sphi 0, %s162
    %s166 = sphi 0, %s165
    %s182 = sphi 0, %s166
  $region4: #{conv_lstm_cell.1} parent=0 // loop_header_branch
    %15 = sbr.rel (%p13) target = $region8
  $region5: #{conv_lstm_cell.1} parent=0 // loop_body
    %s17 = ssub.s32 %s12, 1
    %s18 = ssub.s32 %s12, 2
    %s25 = sadd.s32 1, %s20
    %p26 = scmp.ge.s32.totalorder %s25, 1
    %s27 = scalar_select %p26, 0, %s25
    %s28 = sadd.s32 1, %s19
    %s29 = scalar_select %p26, %s28, %s19
    %p30 = scmp.ge.s32.totalorder %s29, 2
    %s31 = scalar_select %p30, 0, %s29
    %s32 = ssub.s32 %s19, %s31
    %s33 = ssub.s32 %s20, %s27
    %s34 = sor.u32 %s32, %s33
    %p35 = scmp.eq.s32.totalorder %s34, 0
    %s37 = sadd.s32 %s36, 1
    %s38 = scalar_select %p35, %s36, %s37
    %p41 = pneg %p35
    %p42 = scmp.eq.s32.totalorder %s12, 1
    %p43 = por %p41, %p42
    %p44 = scmp.ne.s32.totalorder %s36, %s39
    %p45 = scmp.eq.s32.totalorder %s12, 0
    %p46 = por %p44, %p45
    %p47 = scmp.ne.s32.totalorder %s36, %s39
    %p48 = scmp.eq.s32.totalorder %s17, 1
    %p49 = por %p47, %p48
    %p50 = scmp.ne.s32.totalorder %s39, %s40
    %p51 = scmp.eq.s32.totalorder %s17, 0
    %p52 = por %p50, %p51
    %p53 = scmp.ne.s32.totalorder %s39, %s40
    %p54 = scmp.eq.s32.totalorder %s18, 1
    %p55 = por %p53, %p54
    %p57 = scmp.ne.s32.totalorder %s40, %s56
    %p58 = scmp.eq.s32.totalorder %s18, 0
    %p59 = por %p57, %p58
    %s61 = sadd.s32 %s60, 1
    %p64 = scmp.eq.s32.totalorder %s12, 1
    %p65 = scmp.ne.s32.totalorder %s60, %s62
    %p66 = scmp.eq.s32.totalorder %s12, 0
    %p67 = por %p65, %p66
    %p68 = scmp.ne.s32.totalorder %s60, %s62
    %p69 = scmp.eq.s32.totalorder %s17, 1
    %p70 = por %p68, %p69
    %p71 = scmp.ne.s32.totalorder %s62, %s63
    %p72 = scmp.eq.s32.totalorder %s17, 0
    %p73 = por %p71, %p72
    %p74 = scmp.ne.s32.totalorder %s62, %s63
    %p75 = scmp.eq.s32.totalorder %s18, 1
    %p76 = por %p74, %p75
    %p78 = scmp.ne.s32.totalorder %s63, %s77
    %p79 = scmp.eq.s32.totalorder %s18, 0
    %p80 = por %p78, %p79
    %s82 = sadd.s32 %s81, 1
    %p85 = scmp.eq.s32.totalorder %s12, 1
    %p86 = scmp.ne.s32.totalorder %s81, %s83
    %p87 = scmp.eq.s32.totalorder %s12, 0
    %p88 = por %p86, %p87
    %p89 = scmp.ne.s32.totalorder %s81, %s83
    %p90 = scmp.eq.s32.totalorder %s17, 1
    %p91 = por %p89, %p90
    %p92 = scmp.ne.s32.totalorder %s83, %s84
    %p93 = scmp.eq.s32.totalorder %s17, 0
    %p94 = por %p92, %p93
    %p95 = scmp.ne.s32.totalorder %s83, %s84
    %p96 = scmp.eq.s32.totalorder %s18, 1
    %p97 = por %p95, %p96
    %p99 = scmp.ne.s32.totalorder %s84, %s98
    %p100 = scmp.eq.s32.totalorder %s18, 0
    %p101 = por %p99, %p100
    %s102 = ssub.s32 %s19, %s31
    %s103 = ssub.s32 %s20, %s27
    %s104 = sor.u32 %s102, %s103
    %p105 = scmp.eq.s32.totalorder %s104, 0
    %s107 = sadd.s32 %s106, 1
    %s108 = scalar_select %p105, %s106, %s107
    %p111 = pneg %p105
    %p112 = scmp.eq.s32.totalorder %s12, 1
    %p113 = por %p111, %p112
    %p114 = scmp.ne.s32.totalorder %s106, %s109
    %p115 = scmp.eq.s32.totalorder %s12, 0
    %p116 = por %p114, %p115
    %p117 = scmp.ne.s32.totalorder %s106, %s109
    %p118 = scmp.eq.s32.totalorder %s17, 1
    %p119 = por %p117, %p118
    %p120 = scmp.ne.s32.totalorder %s109, %s110
    %p121 = scmp.eq.s32.totalorder %s17, 0
    %p122 = por %p120, %p121
    %p123 = scmp.ne.s32.totalorder %s109, %s110
    %p124 = scmp.eq.s32.totalorder %s18, 1
    %p125 = por %p123, %p124
    %p127 = scmp.ne.s32.totalorder %s110, %s126
    %p128 = scmp.eq.s32.totalorder %s18, 0
    %p129 = por %p127, %p128
    %s130 = ssub.s32 %s19, %s31
    %s131 = ssub.s32 %s20, %s27
    %s132 = sor.u32 %s130, %s131
    %p133 = scmp.eq.s32.totalorder %s132, 0
    %s135 = sadd.s32 %s134, 1
    %s136 = scalar_select %p133, %s134, %s135
    %p139 = pneg %p133
    %p140 = scmp.eq.s32.totalorder %s12, 1
    %p141 = por %p139, %p140
    %p142 = scmp.ne.s32.totalorder %s134, %s137
    %p143 = scmp.eq.s32.totalorder %s12, 0
    %p144 = por %p142, %p143
    %p145 = scmp.ne.s32.totalorder %s134, %s137
    %p146 = scmp.eq.s32.totalorder %s17, 1
    %p147 = por %p145, %p146
    %p148 = scmp.ne.s32.totalorder %s137, %s138
    %p149 = scmp.eq.s32.totalorder %s17, 0
    %p150 = por %p148, %p149
    %p151 = scmp.ne.s32.totalorder %s137, %s138
    %p152 = scmp.eq.s32.totalorder %s18, 1
    %p153 = por %p151, %p152
    %p155 = scmp.ne.s32.totalorder %s138, %s154
    %p156 = scmp.eq.s32.totalorder %s18, 0
    %p157 = por %p155, %p156
    %s158 = ssub.s32 %s19, %s31
    %s159 = ssub.s32 %s20, %s27
    %s160 = sor.u32 %s158, %s159
    %p161 = scmp.eq.s32.totalorder %s160, 0
    %s163 = sadd.s32 %s162, 1
    %s164 = scalar_select %p161, %s162, %s163
    %p167 = pneg %p161
    %p168 = scmp.eq.s32.totalorder %s12, 1
    %p169 = por %p167, %p168
    %p170 = scmp.ne.s32.totalorder %s162, %s165
    %p171 = scmp.eq.s32.totalorder %s12, 0
    %p172 = por %p170, %p171
    %p173 = scmp.ne.s32.totalorder %s162, %s165
    %p174 = scmp.eq.s32.totalorder %s17, 1
    %p175 = por %p173, %p174
    %p176 = scmp.ne.s32.totalorder %s165, %s166
    %p177 = scmp.eq.s32.totalorder %s17, 0
    %p178 = por %p176, %p177
    %p179 = scmp.ne.s32.totalorder %s165, %s166
    %p180 = scmp.eq.s32.totalorder %s18, 1
    %p181 = por %p179, %p180
    %p183 = scmp.ne.s32.totalorder %s166, %s182
    %p184 = scmp.eq.s32.totalorder %s18, 0
    %p185 = por %p183, %p184
    %p186 = scmp.le.s32.totalorder 1, %s12
    %p187 = scmp.lt.s32.totalorder %s12, 3
    %p188 = pnand %p186, %p187
    %p189 = pneg %p188
    // Predicated region
    $region9: #{conv_lstm_cell.1} parent=5 // pred_check
      _
    $region10: #{conv_lstm_cell.1} parent=5 // pred_check_branch
      %191 = sbr.rel (%p188) target = $region12
    $region11: #{conv_lstm_cell.1} parent=5 // pred_region
      %s192 = ssub.s32 %s12, 1
      // Predicated region
      $region13: #{conv_lstm_cell.1} parent=11 // pred_check
        %p193 = pneg %p73
      $region14: #{conv_lstm_cell.1} parent=11 // pred_check_branch
        %195 = sbr.rel (%p193) target = $region16
      $region15: #{conv_lstm_cell.1} parent=11 // pred_region
        _
      $region16: #{conv_lstm_cell.1} parent=11 // pred_fallthru
        _
      // Predicated region
      $region17: #{conv_lstm_cell.1} parent=11 // pred_check
        %p196 = pneg %p94
      $region18: #{conv_lstm_cell.1} parent=11 // pred_check_branch
        %198 = sbr.rel (%p196) target = $region20
      $region19: #{conv_lstm_cell.1} parent=11 // pred_region
        _
      $region20: #{conv_lstm_cell.1} parent=11 // pred_fallthru
        _
    $region12: #{conv_lstm_cell.1} parent=5 // pred_fallthru
      _
    %p199 = scmp.lt.s32.totalorder %s12, 2
    // Predicated region
    $region21: #{conv_lstm_cell.1} parent=5 // pred_check
      %p200 = pneg %p199
    $region22: #{conv_lstm_cell.1} parent=5 // pred_check_branch
      %202 = sbr.rel (%p200) target = $region24
    $region23: #{conv_lstm_cell.1} parent=5 // pred_region
      // Predicated region
      $region25: #{conv_lstm_cell.1} parent=23 // pred_check
        %p203 = pneg %p46
      $region26: #{conv_lstm_cell.1} parent=23 // pred_check_branch
        %205 = sbr.rel (%p203) target = $region28
      $region27: #{conv_lstm_cell.1} parent=23 // pred_region
        %p206 = scmp.lt.s32.totalorder %s19, 1
        %s207 = scalar_select %p206, %s19, 1
        %p208 = scmp.lt.s32.totalorder %s20, 0
        %s209 = scalar_select %p208, %s20, 0
        %s210 = smul.addr %s209, 54
        %s211 = smul.addr %s207, 54
        %s212 = sadd.s32 %s210, %s211
        %s213 = smul.addr %s212, 4
        %s214 = scalar_lea.vmem %s0, %s213
      $region28: #{conv_lstm_cell.1} parent=23 // pred_fallthru
        _
      // Predicated region
      $region29: #{conv_lstm_cell.1} parent=23 // pred_check
        %p215 = pneg %p116
      $region30: #{conv_lstm_cell.1} parent=23 // pred_check_branch
        %217 = sbr.rel (%p215) target = $region32
      $region31: #{conv_lstm_cell.1} parent=23 // pred_region
        %s218 = smul.u32 32, %s20
        %p219 = scmp.lt.s32.totalorder %s19, 1
        %s220 = scalar_select %p219, %s19, 1
        %p221 = scmp.lt.s32.totalorder %s218, 31
        %s222 = scalar_select %p221, %s218, 31
        %s223 = smul.addr %s220, 32
        %s224 = sadd.s32 %s222, %s223
        %s225 = smul.addr %s224, 8
        %s226 = scalar_lea.vmem %s3, %s225
        %s227 = smul.u32 32, %s20
      $region32: #{conv_lstm_cell.1} parent=23 // pred_fallthru
        _
    $region24: #{conv_lstm_cell.1} parent=5 // pred_fallthru
      _
    %p228 = scmp.le.s32.totalorder 1, %s12
    %p229 = scmp.lt.s32.totalorder %s12, 3
    %p230 = pnand %p228, %p229
    %p231 = pneg %p230
    // Predicated region
    $region33: #{conv_lstm_cell.1} parent=5 // pred_check
      _
    $region34: #{conv_lstm_cell.1} parent=5 // pred_check_branch
      %233 = sbr.rel (%p230) target = $region36
    $region35: #{conv_lstm_cell.1} parent=5 // pred_region
      %s234 = ssub.s32 %s12, 1
      %p235 = scmp.lt.s32.totalorder %s21, 1
      %s236 = scalar_select %p235, %s21, 1
      %p237 = scmp.lt.s32.totalorder %s22, 0
      %s238 = scalar_select %p237, %s22, 0
      %s239 = smul.addr %s238, 54
      %s240 = smul.addr %s236, 54
      %s241 = sadd.s32 %s239, %s240
      %s242 = smul.addr %s241, 4
      %s243 = scalar_lea.vmem %s0, %s242
      %p244 = pneg %p52
      %p245 = pneg %p49
      %p246 = pneg %p73
      %p247 = pneg %p70
      %p248 = pneg %p94
      %p249 = pneg %p91
      %s250 = smul.u32 32, %s22
      %p251 = scmp.lt.s32.totalorder %s21, 1
      %s252 = scalar_select %p251, %s21, 1
      %p253 = scmp.lt.s32.totalorder %s250, 31
      %s254 = scalar_select %p253, %s250, 31
      %s255 = smul.addr %s252, 32
      %s256 = sadd.s32 %s254, %s255
      %s257 = smul.addr %s256, 8
      %s258 = scalar_lea.vmem %s3, %s257
      %p259 = pneg %p122
      %p260 = pneg %p119
      %p261 = pneg %p150
      %p262 = pneg %p147
      %s263 = smul.u32 2, %s22
      %p264 = scmp.lt.s32.totalorder %s21, 1
      %s265 = scalar_select %p264, %s21, 1
      %p266 = scmp.lt.s32.totalorder %s263, 1
      %s267 = scalar_select %p266, %s263, 1
      %s268 = smul.addr %s267, 4
      %s269 = smul.addr %s265, 8
      %s270 = sadd.s32 %s268, %s269
      %s271 = smul.addr %s270, 8
      %s272 = scalar_lea.vmem %s4, %s271
      %p273 = pneg %p178
      %p274 = pneg %p175
      %s275 = smul.u32 2, %s22
      %p276 = scmp.lt.s32.totalorder %s21, 1
      %s277 = scalar_select %p276, %s21, 1
      %p278 = scmp.lt.s32.totalorder %s275, 1
      %s279 = scalar_select %p278, %s275, 1
      %s280 = smul.addr %s279, 4
      %s281 = smul.addr %s277, 8
      %s282 = sadd.s32 %s280, %s281
      %s283 = smul.addr %s282, 8
      %s284 = scalar_lea.vmem %s5, %s283
      %p285 = scmp.lt.s32.totalorder %s21, 1
      %s286 = scalar_select %p285, %s21, 1
      %p287 = scmp.lt.s32.totalorder %s22, 0
      %s288 = scalar_select %p287, %s22, 0
      %s289 = smul.addr %s288, 54
      %s290 = smul.addr %s286, 54
      %s291 = sadd.s32 %s289, %s290
      %s292 = smul.addr %s291, 4
      %s293 = scalar_lea.vmem %s0, %s292
      %s294 = smul.u32 32, %s22
      %p295 = scmp.lt.s32.totalorder %s21, 1
      %s296 = scalar_select %p295, %s21, 1
      %p297 = scmp.lt.s32.totalorder %s294, 31
      %s298 = scalar_select %p297, %s294, 31
      %s299 = smul.addr %s296, 32
      %s300 = sadd.s32 %s298, %s299
      %s301 = smul.addr %s300, 8
      %s302 = scalar_lea.vmem %s3, %s301
      %s303 = smul.u32 32, %s22
      %s304 = smul.u32 2, %s22
      %p305 = scmp.lt.s32.totalorder %s21, 1
      %s306 = scalar_select %p305, %s21, 1
      %p307 = scmp.lt.s32.totalorder %s304, 1
      %s308 = scalar_select %p307, %s304, 1
      %s309 = smul.addr %s308, 4
      %s310 = smul.addr %s306, 8
      %s311 = sadd.s32 %s309, %s310
      %s312 = smul.addr %s311, 8
      %s313 = scalar_lea.vmem %s4, %s312
      %s314 = smul.u32 2, %s22
      %s315 = smul.u32 2, %s22
      %p316 = scmp.lt.s32.totalorder %s21, 1
      %s317 = scalar_select %p316, %s21, 1
      %p318 = scmp.lt.s32.totalorder %s315, 1
      %s319 = scalar_select %p318, %s315, 1
      %s320 = smul.addr %s319, 4
      %s321 = smul.addr %s317, 8
      %s322 = sadd.s32 %s320, %s321
      %s323 = smul.addr %s322, 8
      %s324 = scalar_lea.vmem %s5, %s323
      %s325 = smul.u32 2, %s22
      %v327 = vld [vmem:[%s293] sm:$0xf]
      %v328 = vld [vmem:[%s293 + $0x4] sm:$0xf]
      %v329 = vld [vmem:[%s293 + $0xc] sm:$0xf]
      %v330 = vld [vmem:[%s293 + $0x10] sm:$0xf]
      %v331 = vld [vmem:[%s293 + $0x18] sm:$0xf]
      %v332 = vld [vmem:[%s293 + $0x1c] sm:$0xf]
      %v333 = vld [vmem:[%s293 + $0x24] sm:$0xf]
      %v334 = vld [vmem:[%s293 + $0x28] sm:$0xf]
      %v335 = vld [vmem:[%s293 + $0x30] sm:$0xf]
      %v336 = vld [vmem:[%s293 + $0x34] sm:$0xf]
      %v337 = vld [vmem:[%s293 + $0x3c] sm:$0xf]
      %v338 = vld [vmem:[%s293 + $0x40] sm:$0xf]
      %v339 = vld [vmem:[%s293 + $0x48] sm:$0xf]
      %v340 = vld [vmem:[%s293 + $0x4c] sm:$0xf]
      %v341 = vld [vmem:[%s293 + $0x54] sm:$0xf]
      %v342 = vld [vmem:[%s293 + $0x58] sm:$0xf]
      %v343 = vld [vmem:[%s293 + $0x60] sm:$0xf]
      %v344 = vld [vmem:[%s293 + $0x64] sm:$0xf]
      %v345 = vld [vmem:[%s293 + $0x6c] sm:$0xf]
      %v346 = vld [vmem:[%s293 + $0x70] sm:$0xf]
      %v347 = vld [vmem:[%s293 + $0x78] sm:$0xf]
      %v348 = vld [vmem:[%s293 + $0x7c] sm:$0xf]
      %v349 = vld [vmem:[%s293 + $0x84] sm:$0xf]
      %v350 = vld [vmem:[%s293 + $0x88] sm:$0xf]
      %v351 = vld [vmem:[%s293 + $0x90] sm:$0xf]
      %v352 = vld [vmem:[%s293 + $0x94] sm:$0xf]
      %v353 = vld [vmem:[%s293 + $0x9c] sm:$0xf]
      %v354 = vld [vmem:[%s293 + $0xa0] sm:$0xf]
      %v355 = vld [vmem:[%s293 + $0xa8] sm:$0xf]
      %v356 = vld [vmem:[%s293 + $0xac] sm:$0xf]
      %v357 = vld [vmem:[%s293 + $0xb4] sm:$0xf]
      %v358 = vld [vmem:[%s293 + $0xb8] sm:$0xf]
      %v391 = vunpack.c.l.b16 %v327
      %v392 = vunpack.c.l.b16 %v328
      %v393 = vunpack.c.l.b16 %v329
      %v394 = vunpack.c.l.b16 %v330
      %v395 = vunpack.c.l.b16 %v331
      %v396 = vunpack.c.l.b16 %v332
      %v397 = vunpack.c.l.b16 %v333
      %v398 = vunpack.c.l.b16 %v334
      %v399 = vunpack.c.l.b16 %v335
      %v400 = vunpack.c.l.b16 %v336
      %v401 = vunpack.c.l.b16 %v337
      %v402 = vunpack.c.l.b16 %v338
      %v403 = vunpack.c.l.b16 %v339
      %v404 = vunpack.c.l.b16 %v340
      %v405 = vunpack.c.l.b16 %v341
      %v406 = vunpack.c.l.b16 %v342
      %v407 = vunpack.c.l.b16 %v343
      %v408 = vunpack.c.l.b16 %v344
      %v409 = vunpack.c.l.b16 %v345
      %v410 = vunpack.c.l.b16 %v346
      %v411 = vunpack.c.l.b16 %v347
      %v412 = vunpack.c.l.b16 %v348
      %v413 = vunpack.c.l.b16 %v349
      %v414 = vunpack.c.l.b16 %v350
      %v415 = vunpack.c.l.b16 %v351
      %v416 = vunpack.c.l.b16 %v352
      %v417 = vunpack.c.l.b16 %v353
      %v418 = vunpack.c.l.b16 %v354
      %v419 = vunpack.c.l.b16 %v355
      %v420 = vunpack.c.l.b16 %v356
      %v421 = vunpack.c.l.b16 %v357
      %v422 = vunpack.c.l.b16 %v358
      %v423 = vpack.c.b16 %v392, %v391
      %v424 = vpack.c.b16 %v394, %v393
      %v425 = vpack.c.b16 %v396, %v395
      %v426 = vpack.c.b16 %v398, %v397
      %v427 = vpack.c.b16 %v400, %v399
      %v428 = vpack.c.b16 %v402, %v401
      %v429 = vpack.c.b16 %v404, %v403
      %v430 = vpack.c.b16 %v406, %v405
      %v431 = vpack.c.b16 %v408, %v407
      %v432 = vpack.c.b16 %v410, %v409
      %v433 = vpack.c.b16 %v412, %v411
      %v434 = vpack.c.b16 %v414, %v413
      %v435 = vpack.c.b16 %v416, %v415
      %v436 = vpack.c.b16 %v418, %v417
      %v437 = vpack.c.b16 %v420, %v419
      %v438 = vpack.c.b16 %v422, %v421
      %vm455 = vcmask 293888
      %456 = vst.msk [vmem:[#allocation2] sm:$0xff] %vm455, %v423
      %457 = vst.msk [vmem:[#allocation2 + $0x18] sm:$0xff] %vm455, %v424
      %458 = vst.msk [vmem:[#allocation2 + $0x30] sm:$0xff] %vm455, %v425
      %459 = vst.msk [vmem:[#allocation2 + $0x48] sm:$0xff] %vm455, %v426
      %460 = vst.msk [vmem:[#allocation2 + $0x60] sm:$0xff] %vm455, %v427
      %461 = vst.msk [vmem:[#allocation2 + $0x78] sm:$0xff] %vm455, %v428
      %462 = vst.msk [vmem:[#allocation2 + $0x90] sm:$0xff] %vm455, %v429
      %463 = vst.msk [vmem:[#allocation2 + $0xa8] sm:$0xff] %vm455, %v430
      %464 = vst.msk [vmem:[#allocation2 + $0xc0] sm:$0xff] %vm455, %v431
      %465 = vst.msk [vmem:[#allocation2 + $0xd8] sm:$0xff] %vm455, %v432
      %466 = vst.msk [vmem:[#allocation2 + $0xf0] sm:$0xff] %vm455, %v433
      %467 = vst.msk [vmem:[#allocation2 + $0x108] sm:$0xff] %vm455, %v434
      %468 = vst.msk [vmem:[#allocation2 + $0x120] sm:$0xff] %vm455, %v435
      %469 = vst.msk [vmem:[#allocation2 + $0x138] sm:$0xff] %vm455, %v436
      %470 = vst.msk [vmem:[#allocation2 + $0x150] sm:$0xff] %vm455, %v437
      %471 = vst.msk [vmem:[#allocation2 + $0x168] sm:$0xff] %vm455, %v438
      %v472 = vld [vmem:[%s293] sm:$0xf]
      %v473 = vld [vmem:[%s293 + $0x4] sm:$0xf]
      %v474 = vld [vmem:[%s293 + $0x8] sm:$0x1]
      %v475 = vld [vmem:[%s293 + $0xc] sm:$0xf]
      %v476 = vld [vmem:[%s293 + $0x10] sm:$0xf]
      %v477 = vld [vmem:[%s293 + $0x14] sm:$0x1]
      %v478 = vld [vmem:[%s293 + $0x18] sm:$0xf]
      %v479 = vld [vmem:[%s293 + $0x1c] sm:$0xf]
      %v480 = vld [vmem:[%s293 + $0x20] sm:$0x1]
      %v481 = vld [vmem:[%s293 + $0x24] sm:$0xf]
      %v482 = vld [vmem:[%s293 + $0x28] sm:$0xf]
      %v483 = vld [vmem:[%s293 + $0x2c] sm:$0x1]
      %v484 = vld [vmem:[%s293 + $0x30] sm:$0xf]
      %v485 = vld [vmem:[%s293 + $0x34] sm:$0xf]
      %v486 = vld [vmem:[%s293 + $0x38] sm:$0x1]
      %v487 = vld [vmem:[%s293 + $0x3c] sm:$0xf]
      %v488 = vld [vmem:[%s293 + $0x40] sm:$0xf]
      %v489 = vld [vmem:[%s293 + $0x44] sm:$0x1]
      %v490 = vld [vmem:[%s293 + $0x48] sm:$0xf]
      %v491 = vld [vmem:[%s293 + $0x4c] sm:$0xf]
      %v492 = vld [vmem:[%s293 + $0x50] sm:$0x1]
      %v493 = vld [vmem:[%s293 + $0x54] sm:$0xf]
      %v494 = vld [vmem:[%s293 + $0x58] sm:$0xf]
      %v495 = vld [vmem:[%s293 + $0x5c] sm:$0x1]
      %v496 = vld [vmem:[%s293 + $0x60] sm:$0xf]
      %v497 = vld [vmem:[%s293 + $0x64] sm:$0xf]
      %v498 = vld [vmem:[%s293 + $0x68] sm:$0x1]
      %v499 = vld [vmem:[%s293 + $0x6c] sm:$0xf]
      %v500 = vld [vmem:[%s293 + $0x70] sm:$0xf]
      %v501 = vld [vmem:[%s293 + $0x74] sm:$0x1]
      %v502 = vld [vmem:[%s293 + $0x78] sm:$0xf]
      %v503 = vld [vmem:[%s293 + $0x7c] sm:$0xf]
      %v504 = vld [vmem:[%s293 + $0x80] sm:$0x1]
      %v505 = vld [vmem:[%s293 + $0x84] sm:$0xf]
      %v506 = vld [vmem:[%s293 + $0x88] sm:$0xf]
      %v507 = vld [vmem:[%s293 + $0x8c] sm:$0x1]
      %v508 = vld [vmem:[%s293 + $0x90] sm:$0xf]
      %v509 = vld [vmem:[%s293 + $0x94] sm:$0xf]
      %v510 = vld [vmem:[%s293 + $0x98] sm:$0x1]
      %v511 = vld [vmem:[%s293 + $0x9c] sm:$0xf]
      %v512 = vld [vmem:[%s293 + $0xa0] sm:$0xf]
      %v513 = vld [vmem:[%s293 + $0xa4] sm:$0x1]
      %v514 = vld [vmem:[%s293 + $0xa8] sm:$0xf]
      %v515 = vld [vmem:[%s293 + $0xac] sm:$0xf]
      %v516 = vld [vmem:[%s293 + $0xb0] sm:$0x1]
      %v517 = vld [vmem:[%s293 + $0xb4] sm:$0xf]
      %v518 = vld [vmem:[%s293 + $0xb8] sm:$0xf]
      %v519 = vld [vmem:[%s293 + $0xbc] sm:$0x1]
      %v568 = vunpack.c.l.b16 %v472
      %v569 = vunpack.c.l.b16 %v473
      %v570 = vunpack.c.l.b16 %v474
      %v571 = vunpack.c.l.b16 %v475
      %v572 = vunpack.c.l.b16 %v476
      %v573 = vunpack.c.l.b16 %v477
      %v574 = vunpack.c.l.b16 %v478
      %v575 = vunpack.c.l.b16 %v479
      %v576 = vunpack.c.l.b16 %v480
      %v577 = vunpack.c.l.b16 %v481
      %v578 = vunpack.c.l.b16 %v482
      %v579 = vunpack.c.l.b16 %v483
      %v580 = vunpack.c.l.b16 %v484
      %v581 = vunpack.c.l.b16 %v485
      %v582 = vunpack.c.l.b16 %v486
      %v583 = vunpack.c.l.b16 %v487
      %v584 = vunpack.c.l.b16 %v488
      %v585 = vunpack.c.l.b16 %v489
      %v586 = vunpack.c.l.b16 %v490
      %v587 = vunpack.c.l.b16 %v491
      %v588 = vunpack.c.l.b16 %v492
      %v589 = vunpack.c.l.b16 %v493
      %v590 = vunpack.c.l.b16 %v494
      %v591 = vunpack.c.l.b16 %v495
      %v592 = vunpack.c.l.b16 %v496
      %v593 = vunpack.c.l.b16 %v497
      %v594 = vunpack.c.l.b16 %v498
      %v595 = vunpack.c.l.b16 %v499
      %v596 = vunpack.c.l.b16 %v500
      %v597 = vunpack.c.l.b16 %v501
      %v598 = vunpack.c.l.b16 %v502
      %v599 = vunpack.c.l.b16 %v503
      %v600 = vunpack.c.l.b16 %v504
      %v601 = vunpack.c.l.b16 %v505
      %v602 = vunpack.c.l.b16 %v506
      %v603 = vunpack.c.l.b16 %v507
      %v604 = vunpack.c.l.b16 %v508
      %v605 = vunpack.c.l.b16 %v509
      %v606 = vunpack.c.l.b16 %v510
      %v607 = vunpack.c.l.b16 %v511
      %v608 = vunpack.c.l.b16 %v512
      %v609 = vunpack.c.l.b16 %v513
      %v610 = vunpack.c.l.b16 %v514
      %v611 = vunpack.c.l.b16 %v515
      %v612 = vunpack.c.l.b16 %v516
      %v613 = vunpack.c.l.b16 %v517
      %v614 = vunpack.c.l.b16 %v518
      %v615 = vunpack.c.l.b16 %v519
      %v616 = vpack.c.b16 %v569, %v568
      %v617 = vpack.c.b16 %v570, %v570
      %v618 = vpack.c.b16 %v572, %v571
      %v619 = vpack.c.b16 %v573, %v573
      %v620 = vpack.c.b16 %v575, %v574
      %v621 = vpack.c.b16 %v576, %v576
      %v622 = vpack.c.b16 %v578, %v577
      %v623 = vpack.c.b16 %v579, %v579
      %v624 = vpack.c.b16 %v581, %v580
      %v625 = vpack.c.b16 %v582, %v582
      %v626 = vpack.c.b16 %v584, %v583
      %v627 = vpack.c.b16 %v585, %v585
      %v628 = vpack.c.b16 %v587, %v586
      %v629 = vpack.c.b16 %v588, %v588
      %v630 = vpack.c.b16 %v590, %v589
      %v631 = vpack.c.b16 %v591, %v591
      %v632 = vpack.c.b16 %v593, %v592
      %v633 = vpack.c.b16 %v594, %v594
      %v634 = vpack.c.b16 %v596, %v595
      %v635 = vpack.c.b16 %v597, %v597
      %v636 = vpack.c.b16 %v599, %v598
      %v637 = vpack.c.b16 %v600, %v600
      %v638 = vpack.c.b16 %v602, %v601
      %v639 = vpack.c.b16 %v603, %v603
      %v640 = vpack.c.b16 %v605, %v604
      %v641 = vpack.c.b16 %v606, %v606
      %v642 = vpack.c.b16 %v608, %v607
      %v643 = vpack.c.b16 %v609, %v609
      %v644 = vpack.c.b16 %v611, %v610
      %v645 = vpack.c.b16 %v612, %v612
      %v646 = vpack.c.b16 %v614, %v613
      %v647 = vpack.c.b16 %v615, %v615
      %vm648 = vsmask.f32 7424
      %v650 = vshrl.u32 %v616, 16
      %v652 = vshll.u32 %v616, 16
      %v654 = vrot.slane %v652, 1
      %v655 = vor.u32 %v650, %v654
      %v657 = vshll.u32 %v617, 16
      %v659 = vrot.slane %v657, 1
      %v660 = vsel %vm648, %v655, %v659
      %v662 = vshrl.u32 %v618, 16
      %v664 = vshll.u32 %v618, 16
      %v666 = vrot.slane %v664, 1
      %v667 = vor.u32 %v662, %v666
      %v669 = vshll.u32 %v619, 16
      %v671 = vrot.slane %v669, 1
      %v672 = vsel %vm648, %v667, %v671
      %v674 = vshrl.u32 %v620, 16
      %v676 = vshll.u32 %v620, 16
      %v678 = vrot.slane %v676, 1
      %v679 = vor.u32 %v674, %v678
      %v681 = vshll.u32 %v621, 16
      %v683 = vrot.slane %v681, 1
      %v684 = vsel %vm648, %v679, %v683
      %v686 = vshrl.u32 %v622, 16
      %v688 = vshll.u32 %v622, 16
      %v690 = vrot.slane %v688, 1
      %v691 = vor.u32 %v686, %v690
      %v693 = vshll.u32 %v623, 16
      %v695 = vrot.slane %v693, 1
      %v696 = vsel %vm648, %v691, %v695
      %v698 = vshrl.u32 %v624, 16
      %v700 = vshll.u32 %v624, 16
      %v702 = vrot.slane %v700, 1
      %v703 = vor.u32 %v698, %v702
      %v705 = vshll.u32 %v625, 16
      %v707 = vrot.slane %v705, 1
      %v708 = vsel %vm648, %v703, %v707
      %v710 = vshrl.u32 %v626, 16
      %v712 = vshll.u32 %v626, 16
      %v714 = vrot.slane %v712, 1
      %v715 = vor.u32 %v710, %v714
      %v717 = vshll.u32 %v627, 16
      %v719 = vrot.slane %v717, 1
      %v720 = vsel %vm648, %v715, %v719
      %v722 = vshrl.u32 %v628, 16
      %v724 = vshll.u32 %v628, 16
      %v726 = vrot.slane %v724, 1
      %v727 = vor.u32 %v722, %v726
      %v729 = vshll.u32 %v629, 16
      %v731 = vrot.slane %v729, 1
      %v732 = vsel %vm648, %v727, %v731
      %v734 = vshrl.u32 %v630, 16
      %v736 = vshll.u32 %v630, 16
      %v738 = vrot.slane %v736, 1
      %v739 = vor.u32 %v734, %v738
      %v741 = vshll.u32 %v631, 16
      %v743 = vrot.slane %v741, 1
      %v744 = vsel %vm648, %v739, %v743
      %v746 = vshrl.u32 %v632, 16
      %v748 = vshll.u32 %v632, 16
      %v750 = vrot.slane %v748, 1
      %v751 = vor.u32 %v746, %v750
      %v753 = vshll.u32 %v633, 16
      %v755 = vrot.slane %v753, 1
      %v756 = vsel %vm648, %v751, %v755
      %v758 = vshrl.u32 %v634, 16
      %v760 = vshll.u32 %v634, 16
      %v762 = vrot.slane %v760, 1
      %v763 = vor.u32 %v758, %v762
      %v765 = vshll.u32 %v635, 16
      %v767 = vrot.slane %v765, 1
      %v768 = vsel %vm648, %v763, %v767
      %v770 = vshrl.u32 %v636, 16
      %v772 = vshll.u32 %v636, 16
      %v774 = vrot.slane %v772, 1
      %v775 = vor.u32 %v770, %v774
      %v777 = vshll.u32 %v637, 16
      %v779 = vrot.slane %v777, 1
      %v780 = vsel %vm648, %v775, %v779
      %v782 = vshrl.u32 %v638, 16
      %v784 = vshll.u32 %v638, 16
      %v786 = vrot.slane %v784, 1
      %v787 = vor.u32 %v782, %v786
      %v789 = vshll.u32 %v639, 16
      %v791 = vrot.slane %v789, 1
      %v792 = vsel %vm648, %v787, %v791
      %v794 = vshrl.u32 %v640, 16
      %v796 = vshll.u32 %v640, 16
      %v798 = vrot.slane %v796, 1
      %v799 = vor.u32 %v794, %v798
      %v801 = vshll.u32 %v641, 16
      %v803 = vrot.slane %v801, 1
      %v804 = vsel %vm648, %v799, %v803
      %v806 = vshrl.u32 %v642, 16
      %v808 = vshll.u32 %v642, 16
      %v810 = vrot.slane %v808, 1
      %v811 = vor.u32 %v806, %v810
      %v813 = vshll.u32 %v643, 16
      %v815 = vrot.slane %v813, 1
      %v816 = vsel %vm648, %v811, %v815
      %v818 = vshrl.u32 %v644, 16
      %v820 = vshll.u32 %v644, 16
      %v822 = vrot.slane %v820, 1
      %v823 = vor.u32 %v818, %v822
      %v825 = vshll.u32 %v645, 16
      %v827 = vrot.slane %v825, 1
      %v828 = vsel %vm648, %v823, %v827
      %v830 = vshrl.u32 %v646, 16
      %v832 = vshll.u32 %v646, 16
      %v834 = vrot.slane %v832, 1
      %v835 = vor.u32 %v830, %v834
      %v837 = vshll.u32 %v647, 16
      %v839 = vrot.slane %v837, 1
      %v840 = vsel %vm648, %v835, %v839
      %841 = vrot.lane.b32.xlu0 %v660, 36
      %v842 = vpop.permute.xlu0 %841
      %843 = vrot.lane.b32.xlu0 %v672, 36
      %v844 = vpop.permute.xlu0 %843
      %845 = vrot.lane.b32.xlu0 %v684, 36
      %v846 = vpop.permute.xlu0 %845
      %847 = vrot.lane.b32.xlu0 %v696, 36
      %v848 = vpop.permute.xlu0 %847
      %849 = vrot.lane.b32.xlu0 %v708, 36
      %v850 = vpop.permute.xlu0 %849
      %851 = vrot.lane.b32.xlu0 %v720, 36
      %v852 = vpop.permute.xlu0 %851
      %853 = vrot.lane.b32.xlu0 %v732, 36
      %v854 = vpop.permute.xlu0 %853
      %855 = vrot.lane.b32.xlu0 %v744, 36
      %v856 = vpop.permute.xlu0 %855
      %857 = vrot.lane.b32.xlu0 %v756, 36
      %v858 = vpop.permute.xlu0 %857
      %859 = vrot.lane.b32.xlu0 %v768, 36
      %v860 = vpop.permute.xlu0 %859
      %861 = vrot.lane.b32.xlu0 %v780, 36
      %v862 = vpop.permute.xlu0 %861
      %863 = vrot.lane.b32.xlu0 %v792, 36
      %v864 = vpop.permute.xlu0 %863
      %865 = vrot.lane.b32.xlu0 %v804, 36
      %v866 = vpop.permute.xlu0 %865
      %867 = vrot.lane.b32.xlu0 %v816, 36
      %v868 = vpop.permute.xlu0 %867
      %869 = vrot.lane.b32.xlu0 %v828, 36
      %v870 = vpop.permute.xlu0 %869
      %871 = vrot.lane.b32.xlu0 %v840, 36
      %v872 = vpop.permute.xlu0 %871
      %vm889 = vcmask 589088
      %890 = vst.msk [vmem:[#allocation2] sm:$0xff] %vm889, %v842
      %891 = vst.msk [vmem:[#allocation2 + $0x18] sm:$0xff] %vm889, %v844
      %892 = vst.msk [vmem:[#allocation2 + $0x30] sm:$0xff] %vm889, %v846
      %893 = vst.msk [vmem:[#allocation2 + $0x48] sm:$0xff] %vm889, %v848
      %894 = vst.msk [vmem:[#allocation2 + $0x60] sm:$0xff] %vm889, %v850
      %895 = vst.msk [vmem:[#allocation2 + $0x78] sm:$0xff] %vm889, %v852
      %896 = vst.msk [vmem:[#allocation2 + $0x90] sm:$0xff] %vm889, %v854
      %897 = vst.msk [vmem:[#allocation2 + $0xa8] sm:$0xff] %vm889, %v856
      %898 = vst.msk [vmem:[#allocation2 + $0xc0] sm:$0xff] %vm889, %v858
      %899 = vst.msk [vmem:[#allocation2 + $0xd8] sm:$0xff] %vm889, %v860
      %900 = vst.msk [vmem:[#allocation2 + $0xf0] sm:$0xff] %vm889, %v862
      %901 = vst.msk [vmem:[#allocation2 + $0x108] sm:$0xff] %vm889, %v864
      %902 = vst.msk [vmem:[#allocation2 + $0x120] sm:$0xff] %vm889, %v866
      %903 = vst.msk [vmem:[#allocation2 + $0x138] sm:$0xff] %vm889, %v868
      %904 = vst.msk [vmem:[#allocation2 + $0x150] sm:$0xff] %vm889, %v870
      %905 = vst.msk [vmem:[#allocation2 + $0x168] sm:$0xff] %vm889, %v872
      %v906 = vld [vmem:[%s293] sm:$0xe]
      %v907 = vld [vmem:[%s293 + $0x4] sm:$0xf]
      %v908 = vld [vmem:[%s293 + $0x8] sm:$0x1]
      %v909 = vld [vmem:[%s293 + $0xc] sm:$0xe]
      %v910 = vld [vmem:[%s293 + $0x10] sm:$0xf]
      %v911 = vld [vmem:[%s293 + $0x14] sm:$0x1]
      %v912 = vld [vmem:[%s293 + $0x18] sm:$0xe]
      %v913 = vld [vmem:[%s293 + $0x1c] sm:$0xf]
      %v914 = vld [vmem:[%s293 + $0x20] sm:$0x1]
      %v915 = vld [vmem:[%s293 + $0x24] sm:$0xe]
      %v916 = vld [vmem:[%s293 + $0x28] sm:$0xf]
      %v917 = vld [vmem:[%s293 + $0x2c] sm:$0x1]
      %v918 = vld [vmem:[%s293 + $0x30] sm:$0xe]
      %v919 = vld [vmem:[%s293 + $0x34] sm:$0xf]
      %v920 = vld [vmem:[%s293 + $0x38] sm:$0x1]
      %v921 = vld [vmem:[%s293 + $0x3c] sm:$0xe]
      %v922 = vld [vmem:[%s293 + $0x40] sm:$0xf]
      %v923 = vld [vmem:[%s293 + $0x44] sm:$0x1]
      %v924 = vld [vmem:[%s293 + $0x48] sm:$0xe]
      %v925 = vld [vmem:[%s293 + $0x4c] sm:$0xf]
      %v926 = vld [vmem:[%s293 + $0x50] sm:$0x1]
      %v927 = vld [vmem:[%s293 + $0x54] sm:$0xe]
      %v928 = vld [vmem:[%s293 + $0x58] sm:$0xf]
      %v929 = vld [vmem:[%s293 + $0x5c] sm:$0x1]
      %v930 = vld [vmem:[%s293 + $0x60] sm:$0xe]
      %v931 = vld [vmem:[%s293 + $0x64] sm:$0xf]
      %v932 = vld [vmem:[%s293 + $0x68] sm:$0x1]
      %v933 = vld [vmem:[%s293 + $0x6c] sm:$0xe]
      %v934 = vld [vmem:[%s293 + $0x70] sm:$0xf]
      %v935 = vld [vmem:[%s293 + $0x74] sm:$0x1]
      %v936 = vld [vmem:[%s293 + $0x78] sm:$0xe]
      %v937 = vld [vmem:[%s293 + $0x7c] sm:$0xf]
      %v938 = vld [vmem:[%s293 + $0x80] sm:$0x1]
      %v939 = vld [vmem:[%s293 + $0x84] sm:$0xe]
      %v940 = vld [vmem:[%s293 + $0x88] sm:$0xf]
      %v941 = vld [vmem:[%s293 + $0x8c] sm:$0x1]
      %v942 = vld [vmem:[%s293 + $0x90] sm:$0xe]
      %v943 = vld [vmem:[%s293 + $0x94] sm:$0xf]
      %v944 = vld [vmem:[%s293 + $0x98] sm:$0x1]
      %v945 = vld [vmem:[%s293 + $0x9c] sm:$0xe]
      %v946 = vld [vmem:[%s293 + $0xa0] sm:$0xf]
      %v947 = vld [vmem:[%s293 + $0xa4] sm:$0x1]
      %v948 = vld [vmem:[%s293 + $0xa8] sm:$0xe]
      %v949 = vld [vmem:[%s293 + $0xac] sm:$0xf]
      %v950 = vld [vmem:[%s293 + $0xb0] sm:$0x1]
      %v951 = vld [vmem:[%s293 + $0xb4] sm:$0xe]
      %v952 = vld [vmem:[%s293 + $0xb8] sm:$0xf]
      %v953 = vld [vmem:[%s293 + $0xbc] sm:$0x1]
      %v1002 = vunpack.c.l.b16 %v906
      %v1003 = vunpack.c.l.b16 %v907
      %v1004 = vunpack.c.l.b16 %v908
      %v1005 = vunpack.c.l.b16 %v909
      %v1006 = vunpack.c.l.b16 %v910
      %v1007 = vunpack.c.l.b16 %v911
      %v1008 = vunpack.c.l.b16 %v912
      %v1009 = vunpack.c.l.b16 %v913
      %v1010 = vunpack.c.l.b16 %v914
      %v1011 = vunpack.c.l.b16 %v915
      %v1012 = vunpack.c.l.b16 %v916
      %v1013 = vunpack.c.l.b16 %v917
      %v1014 = vunpack.c.l.b16 %v918
      %v1015 = vunpack.c.l.b16 %v919
      %v1016 = vunpack.c.l.b16 %v920
      %v1017 = vunpack.c.l.b16 %v921
      %v1018 = vunpack.c.l.b16 %v922
      %v1019 = vunpack.c.l.b16 %v923
      %v1020 = vunpack.c.l.b16 %v924
      %v1021 = vunpack.c.l.b16 %v925
      %v1022 = vunpack.c.l.b16 %v926
      %v1023 = vunpack.c.l.b16 %v927
      %v1024 = vunpack.c.l.b16 %v928
      %v1025 = vunpack.c.l.b16 %v929
      %v1026 = vunpack.c.l.b16 %v930
      %v1027 = vunpack.c.l.b16 %v931
      %v1028 = vunpack.c.l.b16 %v932
      %v1029 = vunpack.c.l.b16 %v933
      %v1030 = vunpack.c.l.b16 %v934
      %v1031 = vunpack.c.l.b16 %v935
      %v1032 = vunpack.c.l.b16 %v936
      %v1033 = vunpack.c.l.b16 %v937
      %v1034 = vunpack.c.l.b16 %v938
      %v1035 = vunpack.c.l.b16 %v939
      %v1036 = vunpack.c.l.b16 %v940
      %v1037 = vunpack.c.l.b16 %v941
      %v1038 = vunpack.c.l.b16 %v942
      %v1039 = vunpack.c.l.b16 %v943
      %v1040 = vunpack.c.l.b16 %v944
      %v1041 = vunpack.c.l.b16 %v945
      %v1042 = vunpack.c.l.b16 %v946
      %v1043 = vunpack.c.l.b16 %v947
      %v1044 = vunpack.c.l.b16 %v948
      %v1045 = vunpack.c.l.b16 %v949
      %v1046 = vunpack.c.l.b16 %v950
      %v1047 = vunpack.c.l.b16 %v951
      %v1048 = vunpack.c.l.b16 %v952
      %v1049 = vunpack.c.l.b16 %v953
      %v1050 = vpack.c.b16 %v1003, %v1002
      %v1051 = vpack.c.b16 %v1004, %v1004
      %v1052 = vpack.c.b16 %v1006, %v1005
      %v1053 = vpack.c.b16 %v1007, %v1007
      %v1054 = vpack.c.b16 %v1009, %v1008
      %v1055 = vpack.c.b16 %v1010, %v1010
      %v1056 = vpack.c.b16 %v1012, %v1011
      %v1057 = vpack.c.b16 %v1013, %v1013
      %v1058 = vpack.c.b16 %v1015, %v1014
      %v1059 = vpack.c.b16 %v1016, %v1016
      %v1060 = vpack.c.b16 %v1018, %v1017
      %v1061 = vpack.c.b16 %v1019, %v1019
      %v1062 = vpack.c.b16 %v1021, %v1020
      %v1063 = vpack.c.b16 %v1022, %v1022
      %v1064 = vpack.c.b16 %v1024, %v1023
      %v1065 = vpack.c.b16 %v1025, %v1025
      %v1066 = vpack.c.b16 %v1027, %v1026
      %v1067 = vpack.c.b16 %v1028, %v1028
      %v1068 = vpack.c.b16 %v1030, %v1029
      %v1069 = vpack.c.b16 %v1031, %v1031
      %v1070 = vpack.c.b16 %v1033, %v1032
      %v1071 = vpack.c.b16 %v1034, %v1034
      %v1072 = vpack.c.b16 %v1036, %v1035
      %v1073 = vpack.c.b16 %v1037, %v1037
      %v1074 = vpack.c.b16 %v1039, %v1038
      %v1075 = vpack.c.b16 %v1040, %v1040
      %v1076 = vpack.c.b16 %v1042, %v1041
      %v1077 = vpack.c.b16 %v1043, %v1043
      %v1078 = vpack.c.b16 %v1045, %v1044
      %v1079 = vpack.c.b16 %v1046, %v1046
      %v1080 = vpack.c.b16 %v1048, %v1047
      %v1081 = vpack.c.b16 %v1049, %v1049
      %vm1082 = vcmask 1046528
      %v1083 = vrot.slane %v1050, 1
      %v1084 = vrot.slane %v1051, 1
      %v1085 = vsel %vm1082, %v1083, %v1084
      %v1086 = vrot.slane %v1052, 1
      %v1087 = vrot.slane %v1053, 1
      %v1088 = vsel %vm1082, %v1086, %v1087
      %v1089 = vrot.slane %v1054, 1
      %v1090 = vrot.slane %v1055, 1
      %v1091 = vsel %vm1082, %v1089, %v1090
      %v1092 = vrot.slane %v1056, 1
      %v1093 = vrot.slane %v1057, 1
      %v1094 = vsel %vm1082, %v1092, %v1093
      %v1095 = vrot.slane %v1058, 1
      %v1096 = vrot.slane %v1059, 1
      %v1097 = vsel %vm1082, %v1095, %v1096
      %v1098 = vrot.slane %v1060, 1
      %v1099 = vrot.slane %v1061, 1
      %v1100 = vsel %vm1082, %v1098, %v1099
      %v1101 = vrot.slane %v1062, 1
      %v1102 = vrot.slane %v1063, 1
      %v1103 = vsel %vm1082, %v1101, %v1102
      %v1104 = vrot.slane %v1064, 1
      %v1105 = vrot.slane %v1065, 1
      %v1106 = vsel %vm1082, %v1104, %v1105
      %v1107 = vrot.slane %v1066, 1
      %v1108 = vrot.slane %v1067, 1
      %v1109 = vsel %vm1082, %v1107, %v1108
      %v1110 = vrot.slane %v1068, 1
      %v1111 = vrot.slane %v1069, 1
      %v1112 = vsel %vm1082, %v1110, %v1111
      %v1113 = vrot.slane %v1070, 1
      %v1114 = vrot.slane %v1071, 1
      %v1115 = vsel %vm1082, %v1113, %v1114
      %v1116 = vrot.slane %v1072, 1
      %v1117 = vrot.slane %v1073, 1
      %v1118 = vsel %vm1082, %v1116, %v1117
      %v1119 = vrot.slane %v1074, 1
      %v1120 = vrot.slane %v1075, 1
      %v1121 = vsel %vm1082, %v1119, %v1120
      %v1122 = vrot.slane %v1076, 1
      %v1123 = vrot.slane %v1077, 1
      %v1124 = vsel %vm1082, %v1122, %v1123
      %v1125 = vrot.slane %v1078, 1
      %v1126 = vrot.slane %v1079, 1
      %v1127 = vsel %vm1082, %v1125, %v1126
      %v1128 = vrot.slane %v1080, 1
      %v1129 = vrot.slane %v1081, 1
      %v1130 = vsel %vm1082, %v1128, %v1129
      %1131 = vrot.lane.b32.xlu0 %v1085, 72
      %v1132 = vpop.permute.xlu0 %1131
      %1133 = vrot.lane.b32.xlu0 %v1088, 72
      %v1134 = vpop.permute.xlu0 %1133
      %1135 = vrot.lane.b32.xlu0 %v1091, 72
      %v1136 = vpop.permute.xlu0 %1135
      %1137 = vrot.lane.b32.xlu0 %v1094, 72
      %v1138 = vpop.permute.xlu0 %1137
      %1139 = vrot.lane.b32.xlu0 %v1097, 72
      %v1140 = vpop.permute.xlu0 %1139
      %1141 = vrot.lane.b32.xlu0 %v1100, 72
      %v1142 = vpop.permute.xlu0 %1141
      %1143 = vrot.lane.b32.xlu0 %v1103, 72
      %v1144 = vpop.permute.xlu0 %1143
      %1145 = vrot.lane.b32.xlu0 %v1106, 72
      %v1146 = vpop.permute.xlu0 %1145
      %1147 = vrot.lane.b32.xlu0 %v1109, 72
      %v1148 = vpop.permute.xlu0 %1147
      %1149 = vrot.lane.b32.xlu0 %v1112, 72
      %v1150 = vpop.permute.xlu0 %1149
      %1151 = vrot.lane.b32.xlu0 %v1115, 72
      %v1152 = vpop.permute.xlu0 %1151
      %1153 = vrot.lane.b32.xlu0 %v1118, 72
      %v1154 = vpop.permute.xlu0 %1153
      %1155 = vrot.lane.b32.xlu0 %v1121, 72
      %v1156 = vpop.permute.xlu0 %1155
      %1157 = vrot.lane.b32.xlu0 %v1124, 72
      %v1158 = vpop.permute.xlu0 %1157
      %1159 = vrot.lane.b32.xlu0 %v1127, 72
      %v1160 = vpop.permute.xlu0 %1159
      %1161 = vrot.lane.b32.xlu0 %v1130, 72
      %v1162 = vpop.permute.xlu0 %1161
      %vm1179 = vcmask 884288
      %1180 = vst.msk [vmem:[#allocation2] sm:$0xff] %vm1179, %v1132
      %1181 = vst.msk [vmem:[#allocation2 + $0x18] sm:$0xff] %vm1179, %v1134
      %1182 = vst.msk [vmem:[#allocation2 + $0x30] sm:$0xff] %vm1179, %v1136
      %1183 = vst.msk [vmem:[#allocation2 + $0x48] sm:$0xff] %vm1179, %v1138
      %1184 = vst.msk [vmem:[#allocation2 + $0x60] sm:$0xff] %vm1179, %v1140
      %1185 = vst.msk [vmem:[#allocation2 + $0x78] sm:$0xff] %vm1179, %v1142
      %1186 = vst.msk [vmem:[#allocation2 + $0x90] sm:$0xff] %vm1179, %v1144
      %1187 = vst.msk [vmem:[#allocation2 + $0xa8] sm:$0xff] %vm1179, %v1146
      %1188 = vst.msk [vmem:[#allocation2 + $0xc0] sm:$0xff] %vm1179, %v1148
      %1189 = vst.msk [vmem:[#allocation2 + $0xd8] sm:$0xff] %vm1179, %v1150
      %1190 = vst.msk [vmem:[#allocation2 + $0xf0] sm:$0xff] %vm1179, %v1152
      %1191 = vst.msk [vmem:[#allocation2 + $0x108] sm:$0xff] %vm1179, %v1154
      %1192 = vst.msk [vmem:[#allocation2 + $0x120] sm:$0xff] %vm1179, %v1156
      %1193 = vst.msk [vmem:[#allocation2 + $0x138] sm:$0xff] %vm1179, %v1158
      %1194 = vst.msk [vmem:[#allocation2 + $0x150] sm:$0xff] %vm1179, %v1160
      %1195 = vst.msk [vmem:[#allocation2 + $0x168] sm:$0xff] %vm1179, %v1162
      %s1196 = scalar_lea.vmem %s293, 12
      %v1197 = vld [vmem:[%s1196] sm:$0xf]
      %v1198 = vld [vmem:[%s1196 + $0x4] sm:$0xf]
      %v1199 = vld [vmem:[%s1196 + $0xc] sm:$0xf]
      %v1200 = vld [vmem:[%s1196 + $0x10] sm:$0xf]
      %v1201 = vld [vmem:[%s1196 + $0x18] sm:$0xf]
      %v1202 = vld [vmem:[%s1196 + $0x1c] sm:$0xf]
      %v1203 = vld [vmem:[%s1196 + $0x24] sm:$0xf]
      %v1204 = vld [vmem:[%s1196 + $0x28] sm:$0xf]
      %v1205 = vld [vmem:[%s1196 + $0x30] sm:$0xf]
      %v1206 = vld [vmem:[%s1196 + $0x34] sm:$0xf]
      %v1207 = vld [vmem:[%s1196 + $0x3c] sm:$0xf]
      %v1208 = vld [vmem:[%s1196 + $0x40] sm:$0xf]
      %v1209 = vld [vmem:[%s1196 + $0x48] sm:$0xf]
      %v1210 = vld [vmem:[%s1196 + $0x4c] sm:$0xf]
      %v1211 = vld [vmem:[%s1196 + $0x54] sm:$0xf]
      %v1212 = vld [vmem:[%s1196 + $0x58] sm:$0xf]
      %v1213 = vld [vmem:[%s1196 + $0x60] sm:$0xf]
      %v1214 = vld [vmem:[%s1196 + $0x64] sm:$0xf]
      %v1215 = vld [vmem:[%s1196 + $0x6c] sm:$0xf]
      %v1216 = vld [vmem:[%s1196 + $0x70] sm:$0xf]
      %v1217 = vld [vmem:[%s1196 + $0x78] sm:$0xf]
      %v1218 = vld [vmem:[%s1196 + $0x7c] sm:$0xf]
      %v1219 = vld [vmem:[%s1196 + $0x84] sm:$0xf]
      %v1220 = vld [vmem:[%s1196 + $0x88] sm:$0xf]
      %v1221 = vld [vmem:[%s1196 + $0x90] sm:$0xf]
      %v1222 = vld [vmem:[%s1196 + $0x94] sm:$0xf]
      %v1223 = vld [vmem:[%s1196 + $0x9c] sm:$0xf]
      %v1224 = vld [vmem:[%s1196 + $0xa0] sm:$0xf]
      %v1225 = vld [vmem:[%s1196 + $0xa8] sm:$0xf]
      %v1226 = vld [vmem:[%s1196 + $0xac] sm:$0xf]
      %v1227 = vld [vmem:[%s1196 + $0xb4] sm:$0xf]
      %v1228 = vld [vmem:[%s1196 + $0xb8] sm:$0xf]
      %v1261 = vunpack.c.l.b16 %v1197
      %v1262 = vunpack.c.l.b16 %v1198
      %v1263 = vunpack.c.l.b16 %v1199
      %v1264 = vunpack.c.l.b16 %v1200
      %v1265 = vunpack.c.l.b16 %v1201
      %v1266 = vunpack.c.l.b16 %v1202
      %v1267 = vunpack.c.l.b16 %v1203
      %v1268 = vunpack.c.l.b16 %v1204
      %v1269 = vunpack.c.l.b16 %v1205
      %v1270 = vunpack.c.l.b16 %v1206
      %v1271 = vunpack.c.l.b16 %v1207
      %v1272 = vunpack.c.l.b16 %v1208
      %v1273 = vunpack.c.l.b16 %v1209
      %v1274 = vunpack.c.l.b16 %v1210
      %v1275 = vunpack.c.l.b16 %v1211
      %v1276 = vunpack.c.l.b16 %v1212
      %v1277 = vunpack.c.l.b16 %v1213
      %v1278 = vunpack.c.l.b16 %v1214
      %v1279 = vunpack.c.l.b16 %v1215
      %v1280 = vunpack.c.l.b16 %v1216
      %v1281 = vunpack.c.l.b16 %v1217
      %v1282 = vunpack.c.l.b16 %v1218
      %v1283 = vunpack.c.l.b16 %v1219
      %v1284 = vunpack.c.l.b16 %v1220
      %v1285 = vunpack.c.l.b16 %v1221
      %v1286 = vunpack.c.l.b16 %v1222
      %v1287 = vunpack.c.l.b16 %v1223
      %v1288 = vunpack.c.l.b16 %v1224
      %v1289 = vunpack.c.l.b16 %v1225
      %v1290 = vunpack.c.l.b16 %v1226
      %v1291 = vunpack.c.l.b16 %v1227
      %v1292 = vunpack.c.l.b16 %v1228
      %v1293 = vpack.c.b16 %v1262, %v1261
      %v1294 = vpack.c.b16 %v1264, %v1263
      %v1295 = vpack.c.b16 %v1266, %v1265
      %v1296 = vpack.c.b16 %v1268, %v1267
      %v1297 = vpack.c.b16 %v1270, %v1269
      %v1298 = vpack.c.b16 %v1272, %v1271
      %v1299 = vpack.c.b16 %v1274, %v1273
      %v1300 = vpack.c.b16 %v1276, %v1275
      %v1301 = vpack.c.b16 %v1278, %v1277
      %v1302 = vpack.c.b16 %v1280, %v1279
      %v1303 = vpack.c.b16 %v1282, %v1281
      %v1304 = vpack.c.b16 %v1284, %v1283
      %v1305 = vpack.c.b16 %v1286, %v1285
      %v1306 = vpack.c.b16 %v1288, %v1287
      %v1307 = vpack.c.b16 %v1290, %v1289
      %v1308 = vpack.c.b16 %v1292, %v1291
      %1309 = vrot.lane.b32.xlu0 %v1293, 108
      %v1310 = vpop.permute.xlu0 %1309
      %1311 = vrot.lane.b32.xlu0 %v1294, 108
      %v1312 = vpop.permute.xlu0 %1311
      %1313 = vrot.lane.b32.xlu0 %v1295, 108
      %v1314 = vpop.permute.xlu0 %1313
      %1315 = vrot.lane.b32.xlu0 %v1296, 108
      %v1316 = vpop.permute.xlu0 %1315
      %1317 = vrot.lane.b32.xlu0 %v1297, 108
      %v1318 = vpop.permute.xlu0 %1317
      %1319 = vrot.lane.b32.xlu0 %v1298, 108
      %v1320 = vpop.permute.xlu0 %1319
      %1321 = vrot.lane.b32.xlu0 %v1299, 108
      %v1322 = vpop.permute.xlu0 %1321
      %1323 = vrot.lane.b32.xlu0 %v1300, 108
      %v1324 = vpop.permute.xlu0 %1323
      %1325 = vrot.lane.b32.xlu0 %v1301, 108
      %v1326 = vpop.permute.xlu0 %1325
      %1327 = vrot.lane.b32.xlu0 %v1302, 108
      %v1328 = vpop.permute.xlu0 %1327
      %1329 = vrot.lane.b32.xlu0 %v1303, 108
      %v1330 = vpop.permute.xlu0 %1329
      %1331 = vrot.lane.b32.xlu0 %v1304, 108
      %v1332 = vpop.permute.xlu0 %1331
      %1333 = vrot.lane.b32.xlu0 %v1305, 108
      %v1334 = vpop.permute.xlu0 %1333
      %1335 = vrot.lane.b32.xlu0 %v1306, 108
      %v1336 = vpop.permute.xlu0 %1335
      %1337 = vrot.lane.b32.xlu0 %v1307, 108
      %v1338 = vpop.permute.xlu0 %1337
      %1339 = vrot.lane.b32.xlu0 %v1308, 108
      %v1340 = vpop.permute.xlu0 %1339
      %vm1357 = vcmask 1048416
      %1358 = vst.msk [vmem:[#allocation2] sm:$0xff] %vm1357, %v1310
      %vm1359 = vcmask 130048
      %1360 = vst.msk [vmem:[#allocation2 + $0x8] sm:$0xff] %vm1359, %v1310
      %1361 = vst.msk [vmem:[#allocation2 + $0x18] sm:$0xff] %vm1357, %v1312
      %1362 = vst.msk [vmem:[#allocation2 + $0x20] sm:$0xff] %vm1359, %v1312
      %1363 = vst.msk [vmem:[#allocation2 + $0x30] sm:$0xff] %vm1357, %v1314
      %1364 = vst.msk [vmem:[#allocation2 + $0x38] sm:$0xff] %vm1359, %v1314
      %1365 = vst.msk [vmem:[#allocation2 + $0x48] sm:$0xff] %vm1357, %v1316
      %1366 = vst.msk [vmem:[#allocation2 + $0x50] sm:$0xff] %vm1359, %v1316
      %1367 = vst.msk [vmem:[#allocation2 + $0x60] sm:$0xff] %vm1357, %v1318
      %1368 = vst.msk [vmem:[#allocation2 + $0x68] sm:$0xff] %vm1359, %v1318
      %1369 = vst.msk [vmem:[#allocation2 + $0x78] sm:$0xff] %vm1357, %v1320
      %1370 = vst.msk [vmem:[#allocation2 + $0x80] sm:$0xff] %vm1359, %v1320
      %1371 = vst.msk [vmem:[#allocation2 + $0x90] sm:$0xff] %vm1357, %v1322
      %1372 = vst.msk [vmem:[#allocation2 + $0x98] sm:$0xff] %vm1359, %v1322
      %1373 = vst.msk [vmem:[#allocation2 + $0xa8] sm:$0xff] %vm1357, %v1324
      %1374 = vst.msk [vmem:[#allocation2 + $0xb0] sm:$0xff] %vm1359, %v1324
      %1375 = vst.msk [vmem:[#allocation2 + $0xc0] sm:$0xff] %vm1357, %v1326
      %1376 = vst.msk [vmem:[#allocation2 + $0xc8] sm:$0xff] %vm1359, %v1326
      %1377 = vst.msk [vmem:[#allocation2 + $0xd8] sm:$0xff] %vm1357, %v1328
      %1378 = vst.msk [vmem:[#allocation2 + $0xe0] sm:$0xff] %vm1359, %v1328
      %1379 = vst.msk [vmem:[#allocation2 + $0xf0] sm:$0xff] %vm1357, %v1330
      %1380 = vst.msk [vmem:[#allocation2 + $0xf8] sm:$0xff] %vm1359, %v1330
      %1381 = vst.msk [vmem:[#allocation2 + $0x108] sm:$0xff] %vm1357, %v1332
      %1382 = vst.msk [vmem:[#allocation2 + $0x110] sm:$0xff] %vm1359, %v1332
      %1383 = vst.msk [vmem:[#allocation2 + $0x120] sm:$0xff] %vm1357, %v1334
      %1384 = vst.msk [vmem:[#allocation2 + $0x128] sm:$0xff] %vm1359, %v1334
      %1385 = vst.msk [vmem:[#allocation2 + $0x138] sm:$0xff] %vm1357, %v1336
      %1386 = vst.msk [vmem:[#allocation2 + $0x140] sm:$0xff] %vm1359, %v1336
      %1387 = vst.msk [vmem:[#allocation2 + $0x150] sm:$0xff] %vm1357, %v1338
      %1388 = vst.msk [vmem:[#allocation2 + $0x158] sm:$0xff] %vm1359, %v1338
      %1389 = vst.msk [vmem:[#allocation2 + $0x168] sm:$0xff] %vm1357, %v1340
      %1390 = vst.msk [vmem:[#allocation2 + $0x170] sm:$0xff] %vm1359, %v1340
      %v1391 = vld [vmem:[%s1196] sm:$0xf]
      %v1392 = vld [vmem:[%s1196 + $0x4] sm:$0xf]
      %v1393 = vld [vmem:[%s1196 + $0x8] sm:$0x1]
      %v1394 = vld [vmem:[%s1196 + $0xc] sm:$0xf]
      %v1395 = vld [vmem:[%s1196 + $0x10] sm:$0xf]
      %v1396 = vld [vmem:[%s1196 + $0x14] sm:$0x1]
      %v1397 = vld [vmem:[%s1196 + $0x18] sm:$0xf]
      %v1398 = vld [vmem:[%s1196 + $0x1c] sm:$0xf]
      %v1399 = vld [vmem:[%s1196 + $0x20] sm:$0x1]
      %v1400 = vld [vmem:[%s1196 + $0x24] sm:$0xf]
      %v1401 = vld [vmem:[%s1196 + $0x28] sm:$0xf]
      %v1402 = vld [vmem:[%s1196 + $0x2c] sm:$0x1]
      %v1403 = vld [vmem:[%s1196 + $0x30] sm:$0xf]
      %v1404 = vld [vmem:[%s1196 + $0x34] sm:$0xf]
      %v1405 = vld [vmem:[%s1196 + $0x38] sm:$0x1]
      %v1406 = vld [vmem:[%s1196 + $0x3c] sm:$0xf]
      %v1407 = vld [vmem:[%s1196 + $0x40] sm:$0xf]
      %v1408 = vld [vmem:[%s1196 + $0x44] sm:$0x1]
      %v1409 = vld [vmem:[%s1196 + $0x48] sm:$0xf]
      %v1410 = vld [vmem:[%s1196 + $0x4c] sm:$0xf]
      %v1411 = vld [vmem:[%s1196 + $0x50] sm:$0x1]
      %v1412 = vld [vmem:[%s1196 + $0x54] sm:$0xf]
      %v1413 = vld [vmem:[%s1196 + $0x58] sm:$0xf]
      %v1414 = vld [vmem:[%s1196 + $0x5c] sm:$0x1]
      %v1415 = vld [vmem:[%s1196 + $0x60] sm:$0xf]
      %v1416 = vld [vmem:[%s1196 + $0x64] sm:$0xf]
      %v1417 = vld [vmem:[%s1196 + $0x68] sm:$0x1]
      %v1418 = vld [vmem:[%s1196 + $0x6c] sm:$0xf]
      %v1419 = vld [vmem:[%s1196 + $0x70] sm:$0xf]
      %v1420 = vld [vmem:[%s1196 + $0x74] sm:$0x1]
      %v1421 = vld [vmem:[%s1196 + $0x78] sm:$0xf]
      %v1422 = vld [vmem:[%s1196 + $0x7c] sm:$0xf]
      %v1423 = vld [vmem:[%s1196 + $0x80] sm:$0x1]
      %v1424 = vld [vmem:[%s1196 + $0x84] sm:$0xf]
      %v1425 = vld [vmem:[%s1196 + $0x88] sm:$0xf]
      %v1426 = vld [vmem:[%s1196 + $0x8c] sm:$0x1]
      %v1427 = vld [vmem:[%s1196 + $0x90] sm:$0xf]
      %v1428 = vld [vmem:[%s1196 + $0x94] sm:$0xf]
      %v1429 = vld [vmem:[%s1196 + $0x98] sm:$0x1]
      %v1430 = vld [vmem:[%s1196 + $0x9c] sm:$0xf]
      %v1431 = vld [vmem:[%s1196 + $0xa0] sm:$0xf]
      %v1432 = vld [vmem:[%s1196 + $0xa4] sm:$0x1]
      %v1433 = vld [vmem:[%s1196 + $0xa8] sm:$0xf]
      %v1434 = vld [vmem:[%s1196 + $0xac] sm:$0xf]
      %v1435 = vld [vmem:[%s1196 + $0xb0] sm:$0x1]
      %v1436 = vld [vmem:[%s1196 + $0xb4] sm:$0xf]
      %v1437 = vld [vmem:[%s1196 + $0xb8] sm:$0xf]
      %v1438 = vld [vmem:[%s1196 + $0xbc] sm:$0x1]
      %v1487 = vunpack.c.l.b16 %v1391
      %v1488 = vunpack.c.l.b16 %v1392
      %v1489 = vunpack.c.l.b16 %v1393
      %v1490 = vunpack.c.l.b16 %v1394
      %v1491 = vunpack.c.l.b16 %v1395
      %v1492 = vunpack.c.l.b16 %v1396
      %v1493 = vunpack.c.l.b16 %v1397
      %v1494 = vunpack.c.l.b16 %v1398
      %v1495 = vunpack.c.l.b16 %v1399
      %v1496 = vunpack.c.l.b16 %v1400
      %v1497 = vunpack.c.l.b16 %v1401
      %v1498 = vunpack.c.l.b16 %v1402
      %v1499 = vunpack.c.l.b16 %v1403
      %v1500 = vunpack.c.l.b16 %v1404
      %v1501 = vunpack.c.l.b16 %v1405
      %v1502 = vunpack.c.l.b16 %v1406
      %v1503 = vunpack.c.l.b16 %v1407
      %v1504 = vunpack.c.l.b16 %v1408
      %v1505 = vunpack.c.l.b16 %v1409
      %v1506 = vunpack.c.l.b16 %v1410
      %v1507 = vunpack.c.l.b16 %v1411
      %v1508 = vunpack.c.l.b16 %v1412
      %v1509 = vunpack.c.l.b16 %v1413
      %v1510 = vunpack.c.l.b16 %v1414
      %v1511 = vunpack.c.l.b16 %v1415
      %v1512 = vunpack.c.l.b16 %v1416
      %v1513 = vunpack.c.l.b16 %v1417
      %v1514 = vunpack.c.l.b16 %v1418
      %v1515 = vunpack.c.l.b16 %v1419
      %v1516 = vunpack.c.l.b16 %v1420
      %v1517 = vunpack.c.l.b16 %v1421
      %v1518 = vunpack.c.l.b16 %v1422
      %v1519 = vunpack.c.l.b16 %v1423
      %v1520 = vunpack.c.l.b16 %v1424
      %v1521 = vunpack.c.l.b16 %v1425
      %v1522 = vunpack.c.l.b16 %v1426
      %v1523 = vunpack.c.l.b16 %v1427
      %v1524 = vunpack.c.l.b16 %v1428
      %v1525 = vunpack.c.l.b16 %v1429
      %v1526 = vunpack.c.l.b16 %v1430
      %v1527 = vunpack.c.l.b16 %v1431
      %v1528 = vunpack.c.l.b16 %v1432
      %v1529 = vunpack.c.l.b16 %v1433
      %v1530 = vunpack.c.l.b16 %v1434
      %v1531 = vunpack.c.l.b16 %v1435
      %v1532 = vunpack.c.l.b16 %v1436
      %v1533 = vunpack.c.l.b16 %v1437
      %v1534 = vunpack.c.l.b16 %v1438
      %v1535 = vpack.c.b16 %v1488, %v1487
      %v1536 = vpack.c.b16 %v1489, %v1489
      %v1537 = vpack.c.b16 %v1491, %v1490
      %v1538 = vpack.c.b16 %v1492, %v1492
      %v1539 = vpack.c.b16 %v1494, %v1493
      %v1540 = vpack.c.b16 %v1495, %v1495
      %v1541 = vpack.c.b16 %v1497, %v1496
      %v1542 = vpack.c.b16 %v1498, %v1498
      %v1543 = vpack.c.b16 %v1500, %v1499
      %v1544 = vpack.c.b16 %v1501, %v1501
      %v1545 = vpack.c.b16 %v1503, %v1502
      %v1546 = vpack.c.b16 %v1504, %v1504
      %v1547 = vpack.c.b16 %v1506, %v1505
      %v1548 = vpack.c.b16 %v1507, %v1507
      %v1549 = vpack.c.b16 %v1509, %v1508
      %v1550 = vpack.c.b16 %v1510, %v1510
      %v1551 = vpack.c.b16 %v1512, %v1511
      %v1552 = vpack.c.b16 %v1513, %v1513
      %v1553 = vpack.c.b16 %v1515, %v1514
      %v1554 = vpack.c.b16 %v1516, %v1516
      %v1555 = vpack.c.b16 %v1518, %v1517
      %v1556 = vpack.c.b16 %v1519, %v1519
      %v1557 = vpack.c.b16 %v1521, %v1520
      %v1558 = vpack.c.b16 %v1522, %v1522
      %v1559 = vpack.c.b16 %v1524, %v1523
      %v1560 = vpack.c.b16 %v1525, %v1525
      %v1561 = vpack.c.b16 %v1527, %v1526
      %v1562 = vpack.c.b16 %v1528, %v1528
      %v1563 = vpack.c.b16 %v1530, %v1529
      %v1564 = vpack.c.b16 %v1531, %v1531
      %v1565 = vpack.c.b16 %v1533, %v1532
      %v1566 = vpack.c.b16 %v1534, %v1534
      %v1568 = vshrl.u32 %v1535, 16
      %v1570 = vshll.u32 %v1535, 16
      %v1572 = vrot.slane %v1570, 1
      %v1573 = vor.u32 %v1568, %v1572
      %v1575 = vshll.u32 %v1536, 16
      %v1577 = vrot.slane %v1575, 1
      %v1578 = vsel %vm648, %v1573, %v1577
      %v1580 = vshrl.u32 %v1537, 16
      %v1582 = vshll.u32 %v1537, 16
      %v1584 = vrot.slane %v1582, 1
      %v1585 = vor.u32 %v1580, %v1584
      %v1587 = vshll.u32 %v1538, 16
      %v1589 = vrot.slane %v1587, 1
      %v1590 = vsel %vm648, %v1585, %v1589
      %v1592 = vshrl.u32 %v1539, 16
      %v1594 = vshll.u32 %v1539, 16
      %v1596 = vrot.slane %v1594, 1
      %v1597 = vor.u32 %v1592, %v1596
      %v1599 = vshll.u32 %v1540, 16
      %v1601 = vrot.slane %v1599, 1
      %v1602 = vsel %vm648, %v1597, %v1601
      %v1604 = vshrl.u32 %v1541, 16
      %v1606 = vshll.u32 %v1541, 16
      %v1608 = vrot.slane %v1606, 1
      %v1609 = vor.u32 %v1604, %v1608
      %v1611 = vshll.u32 %v1542, 16
      %v1613 = vrot.slane %v1611, 1
      %v1614 = vsel %vm648, %v1609, %v1613
      %v1616 = vshrl.u32 %v1543, 16
      %v1618 = vshll.u32 %v1543, 16
      %v1620 = vrot.slane %v1618, 1
      %v1621 = vor.u32 %v1616, %v1620
      %v1623 = vshll.u32 %v1544, 16
      %v1625 = vrot.slane %v1623, 1
      %v1626 = vsel %vm648, %v1621, %v1625
      %v1628 = vshrl.u32 %v1545, 16
      %v1630 = vshll.u32 %v1545, 16
      %v1632 = vrot.slane %v1630, 1
      %v1633 = vor.u32 %v1628, %v1632
      %v1635 = vshll.u32 %v1546, 16
      %v1637 = vrot.slane %v1635, 1
      %v1638 = vsel %vm648, %v1633, %v1637
      %v1640 = vshrl.u32 %v1547, 16
      %v1642 = vshll.u32 %v1547, 16
      %v1644 = vrot.slane %v1642, 1
      %v1645 = vor.u32 %v1640, %v1644
      %v1647 = vshll.u32 %v1548, 16
      %v1649 = vrot.slane %v1647, 1
      %v1650 = vsel %vm648, %v1645, %v1649
      %v1652 = vshrl.u32 %v1549, 16
      %v1654 = vshll.u32 %v1549, 16
      %v1656 = vrot.slane %v1654, 1
      %v1657 = vor.u32 %v1652, %v1656
      %v1659 = vshll.u32 %v1550, 16
      %v1661 = vrot.slane %v1659, 1
      %v1662 = vsel %vm648, %v1657, %v1661
      %v1664 = vshrl.u32 %v1551, 16
      %v1666 = vshll.u32 %v1551, 16
      %v1668 = vrot.slane %v1666, 1
      %v1669 = vor.u32 %v1664, %v1668
      %v1671 = vshll.u32 %v1552, 16
      %v1673 = vrot.slane %v1671, 1
      %v1674 = vsel %vm648, %v1669, %v1673
      %v1676 = vshrl.u32 %v1553, 16
      %v1678 = vshll.u32 %v1553, 16
      %v1680 = vrot.slane %v1678, 1
      %v1681 = vor.u32 %v1676, %v1680
      %v1683 = vshll.u32 %v1554, 16
      %v1685 = vrot.slane %v1683, 1
      %v1686 = vsel %vm648, %v1681, %v1685
      %v1688 = vshrl.u32 %v1555, 16
      %v1690 = vshll.u32 %v1555, 16
      %v1692 = vrot.slane %v1690, 1
      %v1693 = vor.u32 %v1688, %v1692
      %v1695 = vshll.u32 %v1556, 16
      %v1697 = vrot.slane %v1695, 1
      %v1698 = vsel %vm648, %v1693, %v1697
      %v1700 = vshrl.u32 %v1557, 16
      %v1702 = vshll.u32 %v1557, 16
      %v1704 = vrot.slane %v1702, 1
      %v1705 = vor.u32 %v1700, %v1704
      %v1707 = vshll.u32 %v1558, 16
      %v1709 = vrot.slane %v1707, 1
      %v1710 = vsel %vm648, %v1705, %v1709
      %v1712 = vshrl.u32 %v1559, 16
      %v1714 = vshll.u32 %v1559, 16
      %v1716 = vrot.slane %v1714, 1
      %v1717 = vor.u32 %v1712, %v1716
      %v1719 = vshll.u32 %v1560, 16
      %v1721 = vrot.slane %v1719, 1
      %v1722 = vsel %vm648, %v1717, %v1721
      %v1724 = vshrl.u32 %v1561, 16
      %v1726 = vshll.u32 %v1561, 16
      %v1728 = vrot.slane %v1726, 1
      %v1729 = vor.u32 %v1724, %v1728
      %v1731 = vshll.u32 %v1562, 16
      %v1733 = vrot.slane %v1731, 1
      %v1734 = vsel %vm648, %v1729, %v1733
      %v1736 = vshrl.u32 %v1563, 16
      %v1738 = vshll.u32 %v1563, 16
      %v1740 = vrot.slane %v1738, 1
      %v1741 = vor.u32 %v1736, %v1740
      %v1743 = vshll.u32 %v1564, 16
      %v1745 = vrot.slane %v1743, 1
      %v1746 = vsel %vm648, %v1741, %v1745
      %v1748 = vshrl.u32 %v1565, 16
      %v1750 = vshll.u32 %v1565, 16
      %v1752 = vrot.slane %v1750, 1
      %v1753 = vor.u32 %v1748, %v1752
      %v1755 = vshll.u32 %v1566, 16
      %v1757 = vrot.slane %v1755, 1
      %v1758 = vsel %vm648, %v1753, %v1757
      %1759 = vrot.lane.b32.xlu0 %v1578, 16
      %v1760 = vpop.permute.xlu0 %1759
      %1761 = vrot.lane.b32.xlu0 %v1590, 16
      %v1762 = vpop.permute.xlu0 %1761
      %1763 = vrot.lane.b32.xlu0 %v1602, 16
      %v1764 = vpop.permute.xlu0 %1763
      %1765 = vrot.lane.b32.xlu0 %v1614, 16
      %v1766 = vpop.permute.xlu0 %1765
      %1767 = vrot.lane.b32.xlu0 %v1626, 16
      %v1768 = vpop.permute.xlu0 %1767
      %1769 = vrot.lane.b32.xlu0 %v1638, 16
      %v1770 = vpop.permute.xlu0 %1769
      %1771 = vrot.lane.b32.xlu0 %v1650, 16
      %v1772 = vpop.permute.xlu0 %1771
      %1773 = vrot.lane.b32.xlu0 %v1662, 16
      %v1774 = vpop.permute.xlu0 %1773
      %1775 = vrot.lane.b32.xlu0 %v1674, 16
      %v1776 = vpop.permute.xlu0 %1775
      %1777 = vrot.lane.b32.xlu0 %v1686, 16
      %v1778 = vpop.permute.xlu0 %1777
      %1779 = vrot.lane.b32.xlu0 %v1698, 16
      %v1780 = vpop.permute.xlu0 %1779
      %1781 = vrot.lane.b32.xlu0 %v1710, 16
      %v1782 = vpop.permute.xlu0 %1781
      %1783 = vrot.lane.b32.xlu0 %v1722, 16
      %v1784 = vpop.permute.xlu0 %1783
      %1785 = vrot.lane.b32.xlu0 %v1734, 16
      %v1786 = vpop.permute.xlu0 %1785
      %1787 = vrot.lane.b32.xlu0 %v1746, 16
      %v1788 = vpop.permute.xlu0 %1787
      %1789 = vrot.lane.b32.xlu0 %v1758, 16
      %v1790 = vpop.permute.xlu0 %1789
      %vm1807 = vcmask 425088
      %1808 = vst.msk [vmem:[#allocation2 + $0x8] sm:$0xff] %vm1807, %v1760
      %1809 = vst.msk [vmem:[#allocation2 + $0x20] sm:$0xff] %vm1807, %v1762
      %1810 = vst.msk [vmem:[#allocation2 + $0x38] sm:$0xff] %vm1807, %v1764
      %1811 = vst.msk [vmem:[#allocation2 + $0x50] sm:$0xff] %vm1807, %v1766
      %1812 = vst.msk [vmem:[#allocation2 + $0x68] sm:$0xff] %vm1807, %v1768
      %1813 = vst.msk [vmem:[#allocation2 + $0x80] sm:$0xff] %vm1807, %v1770
      %1814 = vst.msk [vmem:[#allocation2 + $0x98] sm:$0xff] %vm1807, %v1772
      %1815 = vst.msk [vmem:[#allocation2 + $0xb0] sm:$0xff] %vm1807, %v1774
      %1816 = vst.msk [vmem:[#allocation2 + $0xc8] sm:$0xff] %vm1807, %v1776
      %1817 = vst.msk [vmem:[#allocation2 + $0xe0] sm:$0xff] %vm1807, %v1778
      %1818 = vst.msk [vmem:[#allocation2 + $0xf8] sm:$0xff] %vm1807, %v1780
      %1819 = vst.msk [vmem:[#allocation2 + $0x110] sm:$0xff] %vm1807, %v1782
      %1820 = vst.msk [vmem:[#allocation2 + $0x128] sm:$0xff] %vm1807, %v1784
      %1821 = vst.msk [vmem:[#allocation2 + $0x140] sm:$0xff] %vm1807, %v1786
      %1822 = vst.msk [vmem:[#allocation2 + $0x158] sm:$0xff] %vm1807, %v1788
      %1823 = vst.msk [vmem:[#allocation2 + $0x170] sm:$0xff] %vm1807, %v1790
      %v1824 = vld [vmem:[%s1196] sm:$0xe]
      %v1825 = vld [vmem:[%s1196 + $0x4] sm:$0xf]
      %v1826 = vld [vmem:[%s1196 + $0x8] sm:$0x1]
      %v1827 = vld [vmem:[%s1196 + $0xc] sm:$0xe]
      %v1828 = vld [vmem:[%s1196 + $0x10] sm:$0xf]
      %v1829 = vld [vmem:[%s1196 + $0x14] sm:$0x1]
      %v1830 = vld [vmem:[%s1196 + $0x18] sm:$0xe]
      %v1831 = vld [vmem:[%s1196 + $0x1c] sm:$0xf]
      %v1832 = vld [vmem:[%s1196 + $0x20] sm:$0x1]
      %v1833 = vld [vmem:[%s1196 + $0x24] sm:$0xe]
      %v1834 = vld [vmem:[%s1196 + $0x28] sm:$0xf]
      %v1835 = vld [vmem:[%s1196 + $0x2c] sm:$0x1]
      %v1836 = vld [vmem:[%s1196 + $0x30] sm:$0xe]
      %v1837 = vld [vmem:[%s1196 + $0x34] sm:$0xf]
      %v1838 = vld [vmem:[%s1196 + $0x38] sm:$0x1]
      %v1839 = vld [vmem:[%s1196 + $0x3c] sm:$0xe]
      %v1840 = vld [vmem:[%s1196 + $0x40] sm:$0xf]
      %v1841 = vld [vmem:[%s1196 + $0x44] sm:$0x1]
      %v1842 = vld [vmem:[%s1196 + $0x48] sm:$0xe]
      %v1843 = vld [vmem:[%s1196 + $0x4c] sm:$0xf]
      %v1844 = vld [vmem:[%s1196 + $0x50] sm:$0x1]
      %v1845 = vld [vmem:[%s1196 + $0x54] sm:$0xe]
      %v1846 = vld [vmem:[%s1196 + $0x58] sm:$0xf]
      %v1847 = vld [vmem:[%s1196 + $0x5c] sm:$0x1]
      %v1848 = vld [vmem:[%s1196 + $0x60] sm:$0xe]
      %v1849 = vld [vmem:[%s1196 + $0x64] sm:$0xf]
      %v1850 = vld [vmem:[%s1196 + $0x68] sm:$0x1]
      %v1851 = vld [vmem:[%s1196 + $0x6c] sm:$0xe]
      %v1852 = vld [vmem:[%s1196 + $0x70] sm:$0xf]
      %v1853 = vld [vmem:[%s1196 + $0x74] sm:$0x1]
      %v1854 = vld [vmem:[%s1196 + $0x78] sm:$0xe]
      %v1855 = vld [vmem:[%s1196 + $0x7c] sm:$0xf]
      %v1856 = vld [vmem:[%s1196 + $0x80] sm:$0x1]
      %v1857 = vld [vmem:[%s1196 + $0x84] sm:$0xe]
      %v1858 = vld [vmem:[%s1196 + $0x88] sm:$0xf]
      %v1859 = vld [vmem:[%s1196 + $0x8c] sm:$0x1]
      %v1860 = vld [vmem:[%s1196 + $0x90] sm:$0xe]
      %v1861 = vld [vmem:[%s1196 + $0x94] sm:$0xf]
      %v1862 = vld [vmem:[%s1196 + $0x98] sm:$0x1]
      %v1863 = vld [vmem:[%s1196 + $0x9c] sm:$0xe]
      %v1864 = vld [vmem:[%s1196 + $0xa0] sm:$0xf]
      %v1865 = vld [vmem:[%s1196 + $0xa4] sm:$0x1]
      %v1866 = vld [vmem:[%s1196 + $0xa8] sm:$0xe]
      %v1867 = vld [vmem:[%s1196 + $0xac] sm:$0xf]
      %v1868 = vld [vmem:[%s1196 + $0xb0] sm:$0x1]
      %v1869 = vld [vmem:[%s1196 + $0xb4] sm:$0xe]
      %v1870 = vld [vmem:[%s1196 + $0xb8] sm:$0xf]
      %v1871 = vld [vmem:[%s1196 + $0xbc] sm:$0x1]
      %v1920 = vunpack.c.l.b16 %v1824
      %v1921 = vunpack.c.l.b16 %v1825
      %v1922 = vunpack.c.l.b16 %v1826
      %v1923 = vunpack.c.l.b16 %v1827
      %v1924 = vunpack.c.l.b16 %v1828
      %v1925 = vunpack.c.l.b16 %v1829
      %v1926 = vunpack.c.l.b16 %v1830
      %v1927 = vunpack.c.l.b16 %v1831
      %v1928 = vunpack.c.l.b16 %v1832
      %v1929 = vunpack.c.l.b16 %v1833
      %v1930 = vunpack.c.l.b16 %v1834
      %v1931 = vunpack.c.l.b16 %v1835
      %v1932 = vunpack.c.l.b16 %v1836
      %v1933 = vunpack.c.l.b16 %v1837
      %v1934 = vunpack.c.l.b16 %v1838
      %v1935 = vunpack.c.l.b16 %v1839
      %v1936 = vunpack.c.l.b16 %v1840
      %v1937 = vunpack.c.l.b16 %v1841
      %v1938 = vunpack.c.l.b16 %v1842
      %v1939 = vunpack.c.l.b16 %v1843
      %v1940 = vunpack.c.l.b16 %v1844
      %v1941 = vunpack.c.l.b16 %v1845
      %v1942 = vunpack.c.l.b16 %v1846
      %v1943 = vunpack.c.l.b16 %v1847
      %v1944 = vunpack.c.l.b16 %v1848
      %v1945 = vunpack.c.l.b16 %v1849
      %v1946 = vunpack.c.l.b16 %v1850
      %v1947 = vunpack.c.l.b16 %v1851
      %v1948 = vunpack.c.l.b16 %v1852
      %v1949 = vunpack.c.l.b16 %v1853
      %v1950 = vunpack.c.l.b16 %v1854
      %v1951 = vunpack.c.l.b16 %v1855
      %v1952 = vunpack.c.l.b16 %v1856
      %v1953 = vunpack.c.l.b16 %v1857
      %v1954 = vunpack.c.l.b16 %v1858
      %v1955 = vunpack.c.l.b16 %v1859
      %v1956 = vunpack.c.l.b16 %v1860
      %v1957 = vunpack.c.l.b16 %v1861
      %v1958 = vunpack.c.l.b16 %v1862
      %v1959 = vunpack.c.l.b16 %v1863
      %v1960 = vunpack.c.l.b16 %v1864
      %v1961 = vunpack.c.l.b16 %v1865
      %v1962 = vunpack.c.l.b16 %v1866
      %v1963 = vunpack.c.l.b16 %v1867
      %v1964 = vunpack.c.l.b16 %v1868
      %v1965 = vunpack.c.l.b16 %v1869
      %v1966 = vunpack.c.l.b16 %v1870
      %v1967 = vunpack.c.l.b16 %v1871
      %v1968 = vpack.c.b16 %v1921, %v1920
      %v1969 = vpack.c.b16 %v1922, %v1922
      %v1970 = vpack.c.b16 %v1924, %v1923
      %v1971 = vpack.c.b16 %v1925, %v1925
      %v1972 = vpack.c.b16 %v1927, %v1926
      %v1973 = vpack.c.b16 %v1928, %v1928
      %v1974 = vpack.c.b16 %v1930, %v1929
      %v1975 = vpack.c.b16 %v1931, %v1931
      %v1976 = vpack.c.b16 %v1933, %v1932
      %v1977 = vpack.c.b16 %v1934, %v1934
      %v1978 = vpack.c.b16 %v1936, %v1935
      %v1979 = vpack.c.b16 %v1937, %v1937
      %v1980 = vpack.c.b16 %v1939, %v1938
      %v1981 = vpack.c.b16 %v1940, %v1940
      %v1982 = vpack.c.b16 %v1942, %v1941
      %v1983 = vpack.c.b16 %v1943, %v1943
      %v1984 = vpack.c.b16 %v1945, %v1944
      %v1985 = vpack.c.b16 %v1946, %v1946
      %v1986 = vpack.c.b16 %v1948, %v1947
      %v1987 = vpack.c.b16 %v1949, %v1949
      %v1988 = vpack.c.b16 %v1951, %v1950
      %v1989 = vpack.c.b16 %v1952, %v1952
      %v1990 = vpack.c.b16 %v1954, %v1953
      %v1991 = vpack.c.b16 %v1955, %v1955
      %v1992 = vpack.c.b16 %v1957, %v1956
      %v1993 = vpack.c.b16 %v1958, %v1958
      %v1994 = vpack.c.b16 %v1960, %v1959
      %v1995 = vpack.c.b16 %v1961, %v1961
      %v1996 = vpack.c.b16 %v1963, %v1962
      %v1997 = vpack.c.b16 %v1964, %v1964
      %v1998 = vpack.c.b16 %v1966, %v1965
      %v1999 = vpack.c.b16 %v1967, %v1967
      %v2000 = vrot.slane %v1968, 1
      %v2001 = vrot.slane %v1969, 1
      %v2002 = vsel %vm1082, %v2000, %v2001
      %v2003 = vrot.slane %v1970, 1
      %v2004 = vrot.slane %v1971, 1
      %v2005 = vsel %vm1082, %v2003, %v2004
      %v2006 = vrot.slane %v1972, 1
      %v2007 = vrot.slane %v1973, 1
      %v2008 = vsel %vm1082, %v2006, %v2007
      %v2009 = vrot.slane %v1974, 1
      %v2010 = vrot.slane %v1975, 1
      %v2011 = vsel %vm1082, %v2009, %v2010
      %v2012 = vrot.slane %v1976, 1
      %v2013 = vrot.slane %v1977, 1
      %v2014 = vsel %vm1082, %v2012, %v2013
      %v2015 = vrot.slane %v1978, 1
      %v2016 = vrot.slane %v1979, 1
      %v2017 = vsel %vm1082, %v2015, %v2016
      %v2018 = vrot.slane %v1980, 1
      %v2019 = vrot.slane %v1981, 1
      %v2020 = vsel %vm1082, %v2018, %v2019
      %v2021 = vrot.slane %v1982, 1
      %v2022 = vrot.slane %v1983, 1
      %v2023 = vsel %vm1082, %v2021, %v2022
      %v2024 = vrot.slane %v1984, 1
      %v2025 = vrot.slane %v1985, 1
      %v2026 = vsel %vm1082, %v2024, %v2025
      %v2027 = vrot.slane %v1986, 1
      %v2028 = vrot.slane %v1987, 1
      %v2029 = vsel %vm1082, %v2027, %v2028
      %v2030 = vrot.slane %v1988, 1
      %v2031 = vrot.slane %v1989, 1
      %v2032 = vsel %vm1082, %v2030, %v2031
      %v2033 = vrot.slane %v1990, 1
      %v2034 = vrot.slane %v1991, 1
      %v2035 = vsel %vm1082, %v2033, %v2034
      %v2036 = vrot.slane %v1992, 1
      %v2037 = vrot.slane %v1993, 1
      %v2038 = vsel %vm1082, %v2036, %v2037
      %v2039 = vrot.slane %v1994, 1
      %v2040 = vrot.slane %v1995, 1
      %v2041 = vsel %vm1082, %v2039, %v2040
      %v2042 = vrot.slane %v1996, 1
      %v2043 = vrot.slane %v1997, 1
      %v2044 = vsel %vm1082, %v2042, %v2043
      %v2045 = vrot.slane %v1998, 1
      %v2046 = vrot.slane %v1999, 1
      %v2047 = vsel %vm1082, %v2045, %v2046
      %2048 = vrot.lane.b32.xlu0 %v2002, 52
      %v2049 = vpop.permute.xlu0 %2048
      %2050 = vrot.lane.b32.xlu0 %v2005, 52
      %v2051 = vpop.permute.xlu0 %2050
      %2052 = vrot.lane.b32.xlu0 %v2008, 52
      %v2053 = vpop.permute.xlu0 %2052
      %2054 = vrot.lane.b32.xlu0 %v2011, 52
      %v2055 = vpop.permute.xlu0 %2054
      %2056 = vrot.lane.b32.xlu0 %v2014, 52
      %v2057 = vpop.permute.xlu0 %2056
      %2058 = vrot.lane.b32.xlu0 %v2017, 52
      %v2059 = vpop.permute.xlu0 %2058
      %2060 = vrot.lane.b32.xlu0 %v2020, 52
      %v2061 = vpop.permute.xlu0 %2060
      %2062 = vrot.lane.b32.xlu0 %v2023, 52
      %v2063 = vpop.permute.xlu0 %2062
      %2064 = vrot.lane.b32.xlu0 %v2026, 52
      %v2065 = vpop.permute.xlu0 %2064
      %2066 = vrot.lane.b32.xlu0 %v2029, 52
      %v2067 = vpop.permute.xlu0 %2066
      %2068 = vrot.lane.b32.xlu0 %v2032, 52
      %v2069 = vpop.permute.xlu0 %2068
      %2070 = vrot.lane.b32.xlu0 %v2035, 52
      %v2071 = vpop.permute.xlu0 %2070
      %2072 = vrot.lane.b32.xlu0 %v2038, 52
      %v2073 = vpop.permute.xlu0 %2072
      %2074 = vrot.lane.b32.xlu0 %v2041, 52
      %v2075 = vpop.permute.xlu0 %2074
      %2076 = vrot.lane.b32.xlu0 %v2044, 52
      %v2077 = vpop.permute.xlu0 %2076
      %2078 = vrot.lane.b32.xlu0 %v2047, 52
      %v2079 = vpop.permute.xlu0 %2078
      %vm2096 = vcmask 720288
      %2097 = vst.msk [vmem:[#allocation2 + $0x8] sm:$0xff] %vm2096, %v2049
      %2098 = vst.msk [vmem:[#allocation2 + $0x20] sm:$0xff] %vm2096, %v2051
      %2099 = vst.msk [vmem:[#allocation2 + $0x38] sm:$0xff] %vm2096, %v2053
      %2100 = vst.msk [vmem:[#allocation2 + $0x50] sm:$0xff] %vm2096, %v2055
      %2101 = vst.msk [vmem:[#allocation2 + $0x68] sm:$0xff] %vm2096, %v2057
      %2102 = vst.msk [vmem:[#allocation2 + $0x80] sm:$0xff] %vm2096, %v2059
      %2103 = vst.msk [vmem:[#allocation2 + $0x98] sm:$0xff] %vm2096, %v2061
      %2104 = vst.msk [vmem:[#allocation2 + $0xb0] sm:$0xff] %vm2096, %v2063
      %2105 = vst.msk [vmem:[#allocation2 + $0xc8] sm:$0xff] %vm2096, %v2065
      %2106 = vst.msk [vmem:[#allocation2 + $0xe0] sm:$0xff] %vm2096, %v2067
      %2107 = vst.msk [vmem:[#allocation2 + $0xf8] sm:$0xff] %vm2096, %v2069
      %2108 = vst.msk [vmem:[#allocation2 + $0x110] sm:$0xff] %vm2096, %v2071
      %2109 = vst.msk [vmem:[#allocation2 + $0x128] sm:$0xff] %vm2096, %v2073
      %2110 = vst.msk [vmem:[#allocation2 + $0x140] sm:$0xff] %vm2096, %v2075
      %2111 = vst.msk [vmem:[#allocation2 + $0x158] sm:$0xff] %vm2096, %v2077
      %2112 = vst.msk [vmem:[#allocation2 + $0x170] sm:$0xff] %vm2096, %v2079
      %s2113 = scalar_lea.vmem %s293, 24
      %v2114 = vld [vmem:[%s2113] sm:$0xf]
      %v2115 = vld [vmem:[%s2113 + $0x4] sm:$0xf]
      %v2116 = vld [vmem:[%s2113 + $0xc] sm:$0xf]
      %v2117 = vld [vmem:[%s2113 + $0x10] sm:$0xf]
      %v2118 = vld [vmem:[%s2113 + $0x18] sm:$0xf]
      %v2119 = vld [vmem:[%s2113 + $0x1c] sm:$0xf]
      %v2120 = vld [vmem:[%s2113 + $0x24] sm:$0xf]
      %v2121 = vld [vmem:[%s2113 + $0x28] sm:$0xf]
      %v2122 = vld [vmem:[%s2113 + $0x30] sm:$0xf]
      %v2123 = vld [vmem:[%s2113 + $0x34] sm:$0xf]
      %v2124 = vld [vmem:[%s2113 + $0x3c] sm:$0xf]
      %v2125 = vld [vmem:[%s2113 + $0x40] sm:$0xf]
      %v2126 = vld [vmem:[%s2113 + $0x48] sm:$0xf]
      %v2127 = vld [vmem:[%s2113 + $0x4c] sm:$0xf]
      %v2128 = vld [vmem:[%s2113 + $0x54] sm:$0xf]
      %v2129 = vld [vmem:[%s2113 + $0x58] sm:$0xf]
      %v2130 = vld [vmem:[%s2113 + $0x60] sm:$0xf]
      %v2131 = vld [vmem:[%s2113 + $0x64] sm:$0xf]
      %v2132 = vld [vmem:[%s2113 + $0x6c] sm:$0xf]
      %v2133 = vld [vmem:[%s2113 + $0x70] sm:$0xf]
      %v2134 = vld [vmem:[%s2113 + $0x78] sm:$0xf]
      %v2135 = vld [vmem:[%s2113 + $0x7c] sm:$0xf]
      %v2136 = vld [vmem:[%s2113 + $0x84] sm:$0xf]
      %v2137 = vld [vmem:[%s2113 + $0x88] sm:$0xf]
      %v2138 = vld [vmem:[%s2113 + $0x90] sm:$0xf]
      %v2139 = vld [vmem:[%s2113 + $0x94] sm:$0xf]
      %v2140 = vld [vmem:[%s2113 + $0x9c] sm:$0xf]
      %v2141 = vld [vmem:[%s2113 + $0xa0] sm:$0xf]
      %v2142 = vld [vmem:[%s2113 + $0xa8] sm:$0xf]
      %v2143 = vld [vmem:[%s2113 + $0xac] sm:$0xf]
      %v2144 = vld [vmem:[%s2113 + $0xb4] sm:$0xf]
      %v2145 = vld [vmem:[%s2113 + $0xb8] sm:$0xf]
      %v2178 = vunpack.c.l.b16 %v2114
      %v2179 = vunpack.c.l.b16 %v2115
      %v2180 = vunpack.c.l.b16 %v2116
      %v2181 = vunpack.c.l.b16 %v2117
      %v2182 = vunpack.c.l.b16 %v2118
      %v2183 = vunpack.c.l.b16 %v2119
      %v2184 = vunpack.c.l.b16 %v2120
      %v2185 = vunpack.c.l.b16 %v2121
      %v2186 = vunpack.c.l.b16 %v2122
      %v2187 = vunpack.c.l.b16 %v2123
      %v2188 = vunpack.c.l.b16 %v2124
      %v2189 = vunpack.c.l.b16 %v2125
      %v2190 = vunpack.c.l.b16 %v2126
      %v2191 = vunpack.c.l.b16 %v2127
      %v2192 = vunpack.c.l.b16 %v2128
      %v2193 = vunpack.c.l.b16 %v2129
      %v2194 = vunpack.c.l.b16 %v2130
      %v2195 = vunpack.c.l.b16 %v2131
      %v2196 = vunpack.c.l.b16 %v2132
      %v2197 = vunpack.c.l.b16 %v2133
      %v2198 = vunpack.c.l.b16 %v2134
      %v2199 = vunpack.c.l.b16 %v2135
      %v2200 = vunpack.c.l.b16 %v2136
      %v2201 = vunpack.c.l.b16 %v2137
      %v2202 = vunpack.c.l.b16 %v2138
      %v2203 = vunpack.c.l.b16 %v2139
      %v2204 = vunpack.c.l.b16 %v2140
      %v2205 = vunpack.c.l.b16 %v2141
      %v2206 = vunpack.c.l.b16 %v2142
      %v2207 = vunpack.c.l.b16 %v2143
      %v2208 = vunpack.c.l.b16 %v2144
      %v2209 = vunpack.c.l.b16 %v2145
      %v2210 = vpack.c.b16 %v2179, %v2178
      %v2211 = vpack.c.b16 %v2181, %v2180
      %v2212 = vpack.c.b16 %v2183, %v2182
      %v2213 = vpack.c.b16 %v2185, %v2184
      %v2214 = vpack.c.b16 %v2187, %v2186
      %v2215 = vpack.c.b16 %v2189, %v2188
      %v2216 = vpack.c.b16 %v2191, %v2190
      %v2217 = vpack.c.b16 %v2193, %v2192
      %v2218 = vpack.c.b16 %v2195, %v2194
      %v2219 = vpack.c.b16 %v2197, %v2196
      %v2220 = vpack.c.b16 %v2199, %v2198
      %v2221 = vpack.c.b16 %v2201, %v2200
      %v2222 = vpack.c.b16 %v2203, %v2202
      %v2223 = vpack.c.b16 %v2205, %v2204
      %v2224 = vpack.c.b16 %v2207, %v2206
      %v2225 = vpack.c.b16 %v2209, %v2208
      %2226 = vrot.lane.b32.xlu0 %v2210, 88
      %v2227 = vpop.permute.xlu0 %2226
      %2228 = vrot.lane.b32.xlu0 %v2211, 88
      %v2229 = vpop.permute.xlu0 %2228
      %2230 = vrot.lane.b32.xlu0 %v2212, 88
      %v2231 = vpop.permute.xlu0 %2230
      %2232 = vrot.lane.b32.xlu0 %v2213, 88
      %v2233 = vpop.permute.xlu0 %2232
      %2234 = vrot.lane.b32.xlu0 %v2214, 88
      %v2235 = vpop.permute.xlu0 %2234
      %2236 = vrot.lane.b32.xlu0 %v2215, 88
      %v2237 = vpop.permute.xlu0 %2236
      %2238 = vrot.lane.b32.xlu0 %v2216, 88
      %v2239 = vpop.permute.xlu0 %2238
      %2240 = vrot.lane.b32.xlu0 %v2217, 88
      %v2241 = vpop.permute.xlu0 %2240
      %2242 = vrot.lane.b32.xlu0 %v2218, 88
      %v2243 = vpop.permute.xlu0 %2242
      %2244 = vrot.lane.b32.xlu0 %v2219, 88
      %v2245 = vpop.permute.xlu0 %2244
      %2246 = vrot.lane.b32.xlu0 %v2220, 88
      %v2247 = vpop.permute.xlu0 %2246
      %2248 = vrot.lane.b32.xlu0 %v2221, 88
      %v2249 = vpop.permute.xlu0 %2248
      %2250 = vrot.lane.b32.xlu0 %v2222, 88
      %v2251 = vpop.permute.xlu0 %2250
      %2252 = vrot.lane.b32.xlu0 %v2223, 88
      %v2253 = vpop.permute.xlu0 %2252
      %2254 = vrot.lane.b32.xlu0 %v2224, 88
      %v2255 = vpop.permute.xlu0 %2254
      %2256 = vrot.lane.b32.xlu0 %v2225, 88
      %v2257 = vpop.permute.xlu0 %2256
      %vm2274 = vcmask 1015488
      %2275 = vst.msk [vmem:[#allocation2 + $0x8] sm:$0xff] %vm2274, %v2227
      %2276 = vst.msk [vmem:[#allocation2 + $0x20] sm:$0xff] %vm2274, %v2229
      %2277 = vst.msk [vmem:[#allocation2 + $0x38] sm:$0xff] %vm2274, %v2231
      %2278 = vst.msk [vmem:[#allocation2 + $0x50] sm:$0xff] %vm2274, %v2233
      %2279 = vst.msk [vmem:[#allocation2 + $0x68] sm:$0xff] %vm2274, %v2235
      %2280 = vst.msk [vmem:[#allocation2 + $0x80] sm:$0xff] %vm2274, %v2237
      %2281 = vst.msk [vmem:[#allocation2 + $0x98] sm:$0xff] %vm2274, %v2239
      %2282 = vst.msk [vmem:[#allocation2 + $0xb0] sm:$0xff] %vm2274, %v2241
      %2283 = vst.msk [vmem:[#allocation2 + $0xc8] sm:$0xff] %vm2274, %v2243
      %2284 = vst.msk [vmem:[#allocation2 + $0xe0] sm:$0xff] %vm2274, %v2245
      %2285 = vst.msk [vmem:[#allocation2 + $0xf8] sm:$0xff] %vm2274, %v2247
      %2286 = vst.msk [vmem:[#allocation2 + $0x110] sm:$0xff] %vm2274, %v2249
      %2287 = vst.msk [vmem:[#allocation2 + $0x128] sm:$0xff] %vm2274, %v2251
      %2288 = vst.msk [vmem:[#allocation2 + $0x140] sm:$0xff] %vm2274, %v2253
      %2289 = vst.msk [vmem:[#allocation2 + $0x158] sm:$0xff] %vm2274, %v2255
      %2290 = vst.msk [vmem:[#allocation2 + $0x170] sm:$0xff] %vm2274, %v2257
      %v2291 = vld [vmem:[%s2113] sm:$0xf]
      %v2292 = vld [vmem:[%s2113 + $0x4] sm:$0xf]
      %v2293 = vld [vmem:[%s2113 + $0x8] sm:$0x1]
      %v2294 = vld [vmem:[%s2113 + $0xc] sm:$0xf]
      %v2295 = vld [vmem:[%s2113 + $0x10] sm:$0xf]
      %v2296 = vld [vmem:[%s2113 + $0x14] sm:$0x1]
      %v2297 = vld [vmem:[%s2113 + $0x18] sm:$0xf]
      %v2298 = vld [vmem:[%s2113 + $0x1c] sm:$0xf]
      %v2299 = vld [vmem:[%s2113 + $0x20] sm:$0x1]
      %v2300 = vld [vmem:[%s2113 + $0x24] sm:$0xf]
      %v2301 = vld [vmem:[%s2113 + $0x28] sm:$0xf]
      %v2302 = vld [vmem:[%s2113 + $0x2c] sm:$0x1]
      %v2303 = vld [vmem:[%s2113 + $0x30] sm:$0xf]
      %v2304 = vld [vmem:[%s2113 + $0x34] sm:$0xf]
      %v2305 = vld [vmem:[%s2113 + $0x38] sm:$0x1]
      %v2306 = vld [vmem:[%s2113 + $0x3c] sm:$0xf]
      %v2307 = vld [vmem:[%s2113 + $0x40] sm:$0xf]
      %v2308 = vld [vmem:[%s2113 + $0x44] sm:$0x1]
      %v2309 = vld [vmem:[%s2113 + $0x48] sm:$0xf]
      %v2310 = vld [vmem:[%s2113 + $0x4c] sm:$0xf]
      %v2311 = vld [vmem:[%s2113 + $0x50] sm:$0x1]
      %v2312 = vld [vmem:[%s2113 + $0x54] sm:$0xf]
      %v2313 = vld [vmem:[%s2113 + $0x58] sm:$0xf]
      %v2314 = vld [vmem:[%s2113 + $0x5c] sm:$0x1]
      %v2315 = vld [vmem:[%s2113 + $0x60] sm:$0xf]
      %v2316 = vld [vmem:[%s2113 + $0x64] sm:$0xf]
      %v2317 = vld [vmem:[%s2113 + $0x68] sm:$0x1]
      %v2318 = vld [vmem:[%s2113 + $0x6c] sm:$0xf]
      %v2319 = vld [vmem:[%s2113 + $0x70] sm:$0xf]
      %v2320 = vld [vmem:[%s2113 + $0x74] sm:$0x1]
      %v2321 = vld [vmem:[%s2113 + $0x78] sm:$0xf]
      %v2322 = vld [vmem:[%s2113 + $0x7c] sm:$0xf]
      %v2323 = vld [vmem:[%s2113 + $0x80] sm:$0x1]
      %v2324 = vld [vmem:[%s2113 + $0x84] sm:$0xf]
      %v2325 = vld [vmem:[%s2113 + $0x88] sm:$0xf]
      %v2326 = vld [vmem:[%s2113 + $0x8c] sm:$0x1]
      %v2327 = vld [vmem:[%s2113 + $0x90] sm:$0xf]
      %v2328 = vld [vmem:[%s2113 + $0x94] sm:$0xf]
      %v2329 = vld [vmem:[%s2113 + $0x98] sm:$0x1]
      %v2330 = vld [vmem:[%s2113 + $0x9c] sm:$0xf]
      %v2331 = vld [vmem:[%s2113 + $0xa0] sm:$0xf]
      %v2332 = vld [vmem:[%s2113 + $0xa4] sm:$0x1]
      %v2333 = vld [vmem:[%s2113 + $0xa8] sm:$0xf]
      %v2334 = vld [vmem:[%s2113 + $0xac] sm:$0xf]
      %v2335 = vld [vmem:[%s2113 + $0xb0] sm:$0x1]
      %v2336 = vld [vmem:[%s2113 + $0xb4] sm:$0xf]
      %v2337 = vld [vmem:[%s2113 + $0xb8] sm:$0xf]
      %v2338 = vld [vmem:[%s2113 + $0xbc] sm:$0x1]
      %v2387 = vunpack.c.l.b16 %v2291
      %v2388 = vunpack.c.l.b16 %v2292
      %v2389 = vunpack.c.l.b16 %v2293
      %v2390 = vunpack.c.l.b16 %v2294
      %v2391 = vunpack.c.l.b16 %v2295
      %v2392 = vunpack.c.l.b16 %v2296
      %v2393 = vunpack.c.l.b16 %v2297
      %v2394 = vunpack.c.l.b16 %v2298
      %v2395 = vunpack.c.l.b16 %v2299
      %v2396 = vunpack.c.l.b16 %v2300
      %v2397 = vunpack.c.l.b16 %v2301
      %v2398 = vunpack.c.l.b16 %v2302
      %v2399 = vunpack.c.l.b16 %v2303
      %v2400 = vunpack.c.l.b16 %v2304
      %v2401 = vunpack.c.l.b16 %v2305
      %v2402 = vunpack.c.l.b16 %v2306
      %v2403 = vunpack.c.l.b16 %v2307
      %v2404 = vunpack.c.l.b16 %v2308
      %v2405 = vunpack.c.l.b16 %v2309
      %v2406 = vunpack.c.l.b16 %v2310
      %v2407 = vunpack.c.l.b16 %v2311
      %v2408 = vunpack.c.l.b16 %v2312
      %v2409 = vunpack.c.l.b16 %v2313
      %v2410 = vunpack.c.l.b16 %v2314
      %v2411 = vunpack.c.l.b16 %v2315
      %v2412 = vunpack.c.l.b16 %v2316
      %v2413 = vunpack.c.l.b16 %v2317
      %v2414 = vunpack.c.l.b16 %v2318
      %v2415 = vunpack.c.l.b16 %v2319
      %v2416 = vunpack.c.l.b16 %v2320
      %v2417 = vunpack.c.l.b16 %v2321
      %v2418 = vunpack.c.l.b16 %v2322
      %v2419 = vunpack.c.l.b16 %v2323
      %v2420 = vunpack.c.l.b16 %v2324
      %v2421 = vunpack.c.l.b16 %v2325
      %v2422 = vunpack.c.l.b16 %v2326
      %v2423 = vunpack.c.l.b16 %v2327
      %v2424 = vunpack.c.l.b16 %v2328
      %v2425 = vunpack.c.l.b16 %v2329
      %v2426 = vunpack.c.l.b16 %v2330
      %v2427 = vunpack.c.l.b16 %v2331
      %v2428 = vunpack.c.l.b16 %v2332
      %v2429 = vunpack.c.l.b16 %v2333
      %v2430 = vunpack.c.l.b16 %v2334
      %v2431 = vunpack.c.l.b16 %v2335
      %v2432 = vunpack.c.l.b16 %v2336
      %v2433 = vunpack.c.l.b16 %v2337
      %v2434 = vunpack.c.l.b16 %v2338
      %v2435 = vpack.c.b16 %v2388, %v2387
      %v2436 = vpack.c.b16 %v2389, %v2389
      %v2437 = vpack.c.b16 %v2391, %v2390
      %v2438 = vpack.c.b16 %v2392, %v2392
      %v2439 = vpack.c.b16 %v2394, %v2393
      %v2440 = vpack.c.b16 %v2395, %v2395
      %v2441 = vpack.c.b16 %v2397, %v2396
      %v2442 = vpack.c.b16 %v2398, %v2398
      %v2443 = vpack.c.b16 %v2400, %v2399
      %v2444 = vpack.c.b16 %v2401, %v2401
      %v2445 = vpack.c.b16 %v2403, %v2402
      %v2446 = vpack.c.b16 %v2404, %v2404
      %v2447 = vpack.c.b16 %v2406, %v2405
      %v2448 = vpack.c.b16 %v2407, %v2407
      %v2449 = vpack.c.b16 %v2409, %v2408
      %v2450 = vpack.c.b16 %v2410, %v2410
      %v2451 = vpack.c.b16 %v2412, %v2411
      %v2452 = vpack.c.b16 %v2413, %v2413
      %v2453 = vpack.c.b16 %v2415, %v2414
      %v2454 = vpack.c.b16 %v2416, %v2416
      %v2455 = vpack.c.b16 %v2418, %v2417
      %v2456 = vpack.c.b16 %v2419, %v2419
      %v2457 = vpack.c.b16 %v2421, %v2420
      %v2458 = vpack.c.b16 %v2422, %v2422
      %v2459 = vpack.c.b16 %v2424, %v2423
      %v2460 = vpack.c.b16 %v2425, %v2425
      %v2461 = vpack.c.b16 %v2427, %v2426
      %v2462 = vpack.c.b16 %v2428, %v2428
      %v2463 = vpack.c.b16 %v2430, %v2429
      %v2464 = vpack.c.b16 %v2431, %v2431
      %v2465 = vpack.c.b16 %v2433, %v2432
      %v2466 = vpack.c.b16 %v2434, %v2434
      %v2468 = vshrl.u32 %v2435, 16
      %v2470 = vshll.u32 %v2435, 16
      %v2472 = vrot.slane %v2470, 1
      %v2473 = vor.u32 %v2468, %v2472
      %v2475 = vshll.u32 %v2436, 16
      %v2477 = vrot.slane %v2475, 1
      %v2478 = vsel %vm648, %v2473, %v2477
      %v2480 = vshrl.u32 %v2437, 16
      %v2482 = vshll.u32 %v2437, 16
      %v2484 = vrot.slane %v2482, 1
      %v2485 = vor.u32 %v2480, %v2484
      %v2487 = vshll.u32 %v2438, 16
      %v2489 = vrot.slane %v2487, 1
      %v2490 = vsel %vm648, %v2485, %v2489
      %v2492 = vshrl.u32 %v2439, 16
      %v2494 = vshll.u32 %v2439, 16
      %v2496 = vrot.slane %v2494, 1
      %v2497 = vor.u32 %v2492, %v2496
      %v2499 = vshll.u32 %v2440, 16
      %v2501 = vrot.slane %v2499, 1
      %v2502 = vsel %vm648, %v2497, %v2501
      %v2504 = vshrl.u32 %v2441, 16
      %v2506 = vshll.u32 %v2441, 16
      %v2508 = vrot.slane %v2506, 1
      %v2509 = vor.u32 %v2504, %v2508
      %v2511 = vshll.u32 %v2442, 16
      %v2513 = vrot.slane %v2511, 1
      %v2514 = vsel %vm648, %v2509, %v2513
      %v2516 = vshrl.u32 %v2443, 16
      %v2518 = vshll.u32 %v2443, 16
      %v2520 = vrot.slane %v2518, 1
      %v2521 = vor.u32 %v2516, %v2520
      %v2523 = vshll.u32 %v2444, 16
      %v2525 = vrot.slane %v2523, 1
      %v2526 = vsel %vm648, %v2521, %v2525
      %v2528 = vshrl.u32 %v2445, 16
      %v2530 = vshll.u32 %v2445, 16
      %v2532 = vrot.slane %v2530, 1
      %v2533 = vor.u32 %v2528, %v2532
      %v2535 = vshll.u32 %v2446, 16
      %v2537 = vrot.slane %v2535, 1
      %v2538 = vsel %vm648, %v2533, %v2537
      %v2540 = vshrl.u32 %v2447, 16
      %v2542 = vshll.u32 %v2447, 16
      %v2544 = vrot.slane %v2542, 1
      %v2545 = vor.u32 %v2540, %v2544
      %v2547 = vshll.u32 %v2448, 16
      %v2549 = vrot.slane %v2547, 1
      %v2550 = vsel %vm648, %v2545, %v2549
      %v2552 = vshrl.u32 %v2449, 16
      %v2554 = vshll.u32 %v2449, 16
      %v2556 = vrot.slane %v2554, 1
      %v2557 = vor.u32 %v2552, %v2556
      %v2559 = vshll.u32 %v2450, 16
      %v2561 = vrot.slane %v2559, 1
      %v2562 = vsel %vm648, %v2557, %v2561
      %v2564 = vshrl.u32 %v2451, 16
      %v2566 = vshll.u32 %v2451, 16
      %v2568 = vrot.slane %v2566, 1
      %v2569 = vor.u32 %v2564, %v2568
      %v2571 = vshll.u32 %v2452, 16
      %v2573 = vrot.slane %v2571, 1
      %v2574 = vsel %vm648, %v2569, %v2573
      %v2576 = vshrl.u32 %v2453, 16
      %v2578 = vshll.u32 %v2453, 16
      %v2580 = vrot.slane %v2578, 1
      %v2581 = vor.u32 %v2576, %v2580
      %v2583 = vshll.u32 %v2454, 16
      %v2585 = vrot.slane %v2583, 1
      %v2586 = vsel %vm648, %v2581, %v2585
      %v2588 = vshrl.u32 %v2455, 16
      %v2590 = vshll.u32 %v2455, 16
      %v2592 = vrot.slane %v2590, 1
      %v2593 = vor.u32 %v2588, %v2592
      %v2595 = vshll.u32 %v2456, 16
      %v2597 = vrot.slane %v2595, 1
      %v2598 = vsel %vm648, %v2593, %v2597
      %v2600 = vshrl.u32 %v2457, 16
      %v2602 = vshll.u32 %v2457, 16
      %v2604 = vrot.slane %v2602, 1
      %v2605 = vor.u32 %v2600, %v2604
      %v2607 = vshll.u32 %v2458, 16
      %v2609 = vrot.slane %v2607, 1
      %v2610 = vsel %vm648, %v2605, %v2609
      %v2612 = vshrl.u32 %v2459, 16
      %v2614 = vshll.u32 %v2459, 16
      %v2616 = vrot.slane %v2614, 1
      %v2617 = vor.u32 %v2612, %v2616
      %v2619 = vshll.u32 %v2460, 16
      %v2621 = vrot.slane %v2619, 1
      %v2622 = vsel %vm648, %v2617, %v2621
      %v2624 = vshrl.u32 %v2461, 16
      %v2626 = vshll.u32 %v2461, 16
      %v2628 = vrot.slane %v2626, 1
      %v2629 = vor.u32 %v2624, %v2628
      %v2631 = vshll.u32 %v2462, 16
      %v2633 = vrot.slane %v2631, 1
      %v2634 = vsel %vm648, %v2629, %v2633
      %v2636 = vshrl.u32 %v2463, 16
      %v2638 = vshll.u32 %v2463, 16
      %v2640 = vrot.slane %v2638, 1
      %v2641 = vor.u32 %v2636, %v2640
      %v2643 = vshll.u32 %v2464, 16
      %v2645 = vrot.slane %v2643, 1
      %v2646 = vsel %vm648, %v2641, %v2645
      %v2648 = vshrl.u32 %v2465, 16
      %v2650 = vshll.u32 %v2465, 16
      %v2652 = vrot.slane %v2650, 1
      %v2653 = vor.u32 %v2648, %v2652
      %v2655 = vshll.u32 %v2466, 16
      %v2657 = vrot.slane %v2655, 1
      %v2658 = vsel %vm648, %v2653, %v2657
      %2659 = vrot.lane.b32.xlu0 %v2478, 124
      %v2660 = vpop.permute.xlu0 %2659
      %2661 = vrot.lane.b32.xlu0 %v2490, 124
      %v2662 = vpop.permute.xlu0 %2661
      %2663 = vrot.lane.b32.xlu0 %v2502, 124
      %v2664 = vpop.permute.xlu0 %2663
      %2665 = vrot.lane.b32.xlu0 %v2514, 124
      %v2666 = vpop.permute.xlu0 %2665
      %2667 = vrot.lane.b32.xlu0 %v2526, 124
      %v2668 = vpop.permute.xlu0 %2667
      %2669 = vrot.lane.b32.xlu0 %v2538, 124
      %v2670 = vpop.permute.xlu0 %2669
      %2671 = vrot.lane.b32.xlu0 %v2550, 124
      %v2672 = vpop.permute.xlu0 %2671
      %2673 = vrot.lane.b32.xlu0 %v2562, 124
      %v2674 = vpop.permute.xlu0 %2673
      %2675 = vrot.lane.b32.xlu0 %v2574, 124
      %v2676 = vpop.permute.xlu0 %2675
      %2677 = vrot.lane.b32.xlu0 %v2586, 124
      %v2678 = vpop.permute.xlu0 %2677
      %2679 = vrot.lane.b32.xlu0 %v2598, 124
      %v2680 = vpop.permute.xlu0 %2679
      %2681 = vrot.lane.b32.xlu0 %v2610, 124
      %v2682 = vpop.permute.xlu0 %2681
      %2683 = vrot.lane.b32.xlu0 %v2622, 124
      %v2684 = vpop.permute.xlu0 %2683
      %2685 = vrot.lane.b32.xlu0 %v2634, 124
      %v2686 = vpop.permute.xlu0 %2685
      %2687 = vrot.lane.b32.xlu0 %v2646, 124
      %v2688 = vpop.permute.xlu0 %2687
      %2689 = vrot.lane.b32.xlu0 %v2658, 124
      %v2690 = vpop.permute.xlu0 %2689
      %vm2707 = vcmask 1048544
      %2708 = vst.msk [vmem:[#allocation2 + $0x8] sm:$0xff] %vm2707, %v2660
      %vm2709 = vcmask 261120
      %2710 = vst.msk [vmem:[#allocation2 + $0x10] sm:$0xff] %vm2709, %v2660
      %2711 = vst.msk [vmem:[#allocation2 + $0x20] sm:$0xff] %vm2707, %v2662
      %2712 = vst.msk [vmem:[#allocation2 + $0x28] sm:$0xff] %vm2709, %v2662
      %2713 = vst.msk [vmem:[#allocation2 + $0x38] sm:$0xff] %vm2707, %v2664
      %2714 = vst.msk [vmem:[#allocation2 + $0x40] sm:$0xff] %vm2709, %v2664
      %2715 = vst.msk [vmem:[#allocation2 + $0x50] sm:$0xff] %vm2707, %v2666
      %2716 = vst.msk [vmem:[#allocation2 + $0x58] sm:$0xff] %vm2709, %v2666
      %2717 = vst.msk [vmem:[#allocation2 + $0x68] sm:$0xff] %vm2707, %v2668
      %2718 = vst.msk [vmem:[#allocation2 + $0x70] sm:$0xff] %vm2709, %v2668
      %2719 = vst.msk [vmem:[#allocation2 + $0x80] sm:$0xff] %vm2707, %v2670
      %2720 = vst.msk [vmem:[#allocation2 + $0x88] sm:$0xff] %vm2709, %v2670
      %2721 = vst.msk [vmem:[#allocation2 + $0x98] sm:$0xff] %vm2707, %v2672
      %2722 = vst.msk [vmem:[#allocation2 + $0xa0] sm:$0xff] %vm2709, %v2672
      %2723 = vst.msk [vmem:[#allocation2 + $0xb0] sm:$0xff] %vm2707, %v2674
      %2724 = vst.msk [vmem:[#allocation2 + $0xb8] sm:$0xff] %vm2709, %v2674
      %2725 = vst.msk [vmem:[#allocation2 + $0xc8] sm:$0xff] %vm2707, %v2676
      %2726 = vst.msk [vmem:[#allocation2 + $0xd0] sm:$0xff] %vm2709, %v2676
      %2727 = vst.msk [vmem:[#allocation2 + $0xe0] sm:$0xff] %vm2707, %v2678
      %2728 = vst.msk [vmem:[#allocation2 + $0xe8] sm:$0xff] %vm2709, %v2678
      %2729 = vst.msk [vmem:[#allocation2 + $0xf8] sm:$0xff] %vm2707, %v2680
      %2730 = vst.msk [vmem:[#allocation2 + $0x100] sm:$0xff] %vm2709, %v2680
      %2731 = vst.msk [vmem:[#allocation2 + $0x110] sm:$0xff] %vm2707, %v2682
      %2732 = vst.msk [vmem:[#allocation2 + $0x118] sm:$0xff] %vm2709, %v2682
      %2733 = vst.msk [vmem:[#allocation2 + $0x128] sm:$0xff] %vm2707, %v2684
      %2734 = vst.msk [vmem:[#allocation2 + $0x130] sm:$0xff] %vm2709, %v2684
      %2735 = vst.msk [vmem:[#allocation2 + $0x140] sm:$0xff] %vm2707, %v2686
      %2736 = vst.msk [vmem:[#allocation2 + $0x148] sm:$0xff] %vm2709, %v2686
      %2737 = vst.msk [vmem:[#allocation2 + $0x158] sm:$0xff] %vm2707, %v2688
      %2738 = vst.msk [vmem:[#allocation2 + $0x160] sm:$0xff] %vm2709, %v2688
      %2739 = vst.msk [vmem:[#allocation2 + $0x170] sm:$0xff] %vm2707, %v2690
      %2740 = vst.msk [vmem:[#allocation2 + $0x178] sm:$0xff] %vm2709, %v2690
      %v2741 = vld [vmem:[%s2113] sm:$0xe]
      %v2742 = vld [vmem:[%s2113 + $0x4] sm:$0xf]
      %v2743 = vld [vmem:[%s2113 + $0x8] sm:$0x1]
      %v2744 = vld [vmem:[%s2113 + $0xc] sm:$0xe]
      %v2745 = vld [vmem:[%s2113 + $0x10] sm:$0xf]
      %v2746 = vld [vmem:[%s2113 + $0x14] sm:$0x1]
      %v2747 = vld [vmem:[%s2113 + $0x18] sm:$0xe]
      %v2748 = vld [vmem:[%s2113 + $0x1c] sm:$0xf]
      %v2749 = vld [vmem:[%s2113 + $0x20] sm:$0x1]
      %v2750 = vld [vmem:[%s2113 + $0x24] sm:$0xe]
      %v2751 = vld [vmem:[%s2113 + $0x28] sm:$0xf]
      %v2752 = vld [vmem:[%s2113 + $0x2c] sm:$0x1]
      %v2753 = vld [vmem:[%s2113 + $0x30] sm:$0xe]
      %v2754 = vld [vmem:[%s2113 + $0x34] sm:$0xf]
      %v2755 = vld [vmem:[%s2113 + $0x38] sm:$0x1]
      %v2756 = vld [vmem:[%s2113 + $0x3c] sm:$0xe]
      %v2757 = vld [vmem:[%s2113 + $0x40] sm:$0xf]
      %v2758 = vld [vmem:[%s2113 + $0x44] sm:$0x1]
      %v2759 = vld [vmem:[%s2113 + $0x48] sm:$0xe]
      %v2760 = vld [vmem:[%s2113 + $0x4c] sm:$0xf]
      %v2761 = vld [vmem:[%s2113 + $0x50] sm:$0x1]
      %v2762 = vld [vmem:[%s2113 + $0x54] sm:$0xe]
      %v2763 = vld [vmem:[%s2113 + $0x58] sm:$0xf]
      %v2764 = vld [vmem:[%s2113 + $0x5c] sm:$0x1]
      %v2765 = vld [vmem:[%s2113 + $0x60] sm:$0xe]
      %v2766 = vld [vmem:[%s2113 + $0x64] sm:$0xf]
      %v2767 = vld [vmem:[%s2113 + $0x68] sm:$0x1]
      %v2768 = vld [vmem:[%s2113 + $0x6c] sm:$0xe]
      %v2769 = vld [vmem:[%s2113 + $0x70] sm:$0xf]
      %v2770 = vld [vmem:[%s2113 + $0x74] sm:$0x1]
      %v2771 = vld [vmem:[%s2113 + $0x78] sm:$0xe]
      %v2772 = vld [vmem:[%s2113 + $0x7c] sm:$0xf]
      %v2773 = vld [vmem:[%s2113 + $0x80] sm:$0x1]
      %v2774 = vld [vmem:[%s2113 + $0x84] sm:$0xe]
      %v2775 = vld [vmem:[%s2113 + $0x88] sm:$0xf]
      %v2776 = vld [vmem:[%s2113 + $0x8c] sm:$0x1]
      %v2777 = vld [vmem:[%s2113 + $0x90] sm:$0xe]
      %v2778 = vld [vmem:[%s2113 + $0x94] sm:$0xf]
      %v2779 = vld [vmem:[%s2113 + $0x98] sm:$0x1]
      %v2780 = vld [vmem:[%s2113 + $0x9c] sm:$0xe]
      %v2781 = vld [vmem:[%s2113 + $0xa0] sm:$0xf]
      %v2782 = vld [vmem:[%s2113 + $0xa4] sm:$0x1]
      %v2783 = vld [vmem:[%s2113 + $0xa8] sm:$0xe]
      %v2784 = vld [vmem:[%s2113 + $0xac] sm:$0xf]
      %v2785 = vld [vmem:[%s2113 + $0xb0] sm:$0x1]
      %v2786 = vld [vmem:[%s2113 + $0xb4] sm:$0xe]
      %v2787 = vld [vmem:[%s2113 + $0xb8] sm:$0xf]
      %v2788 = vld [vmem:[%s2113 + $0xbc] sm:$0x1]
      %v2837 = vunpack.c.l.b16 %v2741
      %v2838 = vunpack.c.l.b16 %v2742
      %v2839 = vunpack.c.l.b16 %v2743
      %v2840 = vunpack.c.l.b16 %v2744
      %v2841 = vunpack.c.l.b16 %v2745
      %v2842 = vunpack.c.l.b16 %v2746
      %v2843 = vunpack.c.l.b16 %v2747
      %v2844 = vunpack.c.l.b16 %v2748
      %v2845 = vunpack.c.l.b16 %v2749
      %v2846 = vunpack.c.l.b16 %v2750
      %v2847 = vunpack.c.l.b16 %v2751
      %v2848 = vunpack.c.l.b16 %v2752
      %v2849 = vunpack.c.l.b16 %v2753
      %v2850 = vunpack.c.l.b16 %v2754
      %v2851 = vunpack.c.l.b16 %v2755
      %v2852 = vunpack.c.l.b16 %v2756
      %v2853 = vunpack.c.l.b16 %v2757
      %v2854 = vunpack.c.l.b16 %v2758
      %v2855 = vunpack.c.l.b16 %v2759
      %v2856 = vunpack.c.l.b16 %v2760
      %v2857 = vunpack.c.l.b16 %v2761
      %v2858 = vunpack.c.l.b16 %v2762
      %v2859 = vunpack.c.l.b16 %v2763
      %v2860 = vunpack.c.l.b16 %v2764
      %v2861 = vunpack.c.l.b16 %v2765
      %v2862 = vunpack.c.l.b16 %v2766
      %v2863 = vunpack.c.l.b16 %v2767
      %v2864 = vunpack.c.l.b16 %v2768
      %v2865 = vunpack.c.l.b16 %v2769
      %v2866 = vunpack.c.l.b16 %v2770
      %v2867 = vunpack.c.l.b16 %v2771
      %v2868 = vunpack.c.l.b16 %v2772
      %v2869 = vunpack.c.l.b16 %v2773
      %v2870 = vunpack.c.l.b16 %v2774
      %v2871 = vunpack.c.l.b16 %v2775
      %v2872 = vunpack.c.l.b16 %v2776
      %v2873 = vunpack.c.l.b16 %v2777
      %v2874 = vunpack.c.l.b16 %v2778
      %v2875 = vunpack.c.l.b16 %v2779
      %v2876 = vunpack.c.l.b16 %v2780
      %v2877 = vunpack.c.l.b16 %v2781
      %v2878 = vunpack.c.l.b16 %v2782
      %v2879 = vunpack.c.l.b16 %v2783
      %v2880 = vunpack.c.l.b16 %v2784
      %v2881 = vunpack.c.l.b16 %v2785
      %v2882 = vunpack.c.l.b16 %v2786
      %v2883 = vunpack.c.l.b16 %v2787
      %v2884 = vunpack.c.l.b16 %v2788
      %v2885 = vpack.c.b16 %v2838, %v2837
      %v2886 = vpack.c.b16 %v2839, %v2839
      %v2887 = vpack.c.b16 %v2841, %v2840
      %v2888 = vpack.c.b16 %v2842, %v2842
      %v2889 = vpack.c.b16 %v2844, %v2843
      %v2890 = vpack.c.b16 %v2845, %v2845
      %v2891 = vpack.c.b16 %v2847, %v2846
      %v2892 = vpack.c.b16 %v2848, %v2848
      %v2893 = vpack.c.b16 %v2850, %v2849
      %v2894 = vpack.c.b16 %v2851, %v2851
      %v2895 = vpack.c.b16 %v2853, %v2852
      %v2896 = vpack.c.b16 %v2854, %v2854
      %v2897 = vpack.c.b16 %v2856, %v2855
      %v2898 = vpack.c.b16 %v2857, %v2857
      %v2899 = vpack.c.b16 %v2859, %v2858
      %v2900 = vpack.c.b16 %v2860, %v2860
      %v2901 = vpack.c.b16 %v2862, %v2861
      %v2902 = vpack.c.b16 %v2863, %v2863
      %v2903 = vpack.c.b16 %v2865, %v2864
      %v2904 = vpack.c.b16 %v2866, %v2866
      %v2905 = vpack.c.b16 %v2868, %v2867
      %v2906 = vpack.c.b16 %v2869, %v2869
      %v2907 = vpack.c.b16 %v2871, %v2870
      %v2908 = vpack.c.b16 %v2872, %v2872
      %v2909 = vpack.c.b16 %v2874, %v2873
      %v2910 = vpack.c.b16 %v2875, %v2875
      %v2911 = vpack.c.b16 %v2877, %v2876
      %v2912 = vpack.c.b16 %v2878, %v2878
      %v2913 = vpack.c.b16 %v2880, %v2879
      %v2914 = vpack.c.b16 %v2881, %v2881
      %v2915 = vpack.c.b16 %v2883, %v2882
      %v2916 = vpack.c.b16 %v2884, %v2884
      %v2917 = vrot.slane %v2885, 1
      %v2918 = vrot.slane %v2886, 1
      %v2919 = vsel %vm1082, %v2917, %v2918
      %v2920 = vrot.slane %v2887, 1
      %v2921 = vrot.slane %v2888, 1
      %v2922 = vsel %vm1082, %v2920, %v2921
      %v2923 = vrot.slane %v2889, 1
      %v2924 = vrot.slane %v2890, 1
      %v2925 = vsel %vm1082, %v2923, %v2924
      %v2926 = vrot.slane %v2891, 1
      %v2927 = vrot.slane %v2892, 1
      %v2928 = vsel %vm1082, %v2926, %v2927
      %v2929 = vrot.slane %v2893, 1
      %v2930 = vrot.slane %v2894, 1
      %v2931 = vsel %vm1082, %v2929, %v2930
      %v2932 = vrot.slane %v2895, 1
      %v2933 = vrot.slane %v2896, 1
      %v2934 = vsel %vm1082, %v2932, %v2933
      %v2935 = vrot.slane %v2897, 1
      %v2936 = vrot.slane %v2898, 1
      %v2937 = vsel %vm1082, %v2935, %v2936
      %v2938 = vrot.slane %v2899, 1
      %v2939 = vrot.slane %v2900, 1
      %v2940 = vsel %vm1082, %v2938, %v2939
      %v2941 = vrot.slane %v2901, 1
      %v2942 = vrot.slane %v2902, 1
      %v2943 = vsel %vm1082, %v2941, %v2942
      %v2944 = vrot.slane %v2903, 1
      %v2945 = vrot.slane %v2904, 1
      %v2946 = vsel %vm1082, %v2944, %v2945
      %v2947 = vrot.slane %v2905, 1
      %v2948 = vrot.slane %v2906, 1
      %v2949 = vsel %vm1082, %v2947, %v2948
      %v2950 = vrot.slane %v2907, 1
      %v2951 = vrot.slane %v2908, 1
      %v2952 = vsel %vm1082, %v2950, %v2951
      %v2953 = vrot.slane %v2909, 1
      %v2954 = vrot.slane %v2910, 1
      %v2955 = vsel %vm1082, %v2953, %v2954
      %v2956 = vrot.slane %v2911, 1
      %v2957 = vrot.slane %v2912, 1
      %v2958 = vsel %vm1082, %v2956, %v2957
      %v2959 = vrot.slane %v2913, 1
      %v2960 = vrot.slane %v2914, 1
      %v2961 = vsel %vm1082, %v2959, %v2960
      %v2962 = vrot.slane %v2915, 1
      %v2963 = vrot.slane %v2916, 1
      %v2964 = vsel %vm1082, %v2962, %v2963
      %2965 = vrot.lane.b32.xlu0 %v2919, 32
      %v2966 = vpop.permute.xlu0 %2965
      %2967 = vrot.lane.b32.xlu0 %v2922, 32
      %v2968 = vpop.permute.xlu0 %2967
      %2969 = vrot.lane.b32.xlu0 %v2925, 32
      %v2970 = vpop.permute.xlu0 %2969
      %2971 = vrot.lane.b32.xlu0 %v2928, 32
      %v2972 = vpop.permute.xlu0 %2971
      %2973 = vrot.lane.b32.xlu0 %v2931, 32
      %v2974 = vpop.permute.xlu0 %2973
      %2975 = vrot.lane.b32.xlu0 %v2934, 32
      %v2976 = vpop.permute.xlu0 %2975
      %2977 = vrot.lane.b32.xlu0 %v2937, 32
      %v2978 = vpop.permute.xlu0 %2977
      %2979 = vrot.lane.b32.xlu0 %v2940, 32
      %v2980 = vpop.permute.xlu0 %2979
      %2981 = vrot.lane.b32.xlu0 %v2943, 32
      %v2982 = vpop.permute.xlu0 %2981
      %2983 = vrot.lane.b32.xlu0 %v2946, 32
      %v2984 = vpop.permute.xlu0 %2983
      %2985 = vrot.lane.b32.xlu0 %v2949, 32
      %v2986 = vpop.permute.xlu0 %2985
      %2987 = vrot.lane.b32.xlu0 %v2952, 32
      %v2988 = vpop.permute.xlu0 %2987
      %2989 = vrot.lane.b32.xlu0 %v2955, 32
      %v2990 = vpop.permute.xlu0 %2989
      %2991 = vrot.lane.b32.xlu0 %v2958, 32
      %v2992 = vpop.permute.xlu0 %2991
      %2993 = vrot.lane.b32.xlu0 %v2961, 32
      %v2994 = vpop.permute.xlu0 %2993
      %2995 = vrot.lane.b32.xlu0 %v2964, 32
      %v2996 = vpop.permute.xlu0 %2995
      %vm3013 = vcmask 556288
      %3014 = vst.msk [vmem:[#allocation2 + $0x10] sm:$0xff] %vm3013, %v2966
      %3015 = vst.msk [vmem:[#allocation2 + $0x28] sm:$0xff] %vm3013, %v2968
      %3016 = vst.msk [vmem:[#allocation2 + $0x40] sm:$0xff] %vm3013, %v2970
      %3017 = vst.msk [vmem:[#allocation2 + $0x58] sm:$0xff] %vm3013, %v2972
      %3018 = vst.msk [vmem:[#allocation2 + $0x70] sm:$0xff] %vm3013, %v2974
      %3019 = vst.msk [vmem:[#allocation2 + $0x88] sm:$0xff] %vm3013, %v2976
      %3020 = vst.msk [vmem:[#allocation2 + $0xa0] sm:$0xff] %vm3013, %v2978
      %3021 = vst.msk [vmem:[#allocation2 + $0xb8] sm:$0xff] %vm3013, %v2980
      %3022 = vst.msk [vmem:[#allocation2 + $0xd0] sm:$0xff] %vm3013, %v2982
      %3023 = vst.msk [vmem:[#allocation2 + $0xe8] sm:$0xff] %vm3013, %v2984
      %3024 = vst.msk [vmem:[#allocation2 + $0x100] sm:$0xff] %vm3013, %v2986
      %3025 = vst.msk [vmem:[#allocation2 + $0x118] sm:$0xff] %vm3013, %v2988
      %3026 = vst.msk [vmem:[#allocation2 + $0x130] sm:$0xff] %vm3013, %v2990
      %3027 = vst.msk [vmem:[#allocation2 + $0x148] sm:$0xff] %vm3013, %v2992
      %3028 = vst.msk [vmem:[#allocation2 + $0x160] sm:$0xff] %vm3013, %v2994
      %3029 = vst.msk [vmem:[#allocation2 + $0x178] sm:$0xff] %vm3013, %v2996
      %v3030 = vld [vmem:[#allocation2] sm:$0xff]
      %v3031 = vld [vmem:[#allocation2 + $0x8] sm:$0xff]
      %v3032 = vld [vmem:[#allocation2 + $0x10] sm:$0xff]
      %v3033 = vld [vmem:[#allocation2 + $0x18] sm:$0xff]
      %v3034 = vld [vmem:[#allocation2 + $0x20] sm:$0xff]
      %v3035 = vld [vmem:[#allocation2 + $0x28] sm:$0xff]
      %v3036 = vld [vmem:[#allocation2 + $0x30] sm:$0xff]
      %v3037 = vld [vmem:[#allocation2 + $0x38] sm:$0xff]
      %v3038 = vld [vmem:[#allocation2 + $0x40] sm:$0xff]
      %v3039 = vld [vmem:[#allocation2 + $0x48] sm:$0xff]
      %v3040 = vld [vmem:[#allocation2 + $0x50] sm:$0xff]
      %v3041 = vld [vmem:[#allocation2 + $0x58] sm:$0xff]
      %v3042 = vld [vmem:[#allocation2 + $0x60] sm:$0xff]
      %v3043 = vld [vmem:[#allocation2 + $0x68] sm:$0xff]
      %v3044 = vld [vmem:[#allocation2 + $0x70] sm:$0xff]
      %v3045 = vld [vmem:[#allocation2 + $0x78] sm:$0xff]
      %v3046 = vld [vmem:[#allocation2 + $0x80] sm:$0xff]
      %v3047 = vld [vmem:[#allocation2 + $0x88] sm:$0xff]
      %v3048 = vld [vmem:[#allocation2 + $0x90] sm:$0xff]
      %v3049 = vld [vmem:[#allocation2 + $0x98] sm:$0xff]
      %v3050 = vld [vmem:[#allocation2 + $0xa0] sm:$0xff]
      %v3051 = vld [vmem:[#allocation2 + $0xa8] sm:$0xff]
      %v3052 = vld [vmem:[#allocation2 + $0xb0] sm:$0xff]
      %v3053 = vld [vmem:[#allocation2 + $0xb8] sm:$0xff]
      %v3054 = vld [vmem:[#allocation2 + $0xc0] sm:$0xff]
      %v3055 = vld [vmem:[#allocation2 + $0xc8] sm:$0xff]
      %v3056 = vld [vmem:[#allocation2 + $0xd0] sm:$0xff]
      %v3057 = vld [vmem:[#allocation2 + $0xd8] sm:$0xff]
      %v3058 = vld [vmem:[#allocation2 + $0xe0] sm:$0xff]
      %v3059 = vld [vmem:[#allocation2 + $0xe8] sm:$0xff]
      %v3060 = vld [vmem:[#allocation2 + $0xf0] sm:$0xff]
      %v3061 = vld [vmem:[#allocation2 + $0xf8] sm:$0xff]
      %v3062 = vld [vmem:[#allocation2 + $0x100] sm:$0xff]
      %v3063 = vld [vmem:[#allocation2 + $0x108] sm:$0xff]
      %v3064 = vld [vmem:[#allocation2 + $0x110] sm:$0xff]
      %v3065 = vld [vmem:[#allocation2 + $0x118] sm:$0xff]
      %v3066 = vld [vmem:[#allocation2 + $0x120] sm:$0xff]
      %v3067 = vld [vmem:[#allocation2 + $0x128] sm:$0xff]
      %v3068 = vld [vmem:[#allocation2 + $0x130] sm:$0xff]
      %v3069 = vld [vmem:[#allocation2 + $0x138] sm:$0xff]
      %v3070 = vld [vmem:[#allocation2 + $0x140] sm:$0xff]
      %v3071 = vld [vmem:[#allocation2 + $0x148] sm:$0xff]
      %v3072 = vld [vmem:[#allocation2 + $0x150] sm:$0xff]
      %v3073 = vld [vmem:[#allocation2 + $0x158] sm:$0xff]
      %v3074 = vld [vmem:[#allocation2 + $0x160] sm:$0xff]
      %v3075 = vld [vmem:[#allocation2 + $0x168] sm:$0xff]
      %v3076 = vld [vmem:[#allocation2 + $0x170] sm:$0xff]
      %v3077 = vld [vmem:[#allocation2 + $0x178] sm:$0xff]
      %v3078 = vld [vmem:[%s1] sm:$0xf]
      %v3079 = vld [vmem:[%s1 + $0x4] sm:$0xf]
      %v3080 = vld [vmem:[%s1 + $0x8] sm:$0xf]
      %v3081 = vld [vmem:[%s1 + $0xc] sm:$0xf]
      %v3082 = vld [vmem:[%s1 + $0x10] sm:$0xf]
      %v3083 = vld [vmem:[%s1 + $0x14] sm:$0xf]
      %v3084 = vld [vmem:[%s1 + $0x18] sm:$0xf]
      %v3085 = vld [vmem:[%s1 + $0x1c] sm:$0xf]
      %v3086 = vld [vmem:[%s1 + $0x20] sm:$0xf]
      %v3087 = vld [vmem:[%s1 + $0x24] sm:$0xf]
      %v3088 = vld [vmem:[%s1 + $0x28] sm:$0xf]
      %v3089 = vld [vmem:[%s1 + $0x2c] sm:$0xf]
      %v3090 = vld [vmem:[%s1 + $0x30] sm:$0xf]
      %v3091 = vld [vmem:[%s1 + $0x34] sm:$0xf]
      %v3092 = vld [vmem:[%s1 + $0x38] sm:$0xf]
      %v3093 = vld [vmem:[%s1 + $0x3c] sm:$0xf]
      %v3094 = vld [vmem:[%s1 + $0x40] sm:$0xf]
      %v3095 = vld [vmem:[%s1 + $0x44] sm:$0xf]
      %v3096 = vld [vmem:[%s1 + $0x48] sm:$0xf]
      %v3097 = vld [vmem:[%s1 + $0x4c] sm:$0xf]
      %v3098 = vld [vmem:[%s1 + $0x50] sm:$0xf]
      %v3099 = vld [vmem:[%s1 + $0x54] sm:$0xf]
      %v3100 = vld [vmem:[%s1 + $0x58] sm:$0xf]
      %v3101 = vld [vmem:[%s1 + $0x5c] sm:$0xf]
      %v3102 = vld [vmem:[%s1 + $0x60] sm:$0xf]
      %v3103 = vld [vmem:[%s1 + $0x64] sm:$0xf]
      %v3104 = vld [vmem:[%s1 + $0x68] sm:$0xf]
      %v3105 = vld [vmem:[%s1 + $0x6c] sm:$0xf]
      %v3106 = vld [vmem:[%s1 + $0x70] sm:$0xf]
      %v3107 = vld [vmem:[%s1 + $0x74] sm:$0xf]
      %v3108 = vld [vmem:[%s1 + $0x78] sm:$0xf]
      %v3109 = vld [vmem:[%s1 + $0x7c] sm:$0xf]
      %v3110 = vld [vmem:[%s1 + $0x80] sm:$0xf]
      %v3111 = vld [vmem:[%s1 + $0x84] sm:$0xf]
      %v3112 = vld [vmem:[%s1 + $0x88] sm:$0xf]
      %v3113 = vld [vmem:[%s1 + $0x8c] sm:$0xf]
      %v3114 = vld [vmem:[%s1 + $0x90] sm:$0xf]
      %v3115 = vld [vmem:[%s1 + $0x94] sm:$0xf]
      %v3116 = vld [vmem:[%s1 + $0x98] sm:$0xf]
      %v3117 = vld [vmem:[%s1 + $0x9c] sm:$0xf]
      %v3118 = vld [vmem:[%s1 + $0xa0] sm:$0x3]
      %v3119 = vld [vmem:[%s2] sm:$0x1]
      %v3121 = vlaneseq
      %v3122 = vshrl.u32 %v3121, 7
      %v3123 = vsub.s32 0, %v3122
      %v3124 = vrot.slane %v3119, %v3123
      %v3167 = vunpack.c.l.b16 %v3078
      %v3168 = vunpack.c.l.b16 %v3079
      %v3169 = vunpack.c.l.b16 %v3080
      %v3170 = vunpack.c.l.b16 %v3081
      %v3171 = vunpack.c.l.b16 %v3082
      %v3172 = vunpack.c.l.b16 %v3083
      %v3173 = vunpack.c.l.b16 %v3084
      %v3174 = vunpack.c.l.b16 %v3085
      %v3175 = vunpack.c.l.b16 %v3086
      %v3176 = vunpack.c.l.b16 %v3087
      %v3177 = vunpack.c.l.b16 %v3088
      %v3178 = vunpack.c.l.b16 %v3089
      %v3179 = vunpack.c.l.b16 %v3090
      %v3180 = vunpack.c.l.b16 %v3091
      %v3181 = vunpack.c.l.b16 %v3092
      %v3182 = vunpack.c.l.b16 %v3093
      %v3183 = vunpack.c.l.b16 %v3094
      %v3184 = vunpack.c.l.b16 %v3095
      %v3185 = vunpack.c.l.b16 %v3096
      %v3186 = vunpack.c.l.b16 %v3097
      %v3187 = vunpack.c.l.b16 %v3098
      %v3188 = vunpack.c.l.b16 %v3099
      %v3189 = vunpack.c.l.b16 %v3100
      %v3190 = vunpack.c.l.b16 %v3101
      %v3191 = vunpack.c.l.b16 %v3102
      %v3192 = vunpack.c.l.b16 %v3103
      %v3193 = vunpack.c.l.b16 %v3104
      %v3194 = vunpack.c.l.b16 %v3105
      %v3195 = vunpack.c.l.b16 %v3106
      %v3196 = vunpack.c.l.b16 %v3107
      %v3197 = vunpack.c.l.b16 %v3108
      %v3198 = vunpack.c.l.b16 %v3109
      %v3199 = vunpack.c.l.b16 %v3110
      %v3200 = vunpack.c.l.b16 %v3111
      %v3201 = vunpack.c.l.b16 %v3112
      %v3202 = vunpack.c.l.b16 %v3113
      %v3203 = vunpack.c.l.b16 %v3114
      %v3204 = vunpack.c.l.b16 %v3115
      %v3205 = vunpack.c.l.b16 %v3116
      %v3206 = vunpack.c.l.b16 %v3117
      %v3207 = vunpack.c.l.b16 %v3118
      %v3208 = vpack.c.b16 %v3168, %v3167
      %v3209 = vpack.c.b16 %v3170, %v3169
      %v3210 = vpack.c.b16 %v3172, %v3171
      %v3211 = vpack.c.b16 %v3174, %v3173
      %v3212 = vpack.c.b16 %v3176, %v3175
      %v3213 = vpack.c.b16 %v3178, %v3177
      %v3214 = vpack.c.b16 %v3180, %v3179
      %v3215 = vpack.c.b16 %v3182, %v3181
      %v3216 = vpack.c.b16 %v3184, %v3183
      %v3217 = vpack.c.b16 %v3186, %v3185
      %v3218 = vpack.c.b16 %v3188, %v3187
      %v3219 = vpack.c.b16 %v3190, %v3189
      %v3220 = vpack.c.b16 %v3192, %v3191
      %v3221 = vpack.c.b16 %v3194, %v3193
      %v3222 = vpack.c.b16 %v3196, %v3195
      %v3223 = vpack.c.b16 %v3198, %v3197
      %v3224 = vpack.c.b16 %v3200, %v3199
      %v3225 = vpack.c.b16 %v3202, %v3201
      %v3226 = vpack.c.b16 %v3204, %v3203
      %v3227 = vpack.c.b16 %v3206, %v3205
      %v3228 = vpack.c.b16 %v3207, %v3207
      %vm3249 = vcmask 556032
      %v3251 = vsel %vm3249, %v3032, 0
      %v3254 = vsel %vm3249, %v3035, 0
      %v3257 = vsel %vm3249, %v3038, 0
      %v3260 = vsel %vm3249, %v3041, 0
      %v3263 = vsel %vm3249, %v3044, 0
      %v3266 = vsel %vm3249, %v3047, 0
      %v3269 = vsel %vm3249, %v3050, 0
      %v3272 = vsel %vm3249, %v3053, 0
      %v3275 = vsel %vm3249, %v3056, 0
      %v3278 = vsel %vm3249, %v3059, 0
      %v3281 = vsel %vm3249, %v3062, 0
      %v3284 = vsel %vm3249, %v3065, 0
      %v3287 = vsel %vm3249, %v3068, 0
      %v3290 = vsel %vm3249, %v3071, 0
      %v3293 = vsel %vm3249, %v3074, 0
      %v3296 = vsel %vm3249, %v3077, 0
      %vm3298 = vcmask 1041408
      %v3300 = vsel %vm3298, %v3228, 0
      %3302 = vmatprep.subr.bf16.mxu0 0
      %3303 = vmatpush1.bf16.msra.mxu0 %v3208
      %3304 = vmatprep.subr.bf16.mxu0 0
      %3305 = vmatpush1.bf16.msra.mxu0 %v3209
      %3306 = vmatprep.subr.bf16.mxu0 0
      %3307 = vmatpush1.bf16.msra.mxu0 %v3210
      %3308 = vmatprep.subr.bf16.mxu0 0
      %3309 = vmatpush1.bf16.msra.mxu0 %v3211
      %3310 = vmatprep.subr.bf16.mxu0 0
      %3311 = vmatpush1.bf16.msra.mxu0 %v3212
      %3312 = vmatprep.subr.bf16.mxu0 0
      %3313 = vmatpush1.bf16.msra.mxu0 %v3213
      %3314 = vmatprep.subr.bf16.mxu0 0
      %3315 = vmatpush1.bf16.msra.mxu0 %v3214
      %3316 = vmatprep.subr.bf16.mxu0 0
      %3317 = vmatpush1.bf16.msra.mxu0 %v3215
      %3318 = vmatprep.subr.bf16.mxu0 0
      %3319 = vmatpush1.bf16.msra.mxu0 %v3216
      %3320 = vmatprep.subr.bf16.mxu0 0
      %3321 = vmatpush1.bf16.msra.mxu0 %v3217
      %3322 = vmatprep.subr.bf16.mxu0 0
      %3323 = vmatpush1.bf16.msra.mxu0 %v3218
      %3324 = vmatprep.subr.bf16.mxu0 0
      %3325 = vmatpush1.bf16.msra.mxu0 %v3219
      %3326 = vmatprep.subr.bf16.mxu0 0
      %3327 = vmatpush1.bf16.msra.mxu0 %v3220
      %3328 = vmatprep.subr.bf16.mxu0 0
      %3329 = vmatpush1.bf16.msra.mxu0 %v3221
      %3330 = vmatprep.subr.bf16.mxu0 0
      %3331 = vmatpush1.bf16.msra.mxu0 %v3222
      %3332 = vmatprep.subr.bf16.mxu0 0
      %3333 = vmatpush1.bf16.msra.mxu0 %v3223
      %3334 = vmatprep.mubr.bf16.mxu0 %v3031
      %3335 = vmatmul.mubr.bf16.gmra.mrb[0].mxu0 %v3030
      %v3336 = vpop.f32.mrb[0].mxu0
      %v3337 = vadd.f32 %v3124, %v3336
      %v3338 = vpop.f32.mrb[0].mxu0
      %v3339 = vpop.f32.mrb[0].mxu0
      %v3340 = vadd.f32 %v3124, %v3339
      %v3341 = vpop.f32.mrb[0].mxu0
      %3342 = vmatprep.mubr.bf16.mxu0 %v3034
      %3343 = vmatmul.mubr.bf16.gmra.mrb[0].mxu0 %v3033
      %v3344 = vpop.f32.mrb[0].mxu0
      %v3345 = vadd.f32 %v3124, %v3344
      %v3346 = vpop.f32.mrb[0].mxu0
      %v3347 = vpop.f32.mrb[0].mxu0
      %v3348 = vadd.f32 %v3124, %v3347
      %v3349 = vpop.f32.mrb[0].mxu0
      %3350 = vmatprep.mubr.bf16.mxu0 %v3037
      %3351 = vmatmul.mubr.bf16.gmra.mrb[0].mxu0 %v3036
      %v3352 = vpop.f32.mrb[0].mxu0
      %v3353 = vadd.f32 %v3124, %v3352
      %v3354 = vpop.f32.mrb[0].mxu0
      %v3355 = vpop.f32.mrb[0].mxu0
      %v3356 = vadd.f32 %v3124, %v3355
      %v3357 = vpop.f32.mrb[0].mxu0
      %3358 = vmatprep.mubr.bf16.mxu0 %v3040
      %3359 = vmatmul.mubr.bf16.gmra.mrb[0].mxu0 %v3039
      %v3360 = vpop.f32.mrb[0].mxu0
      %v3361 = vadd.f32 %v3124, %v3360
      %v3362 = vpop.f32.mrb[0].mxu0
      %v3363 = vpop.f32.mrb[0].mxu0
      %v3364 = vadd.f32 %v3124, %v3363
      %v3365 = vpop.f32.mrb[0].mxu0
      %3366 = vmatprep.mubr.bf16.mxu0 %v3043
      %3367 = vmatmul.mubr.bf16.gmra.mrb[0].mxu0 %v3042
      %v3368 = vpop.f32.mrb[0].mxu0
      %v3369 = vadd.f32 %v3124, %v3368
      %v3370 = vpop.f32.mrb[0].mxu0
      %v3371 = vpop.f32.mrb[0].mxu0
      %v3372 = vadd.f32 %v3124, %v3371
      %v3373 = vpop.f32.mrb[0].mxu0
      %3374 = vmatprep.mubr.bf16.mxu0 %v3046
      %3375 = vmatmul.mubr.bf16.gmra.mrb[0].mxu0 %v3045
      %v3376 = vpop.f32.mrb[0].mxu0
      %v3377 = vadd.f32 %v3124, %v3376
      %v3378 = vpop.f32.mrb[0].mxu0
      %v3379 = vpop.f32.mrb[0].mxu0
      %v3380 = vadd.f32 %v3124, %v3379
      %v3381 = vpop.f32.mrb[0].mxu0
      %3382 = vmatprep.mubr.bf16.mxu0 %v3049
      %3383 = vmatmul.mubr.bf16.gmra.mrb[0].mxu0 %v3048
      %v3384 = vpop.f32.mrb[0].mxu0
      %v3385 = vadd.f32 %v3124, %v3384
      %v3386 = vpop.f32.mrb[0].mxu0
      %v3387 = vpop.f32.mrb[0].mxu0
      %v3388 = vadd.f32 %v3124, %v3387
      %v3389 = vpop.f32.mrb[0].mxu0
      %3390 = vmatprep.mubr.bf16.mxu0 %v3052
      %3391 = vmatmul.mubr.bf16.gmra.mrb[0].mxu0 %v3051
      %v3392 = vpop.f32.mrb[0].mxu0
      %v3393 = vadd.f32 %v3124, %v3392
      %v3394 = vpop.f32.mrb[0].mxu0
      %v3395 = vpop.f32.mrb[0].mxu0
      %v3396 = vadd.f32 %v3124, %v3395
      %v3397 = vpop.f32.mrb[0].mxu0
      %3398 = vmatprep.mubr.bf16.mxu0 %v3055
      %3399 = vmatmul.mubr.bf16.gmra.mrb[0].mxu0 %v3054
      %v3400 = vpop.f32.mrb[0].mxu0
      %v3401 = vadd.f32 %v3124, %v3400
      %v3402 = vpop.f32.mrb[0].mxu0
      %v3403 = vpop.f32.mrb[0].mxu0
      %v3404 = vadd.f32 %v3124, %v3403
      %v3405 = vpop.f32.mrb[0].mxu0
      %3406 = vmatprep.mubr.bf16.mxu0 %v3058
      %3407 = vmatmul.mubr.bf16.gmra.mrb[0].mxu0 %v3057
      %v3408 = vpop.f32.mrb[0].mxu0
      %v3409 = vadd.f32 %v3124, %v3408
      %v3410 = vpop.f32.mrb[0].mxu0
      %v3411 = vpop.f32.mrb[0].mxu0
      %v3412 = vadd.f32 %v3124, %v3411
      %v3413 = vpop.f32.mrb[0].mxu0
      %3414 = vmatprep.mubr.bf16.mxu0 %v3061
      %3415 = vmatmul.mubr.bf16.gmra.mrb[0].mxu0 %v3060
      %v3416 = vpop.f32.mrb[0].mxu0
      %v3417 = vadd.f32 %v3124, %v3416
      %v3418 = vpop.f32.mrb[0].mxu0
      %v3419 = vpop.f32.mrb[0].mxu0
      %v3420 = vadd.f32 %v3124, %v3419
      %v3421 = vpop.f32.mrb[0].mxu0
      %3422 = vmatprep.mubr.bf16.mxu0 %v3064
      %3423 = vmatmul.mubr.bf16.gmra.mrb[0].mxu0 %v3063
      %v3424 = vpop.f32.mrb[0].mxu0
      %v3425 = vadd.f32 %v3124, %v3424
      %v3426 = vpop.f32.mrb[0].mxu0
      %v3427 = vpop.f32.mrb[0].mxu0
      %v3428 = vadd.f32 %v3124, %v3427
      %v3429 = vpop.f32.mrb[0].mxu0
      %3430 = vmatprep.mubr.bf16.mxu0 %v3067
      %3431 = vmatmul.mubr.bf16.gmra.mrb[0].mxu0 %v3066
      %v3432 = vpop.f32.mrb[0].mxu0
      %v3433 = vadd.f32 %v3124, %v3432
      %v3434 = vpop.f32.mrb[0].mxu0
      %v3435 = vpop.f32.mrb[0].mxu0
      %v3436 = vadd.f32 %v3124, %v3435
      %v3437 = vpop.f32.mrb[0].mxu0
      %3438 = vmatprep.mubr.bf16.mxu0 %v3070
      %3439 = vmatmul.mubr.bf16.gmra.mrb[0].mxu0 %v3069
      %v3440 = vpop.f32.mrb[0].mxu0
      %v3441 = vadd.f32 %v3124, %v3440
      %v3442 = vpop.f32.mrb[0].mxu0
      %v3443 = vpop.f32.mrb[0].mxu0
      %v3444 = vadd.f32 %v3124, %v3443
      %v3445 = vpop.f32.mrb[0].mxu0
      %3446 = vmatprep.mubr.bf16.mxu0 %v3073
      %3447 = vmatmul.mubr.bf16.gmra.mrb[0].mxu0 %v3072
      %v3448 = vpop.f32.mrb[0].mxu0
      %v3449 = vadd.f32 %v3124, %v3448
      %v3450 = vpop.f32.mrb[0].mxu0
      %v3451 = vpop.f32.mrb[0].mxu0
      %v3452 = vadd.f32 %v3124, %v3451
      %v3453 = vpop.f32.mrb[0].mxu0
      %3454 = vmatprep.mubr.bf16.mxu0 %v3076
      %3455 = vmatmul.mubr.bf16.gmra.mrb[0].mxu0 %v3075
      %v3456 = vpop.f32.mrb[0].mxu0
      %v3457 = vadd.f32 %v3124, %v3456
      %v3458 = vpop.f32.mrb[0].mxu0
      %v3459 = vpop.f32.mrb[0].mxu0
      %v3460 = vadd.f32 %v3124, %v3459
      %v3461 = vpop.f32.mrb[0].mxu0
      %3462 = vdwg.mxu0
      %3463 = vmatprep.subr.bf16.mxu0 0
      %3464 = vmatpush1.bf16.msra.mxu0 %v3224
      %3465 = vmatprep.subr.bf16.mxu0 0
      %3466 = vmatpush1.bf16.msra.mxu0 %v3225
      %3467 = vmatprep.subr.bf16.mxu0 0
      %3468 = vmatpush1.bf16.msra.mxu0 %v3226
      %3469 = vmatprep.subr.bf16.mxu0 0
      %3470 = vmatpush1.bf16.msra.mxu0 %v3227
      %3471 = vmatprep.subr.bf16.mxu0 0
      %3472 = vmatpush1.bf16.msra.mxu0 %v3300
      %3473 = vmatprep.subr.bf16.mxu0 0
      %3474 = vmatpush1.bf16.msra.mxu0 0
      %3475 = vmatprep.subr.bf16.mxu0 0
      %3476 = vmatpush1.bf16.msra.mxu0 0
      %3477 = vmatprep.subr.bf16.mxu0 0
      %3478 = vmatpush1.bf16.msra.mxu0 0
      %3479 = vmatprep.subr.bf16.mxu0 0
      %3480 = vmatpush1.bf16.msra.mxu0 0
      %3481 = vmatprep.subr.bf16.mxu0 0
      %3482 = vmatpush1.bf16.msra.mxu0 0
      %3483 = vmatprep.subr.bf16.mxu0 0
      %3484 = vmatpush1.bf16.msra.mxu0 0
      %3485 = vmatprep.subr.bf16.mxu0 0
      %3486 = vmatpush1.bf16.msra.mxu0 0
      %3487 = vmatprep.subr.bf16.mxu0 0
      %3488 = vmatpush1.bf16.msra.mxu0 0
      %3489 = vmatprep.subr.bf16.mxu0 0
      %3490 = vmatpush1.bf16.msra.mxu0 0
      %3491 = vmatprep.subr.bf16.mxu0 0
      %3492 = vmatpush1.bf16.msra.mxu0 0
      %3493 = vmatprep.subr.bf16.mxu0 0
      %3494 = vmatpush1.bf16.msra.mxu0 0
      %3495 = vmatprep.mubr.bf16.mxu0 0
      %3496 = vmatmul.mubr.bf16.gmra.mrb[0].mxu0 %v3251
      %v3497 = vpop.f32.mrb[0].mxu0
      %v3498 = vadd.f32 %v3337, %v3497
      %v3499 = vpop.f32.mrb[0].mxu0
      %v3500 = vpop.f32.mrb[0].mxu0
      %v3501 = vadd.f32 %v3340, %v3500
      %v3502 = vpop.f32.mrb[0].mxu0
      %3503 = vmatprep.mubr.bf16.mxu0 0
      %3504 = vmatmul.mubr.bf16.gmra.mrb[0].mxu0 %v3254
      %v3505 = vpop.f32.mrb[0].mxu0
      %v3506 = vadd.f32 %v3345, %v3505
      %v3507 = vpop.f32.mrb[0].mxu0
      %v3508 = vpop.f32.mrb[0].mxu0
      %v3509 = vadd.f32 %v3348, %v3508
      %v3510 = vpop.f32.mrb[0].mxu0
      %3511 = vmatprep.mubr.bf16.mxu0 0
      %3512 = vmatmul.mubr.bf16.gmra.mrb[0].mxu0 %v3257
      %v3513 = vpop.f32.mrb[0].mxu0
      %v3514 = vadd.f32 %v3353, %v3513
      %v3515 = vpop.f32.mrb[0].mxu0
      %v3516 = vpop.f32.mrb[0].mxu0
      %v3517 = vadd.f32 %v3356, %v3516
      %v3518 = vpop.f32.mrb[0].mxu0
      %3519 = vmatprep.mubr.bf16.mxu0 0
      %3520 = vmatmul.mubr.bf16.gmra.mrb[0].mxu0 %v3260
      %v3521 = vpop.f32.mrb[0].mxu0
      %v3522 = vadd.f32 %v3361, %v3521
      %v3523 = vpop.f32.mrb[0].mxu0
      %v3524 = vpop.f32.mrb[0].mxu0
      %v3525 = vadd.f32 %v3364, %v3524
      %v3526 = vpop.f32.mrb[0].mxu0
      %3527 = vmatprep.mubr.bf16.mxu0 0
      %3528 = vmatmul.mubr.bf16.gmra.mrb[0].mxu0 %v3263
      %v3529 = vpop.f32.mrb[0].mxu0
      %v3530 = vadd.f32 %v3369, %v3529
      %v3531 = vpop.f32.mrb[0].mxu0
      %v3532 = vpop.f32.mrb[0].mxu0
      %v3533 = vadd.f32 %v3372, %v3532
      %v3534 = vpop.f32.mrb[0].mxu0
      %3535 = vmatprep.mubr.bf16.mxu0 0
      %3536 = vmatmul.mubr.bf16.gmra.mrb[0].mxu0 %v3266
      %v3537 = vpop.f32.mrb[0].mxu0
      %v3538 = vadd.f32 %v3377, %v3537
      %v3539 = vpop.f32.mrb[0].mxu0
      %v3540 = vpop.f32.mrb[0].mxu0
      %v3541 = vadd.f32 %v3380, %v3540
      %v3542 = vpop.f32.mrb[0].mxu0
      %3543 = vmatprep.mubr.bf16.mxu0 0
      %3544 = vmatmul.mubr.bf16.gmra.mrb[0].mxu0 %v3269
      %v3545 = vpop.f32.mrb[0].mxu0
      %v3546 = vadd.f32 %v3385, %v3545
      %v3547 = vpop.f32.mrb[0].mxu0
      %v3548 = vpop.f32.mrb[0].mxu0
      %v3549 = vadd.f32 %v3388, %v3548
      %v3550 = vpop.f32.mrb[0].mxu0
      %3551 = vmatprep.mubr.bf16.mxu0 0
      %3552 = vmatmul.mubr.bf16.gmra.mrb[0].mxu0 %v3272
      %v3553 = vpop.f32.mrb[0].mxu0
      %v3554 = vadd.f32 %v3393, %v3553
      %v3555 = vpop.f32.mrb[0].mxu0
      %v3556 = vpop.f32.mrb[0].mxu0
      %v3557 = vadd.f32 %v3396, %v3556
      %v3558 = vpop.f32.mrb[0].mxu0
      %3559 = vmatprep.mubr.bf16.mxu0 0
      %3560 = vmatmul.mubr.bf16.gmra.mrb[0].mxu0 %v3275
      %v3561 = vpop.f32.mrb[0].mxu0
      %v3562 = vadd.f32 %v3401, %v3561
      %v3563 = vpop.f32.mrb[0].mxu0
      %v3564 = vpop.f32.mrb[0].mxu0
      %v3565 = vadd.f32 %v3404, %v3564
      %v3566 = vpop.f32.mrb[0].mxu0
      %3567 = vmatprep.mubr.bf16.mxu0 0
      %3568 = vmatmul.mubr.bf16.gmra.mrb[0].mxu0 %v3278
      %v3569 = vpop.f32.mrb[0].mxu0
      %v3570 = vadd.f32 %v3409, %v3569
      %v3571 = vpop.f32.mrb[0].mxu0
      %v3572 = vpop.f32.mrb[0].mxu0
      %v3573 = vadd.f32 %v3412, %v3572
      %v3574 = vpop.f32.mrb[0].mxu0
      %3575 = vmatprep.mubr.bf16.mxu0 0
      %3576 = vmatmul.mubr.bf16.gmra.mrb[0].mxu0 %v3281
      %v3577 = vpop.f32.mrb[0].mxu0
      %v3578 = vadd.f32 %v3417, %v3577
      %v3579 = vpop.f32.mrb[0].mxu0
      %v3580 = vpop.f32.mrb[0].mxu0
      %v3581 = vadd.f32 %v3420, %v3580
      %v3582 = vpop.f32.mrb[0].mxu0
      %3583 = vmatprep.mubr.bf16.mxu0 0
      %3584 = vmatmul.mubr.bf16.gmra.mrb[0].mxu0 %v3284
      %v3585 = vpop.f32.mrb[0].mxu0
      %v3586 = vadd.f32 %v3425, %v3585
      %v3587 = vpop.f32.mrb[0].mxu0
      %v3588 = vpop.f32.mrb[0].mxu0
      %v3589 = vadd.f32 %v3428, %v3588
      %v3590 = vpop.f32.mrb[0].mxu0
      %3591 = vmatprep.mubr.bf16.mxu0 0
      %3592 = vmatmul.mubr.bf16.gmra.mrb[0].mxu0 %v3287
      %v3593 = vpop.f32.mrb[0].mxu0
      %v3594 = vadd.f32 %v3433, %v3593
      %v3595 = vpop.f32.mrb[0].mxu0
      %v3596 = vpop.f32.mrb[0].mxu0
      %v3597 = vadd.f32 %v3436, %v3596
      %v3598 = vpop.f32.mrb[0].mxu0
      %3599 = vmatprep.mubr.bf16.mxu0 0
      %3600 = vmatmul.mubr.bf16.gmra.mrb[0].mxu0 %v3290
      %v3601 = vpop.f32.mrb[0].mxu0
      %v3602 = vadd.f32 %v3441, %v3601
      %v3603 = vpop.f32.mrb[0].mxu0
      %v3604 = vpop.f32.mrb[0].mxu0
      %v3605 = vadd.f32 %v3444, %v3604
      %v3606 = vpop.f32.mrb[0].mxu0
      %3607 = vmatprep.mubr.bf16.mxu0 0
      %3608 = vmatmul.mubr.bf16.gmra.mrb[0].mxu0 %v3293
      %v3609 = vpop.f32.mrb[0].mxu0
      %v3610 = vadd.f32 %v3449, %v3609
      %v3611 = vpop.f32.mrb[0].mxu0
      %v3612 = vpop.f32.mrb[0].mxu0
      %v3613 = vadd.f32 %v3452, %v3612
      %v3614 = vpop.f32.mrb[0].mxu0
      %3615 = vmatprep.mubr.bf16.mxu0 0
      %3616 = vmatmul.mubr.bf16.gmra.mrb[0].mxu0 %v3296
      %v3617 = vpop.f32.mrb[0].mxu0
      %v3618 = vadd.f32 %v3457, %v3617
      %v3619 = vpop.f32.mrb[0].mxu0
      %v3620 = vpop.f32.mrb[0].mxu0
      %v3621 = vadd.f32 %v3460, %v3620
      %v3622 = vpop.f32.mrb[0].mxu0
      %3623 = vdwg.mxu0
      %v3624 = vxor.u32 %v3498, 2147483648
      %v3625 = vxor.u32 %v3501, 2147483648
      %v3626 = vxor.u32 %v3506, 2147483648
      %v3627 = vxor.u32 %v3509, 2147483648
      %v3628 = vxor.u32 %v3514, 2147483648
      %v3629 = vxor.u32 %v3517, 2147483648
      %v3630 = vxor.u32 %v3522, 2147483648
      %v3631 = vxor.u32 %v3525, 2147483648
      %v3632 = vxor.u32 %v3530, 2147483648
      %v3633 = vxor.u32 %v3533, 2147483648
      %v3634 = vxor.u32 %v3538, 2147483648
      %v3635 = vxor.u32 %v3541, 2147483648
      %v3636 = vxor.u32 %v3546, 2147483648
      %v3637 = vxor.u32 %v3549, 2147483648
      %v3638 = vxor.u32 %v3554, 2147483648
      %v3639 = vxor.u32 %v3557, 2147483648
      %v3640 = vxor.u32 %v3562, 2147483648
      %v3641 = vxor.u32 %v3565, 2147483648
      %v3642 = vxor.u32 %v3570, 2147483648
      %v3643 = vxor.u32 %v3573, 2147483648
      %v3644 = vxor.u32 %v3578, 2147483648
      %v3645 = vxor.u32 %v3581, 2147483648
      %v3646 = vxor.u32 %v3586, 2147483648
      %v3647 = vxor.u32 %v3589, 2147483648
      %v3648 = vxor.u32 %v3594, 2147483648
      %v3649 = vxor.u32 %v3597, 2147483648
      %v3650 = vxor.u32 %v3602, 2147483648
      %v3651 = vxor.u32 %v3605, 2147483648
      %v3652 = vxor.u32 %v3610, 2147483648
      %v3653 = vxor.u32 %v3613, 2147483648
      %v3654 = vxor.u32 %v3618, 2147483648
      %v3655 = vxor.u32 %v3621, 2147483648
      %v3656 = vmul.f32 %v3624, 1.442695
      %v3657 = vpow.pop %v3656
      %v3658 = vmul.f32 %v3625, 1.442695
      %v3659 = vpow.pop %v3658
      %v3660 = vmul.f32 %v3626, 1.442695
      %v3661 = vpow.pop %v3660
      %v3662 = vmul.f32 %v3627, 1.442695
      %v3663 = vpow.pop %v3662
      %v3664 = vmul.f32 %v3628, 1.442695
      %v3665 = vpow.pop %v3664
      %v3666 = vmul.f32 %v3629, 1.442695
      %v3667 = vpow.pop %v3666
      %v3668 = vmul.f32 %v3630, 1.442695
      %v3669 = vpow.pop %v3668
      %v3670 = vmul.f32 %v3631, 1.442695
      %v3671 = vpow.pop %v3670
      %v3672 = vmul.f32 %v3632, 1.442695
      %v3673 = vpow.pop %v3672
      %v3674 = vmul.f32 %v3633, 1.442695
      %v3675 = vpow.pop %v3674
      %v3676 = vmul.f32 %v3634, 1.442695
      %v3677 = vpow.pop %v3676
      %v3678 = vmul.f32 %v3635, 1.442695
      %v3679 = vpow.pop %v3678
      %v3680 = vmul.f32 %v3636, 1.442695
      %v3681 = vpow.pop %v3680
      %v3682 = vmul.f32 %v3637, 1.442695
      %v3683 = vpow.pop %v3682
      %v3684 = vmul.f32 %v3638, 1.442695
      %v3685 = vpow.pop %v3684
      %v3686 = vmul.f32 %v3639, 1.442695
      %v3687 = vpow.pop %v3686
      %v3688 = vmul.f32 %v3640, 1.442695
      %v3689 = vpow.pop %v3688
      %v3690 = vmul.f32 %v3641, 1.442695
      %v3691 = vpow.pop %v3690
      %v3692 = vmul.f32 %v3642, 1.442695
      %v3693 = vpow.pop %v3692
      %v3694 = vmul.f32 %v3643, 1.442695
      %v3695 = vpow.pop %v3694
      %v3696 = vmul.f32 %v3644, 1.442695
      %v3697 = vpow.pop %v3696
      %v3698 = vmul.f32 %v3645, 1.442695
      %v3699 = vpow.pop %v3698
      %v3700 = vmul.f32 %v3646, 1.442695
      %v3701 = vpow.pop %v3700
      %v3702 = vmul.f32 %v3647, 1.442695
      %v3703 = vpow.pop %v3702
      %v3704 = vmul.f32 %v3648, 1.442695
      %v3705 = vpow.pop %v3704
      %v3706 = vmul.f32 %v3649, 1.442695
      %v3707 = vpow.pop %v3706
      %v3708 = vmul.f32 %v3650, 1.442695
      %v3709 = vpow.pop %v3708
      %v3710 = vmul.f32 %v3651, 1.442695
      %v3711 = vpow.pop %v3710
      %v3712 = vmul.f32 %v3652, 1.442695
      %v3713 = vpow.pop %v3712
      %v3714 = vmul.f32 %v3653, 1.442695
      %v3715 = vpow.pop %v3714
      %v3716 = vmul.f32 %v3654, 1.442695
      %v3717 = vpow.pop %v3716
      %v3718 = vmul.f32 %v3655, 1.442695
      %v3719 = vpow.pop %v3718
      %v3720 = vadd.f32 %v3657, 1.0
      %v3721 = vadd.f32 %v3659, 1.0
      %v3722 = vadd.f32 %v3661, 1.0
      %v3723 = vadd.f32 %v3663, 1.0
      %v3724 = vadd.f32 %v3665, 1.0
      %v3725 = vadd.f32 %v3667, 1.0
      %v3726 = vadd.f32 %v3669, 1.0
      %v3727 = vadd.f32 %v3671, 1.0
      %v3728 = vadd.f32 %v3673, 1.0
      %v3729 = vadd.f32 %v3675, 1.0
      %v3730 = vadd.f32 %v3677, 1.0
      %v3731 = vadd.f32 %v3679, 1.0
      %v3732 = vadd.f32 %v3681, 1.0
      %v3733 = vadd.f32 %v3683, 1.0
      %v3734 = vadd.f32 %v3685, 1.0
      %v3735 = vadd.f32 %v3687, 1.0
      %v3736 = vadd.f32 %v3689, 1.0
      %v3737 = vadd.f32 %v3691, 1.0
      %v3738 = vadd.f32 %v3693, 1.0
      %v3739 = vadd.f32 %v3695, 1.0
      %v3740 = vadd.f32 %v3697, 1.0
      %v3741 = vadd.f32 %v3699, 1.0
      %v3742 = vadd.f32 %v3701, 1.0
      %v3743 = vadd.f32 %v3703, 1.0
      %v3744 = vadd.f32 %v3705, 1.0
      %v3745 = vadd.f32 %v3707, 1.0
      %v3746 = vadd.f32 %v3709, 1.0
      %v3747 = vadd.f32 %v3711, 1.0
      %v3748 = vadd.f32 %v3713, 1.0
      %v3749 = vadd.f32 %v3715, 1.0
      %v3750 = vadd.f32 %v3717, 1.0
      %v3751 = vadd.f32 %v3719, 1.0
      %v3752 = vrcp.pop %v3720
      %v3753 = vmul.f32 1.0, %v3752
      %v3754 = vrcp.pop %v3721
      %v3755 = vmul.f32 1.0, %v3754
      %v3756 = vrcp.pop %v3722
      %v3757 = vmul.f32 1.0, %v3756
      %v3758 = vrcp.pop %v3723
      %v3759 = vmul.f32 1.0, %v3758
      %v3760 = vrcp.pop %v3724
      %v3761 = vmul.f32 1.0, %v3760
      %v3762 = vrcp.pop %v3725
      %v3763 = vmul.f32 1.0, %v3762
      %v3764 = vrcp.pop %v3726
      %v3765 = vmul.f32 1.0, %v3764
      %v3766 = vrcp.pop %v3727
      %v3767 = vmul.f32 1.0, %v3766
      %v3768 = vrcp.pop %v3728
      %v3769 = vmul.f32 1.0, %v3768
      %v3770 = vrcp.pop %v3729
      %v3771 = vmul.f32 1.0, %v3770
      %v3772 = vrcp.pop %v3730
      %v3773 = vmul.f32 1.0, %v3772
      %v3774 = vrcp.pop %v3731
      %v3775 = vmul.f32 1.0, %v3774
      %v3776 = vrcp.pop %v3732
      %v3777 = vmul.f32 1.0, %v3776
      %v3778 = vrcp.pop %v3733
      %v3779 = vmul.f32 1.0, %v3778
      %v3780 = vrcp.pop %v3734
      %v3781 = vmul.f32 1.0, %v3780
      %v3782 = vrcp.pop %v3735
      %v3783 = vmul.f32 1.0, %v3782
      %v3784 = vrcp.pop %v3736
      %v3785 = vmul.f32 1.0, %v3784
      %v3786 = vrcp.pop %v3737
      %v3787 = vmul.f32 1.0, %v3786
      %v3788 = vrcp.pop %v3738
      %v3789 = vmul.f32 1.0, %v3788
      %v3790 = vrcp.pop %v3739
      %v3791 = vmul.f32 1.0, %v3790
      %v3792 = vrcp.pop %v3740
      %v3793 = vmul.f32 1.0, %v3792
      %v3794 = vrcp.pop %v3741
      %v3795 = vmul.f32 1.0, %v3794
      %v3796 = vrcp.pop %v3742
      %v3797 = vmul.f32 1.0, %v3796
      %v3798 = vrcp.pop %v3743
      %v3799 = vmul.f32 1.0, %v3798
      %v3800 = vrcp.pop %v3744
      %v3801 = vmul.f32 1.0, %v3800
      %v3802 = vrcp.pop %v3745
      %v3803 = vmul.f32 1.0, %v3802
      %v3804 = vrcp.pop %v3746
      %v3805 = vmul.f32 1.0, %v3804
      %v3806 = vrcp.pop %v3747
      %v3807 = vmul.f32 1.0, %v3806
      %v3808 = vrcp.pop %v3748
      %v3809 = vmul.f32 1.0, %v3808
      %v3810 = vrcp.pop %v3749
      %v3811 = vmul.f32 1.0, %v3810
      %v3812 = vrcp.pop %v3750
      %v3813 = vmul.f32 1.0, %v3812
      %v3814 = vrcp.pop %v3751
      %v3815 = vmul.f32 1.0, %v3814
      %v3816 = vtanh.pop %v3498
      %v3817 = vtanh.pop %v3501
      %v3818 = vtanh.pop %v3506
      %v3819 = vtanh.pop %v3509
      %v3820 = vtanh.pop %v3514
      %v3821 = vtanh.pop %v3517
      %v3822 = vtanh.pop %v3522
      %v3823 = vtanh.pop %v3525
      %v3824 = vtanh.pop %v3530
      %v3825 = vtanh.pop %v3533
      %v3826 = vtanh.pop %v3538
      %v3827 = vtanh.pop %v3541
      %v3828 = vtanh.pop %v3546
      %v3829 = vtanh.pop %v3549
      %v3830 = vtanh.pop %v3554
      %v3831 = vtanh.pop %v3557
      %v3832 = vtanh.pop %v3562
      %v3833 = vtanh.pop %v3565
      %v3834 = vtanh.pop %v3570
      %v3835 = vtanh.pop %v3573
      %v3836 = vtanh.pop %v3578
      %v3837 = vtanh.pop %v3581
      %v3838 = vtanh.pop %v3586
      %v3839 = vtanh.pop %v3589
      %v3840 = vtanh.pop %v3594
      %v3841 = vtanh.pop %v3597
      %v3842 = vtanh.pop %v3602
      %v3843 = vtanh.pop %v3605
      %v3844 = vtanh.pop %v3610
      %v3845 = vtanh.pop %v3613
      %v3846 = vtanh.pop %v3618
      %v3847 = vtanh.pop %v3621
      %v3848 = vld [vmem:[%s302] sm:$0xff]
      %v3849 = vld [vmem:[%s302 + $0x8] sm:$0xff]
      %v3850 = vld [vmem:[%s302 + $0x10] sm:$0xff]
      %v3851 = vld [vmem:[%s302 + $0x18] sm:$0xff]
      %v3852 = vld [vmem:[%s302 + $0x20] sm:$0xff]
      %v3853 = vld [vmem:[%s302 + $0x28] sm:$0xff]
      %v3854 = vld [vmem:[%s302 + $0x30] sm:$0xff]
      %v3855 = vld [vmem:[%s302 + $0x38] sm:$0xff]
      %v3856 = vld [vmem:[%s302 + $0x40] sm:$0xff]
      %v3857 = vld [vmem:[%s302 + $0x48] sm:$0xff]
      %v3858 = vld [vmem:[%s302 + $0x50] sm:$0xff]
      %v3859 = vld [vmem:[%s302 + $0x58] sm:$0xff]
      %v3860 = vld [vmem:[%s302 + $0x60] sm:$0xff]
      %v3861 = vld [vmem:[%s302 + $0x68] sm:$0xff]
      %v3862 = vld [vmem:[%s302 + $0x70] sm:$0xff]
      %v3863 = vld [vmem:[%s302 + $0x78] sm:$0xff]
      %v3864 = vld [vmem:[%s302 + $0x80] sm:$0xff]
      %v3865 = vld [vmem:[%s302 + $0x88] sm:$0xff]
      %v3866 = vld [vmem:[%s302 + $0x90] sm:$0xff]
      %v3867 = vld [vmem:[%s302 + $0x98] sm:$0xff]
      %v3868 = vld [vmem:[%s302 + $0xa0] sm:$0xff]
      %v3869 = vld [vmem:[%s302 + $0xa8] sm:$0xff]
      %v3870 = vld [vmem:[%s302 + $0xb0] sm:$0xff]
      %v3871 = vld [vmem:[%s302 + $0xb8] sm:$0xff]
      %v3872 = vld [vmem:[%s302 + $0xc0] sm:$0xff]
      %v3873 = vld [vmem:[%s302 + $0xc8] sm:$0xff]
      %v3874 = vld [vmem:[%s302 + $0xd0] sm:$0xff]
      %v3875 = vld [vmem:[%s302 + $0xd8] sm:$0xff]
      %v3876 = vld [vmem:[%s302 + $0xe0] sm:$0xff]
      %v3877 = vld [vmem:[%s302 + $0xe8] sm:$0xff]
      %v3878 = vld [vmem:[%s302 + $0xf0] sm:$0xff]
      %v3879 = vld [vmem:[%s302 + $0xf8] sm:$0xff]
      %3912 = vrot.lane.b32.xlu0 %v3848, 32
      %v3913 = vpop.permute.xlu0 %3912
      %3914 = vrot.lane.b32.xlu0 %v3849, 32
      %v3915 = vpop.permute.xlu0 %3914
      %3916 = vrot.lane.b32.xlu0 %v3850, 32
      %v3917 = vpop.permute.xlu0 %3916
      %3918 = vrot.lane.b32.xlu0 %v3851, 32
      %v3919 = vpop.permute.xlu0 %3918
      %3920 = vrot.lane.b32.xlu0 %v3852, 32
      %v3921 = vpop.permute.xlu0 %3920
      %3922 = vrot.lane.b32.xlu0 %v3853, 32
      %v3923 = vpop.permute.xlu0 %3922
      %3924 = vrot.lane.b32.xlu0 %v3854, 32
      %v3925 = vpop.permute.xlu0 %3924
      %3926 = vrot.lane.b32.xlu0 %v3855, 32
      %v3927 = vpop.permute.xlu0 %3926
      %3928 = vrot.lane.b32.xlu0 %v3856, 32
      %v3929 = vpop.permute.xlu0 %3928
      %3930 = vrot.lane.b32.xlu0 %v3857, 32
      %v3931 = vpop.permute.xlu0 %3930
      %3932 = vrot.lane.b32.xlu0 %v3858, 32
      %v3933 = vpop.permute.xlu0 %3932
      %3934 = vrot.lane.b32.xlu0 %v3859, 32
      %v3935 = vpop.permute.xlu0 %3934
      %3936 = vrot.lane.b32.xlu0 %v3860, 32
      %v3937 = vpop.permute.xlu0 %3936
      %3938 = vrot.lane.b32.xlu0 %v3861, 32
      %v3939 = vpop.permute.xlu0 %3938
      %3940 = vrot.lane.b32.xlu0 %v3862, 32
      %v3941 = vpop.permute.xlu0 %3940
      %3942 = vrot.lane.b32.xlu0 %v3863, 32
      %v3943 = vpop.permute.xlu0 %3942
      %3944 = vrot.lane.b32.xlu0 %v3864, 32
      %v3945 = vpop.permute.xlu0 %3944
      %3946 = vrot.lane.b32.xlu0 %v3865, 32
      %v3947 = vpop.permute.xlu0 %3946
      %3948 = vrot.lane.b32.xlu0 %v3866, 32
      %v3949 = vpop.permute.xlu0 %3948
      %3950 = vrot.lane.b32.xlu0 %v3867, 32
      %v3951 = vpop.permute.xlu0 %3950
      %3952 = vrot.lane.b32.xlu0 %v3868, 32
      %v3953 = vpop.permute.xlu0 %3952
      %3954 = vrot.lane.b32.xlu0 %v3869, 32
      %v3955 = vpop.permute.xlu0 %3954
      %3956 = vrot.lane.b32.xlu0 %v3870, 32
      %v3957 = vpop.permute.xlu0 %3956
      %3958 = vrot.lane.b32.xlu0 %v3871, 32
      %v3959 = vpop.permute.xlu0 %3958
      %3960 = vrot.lane.b32.xlu0 %v3872, 32
      %v3961 = vpop.permute.xlu0 %3960
      %3962 = vrot.lane.b32.xlu0 %v3873, 32
      %v3963 = vpop.permute.xlu0 %3962
      %3964 = vrot.lane.b32.xlu0 %v3874, 32
      %v3965 = vpop.permute.xlu0 %3964
      %3966 = vrot.lane.b32.xlu0 %v3875, 32
      %v3967 = vpop.permute.xlu0 %3966
      %3968 = vrot.lane.b32.xlu0 %v3876, 32
      %v3969 = vpop.permute.xlu0 %3968
      %3970 = vrot.lane.b32.xlu0 %v3877, 32
      %v3971 = vpop.permute.xlu0 %3970
      %3972 = vrot.lane.b32.xlu0 %v3878, 32
      %v3973 = vpop.permute.xlu0 %3972
      %3974 = vrot.lane.b32.xlu0 %v3879, 32
      %v3975 = vpop.permute.xlu0 %3974
      %v4008 = vmul.f32 %v3753, %v3913
      %v4009 = vmul.f32 %v3755, %v3915
      %v4010 = vmul.f32 %v3757, %v3917
      %v4011 = vmul.f32 %v3759, %v3919
      %v4012 = vmul.f32 %v3761, %v3921
      %v4013 = vmul.f32 %v3763, %v3923
      %v4014 = vmul.f32 %v3765, %v3925
      %v4015 = vmul.f32 %v3767, %v3927
      %v4016 = vmul.f32 %v3769, %v3929
      %v4017 = vmul.f32 %v3771, %v3931
      %v4018 = vmul.f32 %v3773, %v3933
      %v4019 = vmul.f32 %v3775, %v3935
      %v4020 = vmul.f32 %v3777, %v3937
      %v4021 = vmul.f32 %v3779, %v3939
      %v4022 = vmul.f32 %v3781, %v3941
      %v4023 = vmul.f32 %v3783, %v3943
      %v4024 = vmul.f32 %v3785, %v3945
      %v4025 = vmul.f32 %v3787, %v3947
      %v4026 = vmul.f32 %v3789, %v3949
      %v4027 = vmul.f32 %v3791, %v3951
      %v4028 = vmul.f32 %v3793, %v3953
      %v4029 = vmul.f32 %v3795, %v3955
      %v4030 = vmul.f32 %v3797, %v3957
      %v4031 = vmul.f32 %v3799, %v3959
      %v4032 = vmul.f32 %v3801, %v3961
      %v4033 = vmul.f32 %v3803, %v3963
      %v4034 = vmul.f32 %v3805, %v3965
      %v4035 = vmul.f32 %v3807, %v3967
      %v4036 = vmul.f32 %v3809, %v3969
      %v4037 = vmul.f32 %v3811, %v3971
      %v4038 = vmul.f32 %v3813, %v3973
      %v4039 = vmul.f32 %v3815, %v3975
      %4072 = vrot.lane.b32.xlu0 %v3816, 32
      %v4073 = vpop.permute.xlu0 %4072
      %4074 = vrot.lane.b32.xlu0 %v3817, 32
      %v4075 = vpop.permute.xlu0 %4074
      %4076 = vrot.lane.b32.xlu0 %v3818, 32
      %v4077 = vpop.permute.xlu0 %4076
      %4078 = vrot.lane.b32.xlu0 %v3819, 32
      %v4079 = vpop.permute.xlu0 %4078
      %4080 = vrot.lane.b32.xlu0 %v3820, 32
      %v4081 = vpop.permute.xlu0 %4080
      %4082 = vrot.lane.b32.xlu0 %v3821, 32
      %v4083 = vpop.permute.xlu0 %4082
      %4084 = vrot.lane.b32.xlu0 %v3822, 32
      %v4085 = vpop.permute.xlu0 %4084
      %4086 = vrot.lane.b32.xlu0 %v3823, 32
      %v4087 = vpop.permute.xlu0 %4086
      %4088 = vrot.lane.b32.xlu0 %v3824, 32
      %v4089 = vpop.permute.xlu0 %4088
      %4090 = vrot.lane.b32.xlu0 %v3825, 32
      %v4091 = vpop.permute.xlu0 %4090
      %4092 = vrot.lane.b32.xlu0 %v3826, 32
      %v4093 = vpop.permute.xlu0 %4092
      %4094 = vrot.lane.b32.xlu0 %v3827, 32
      %v4095 = vpop.permute.xlu0 %4094
      %4096 = vrot.lane.b32.xlu0 %v3828, 32
      %v4097 = vpop.permute.xlu0 %4096
      %4098 = vrot.lane.b32.xlu0 %v3829, 32
      %v4099 = vpop.permute.xlu0 %4098
      %4100 = vrot.lane.b32.xlu0 %v3830, 32
      %v4101 = vpop.permute.xlu0 %4100
      %4102 = vrot.lane.b32.xlu0 %v3831, 32
      %v4103 = vpop.permute.xlu0 %4102
      %4104 = vrot.lane.b32.xlu0 %v3832, 32
      %v4105 = vpop.permute.xlu0 %4104
      %4106 = vrot.lane.b32.xlu0 %v3833, 32
      %v4107 = vpop.permute.xlu0 %4106
      %4108 = vrot.lane.b32.xlu0 %v3834, 32
      %v4109 = vpop.permute.xlu0 %4108
      %4110 = vrot.lane.b32.xlu0 %v3835, 32
      %v4111 = vpop.permute.xlu0 %4110
      %4112 = vrot.lane.b32.xlu0 %v3836, 32
      %v4113 = vpop.permute.xlu0 %4112
      %4114 = vrot.lane.b32.xlu0 %v3837, 32
      %v4115 = vpop.permute.xlu0 %4114
      %4116 = vrot.lane.b32.xlu0 %v3838, 32
      %v4117 = vpop.permute.xlu0 %4116
      %4118 = vrot.lane.b32.xlu0 %v3839, 32
      %v4119 = vpop.permute.xlu0 %4118
      %4120 = vrot.lane.b32.xlu0 %v3840, 32
      %v4121 = vpop.permute.xlu0 %4120
      %4122 = vrot.lane.b32.xlu0 %v3841, 32
      %v4123 = vpop.permute.xlu0 %4122
      %4124 = vrot.lane.b32.xlu0 %v3842, 32
      %v4125 = vpop.permute.xlu0 %4124
      %4126 = vrot.lane.b32.xlu0 %v3843, 32
      %v4127 = vpop.permute.xlu0 %4126
      %4128 = vrot.lane.b32.xlu0 %v3844, 32
      %v4129 = vpop.permute.xlu0 %4128
      %4130 = vrot.lane.b32.xlu0 %v3845, 32
      %v4131 = vpop.permute.xlu0 %4130
      %4132 = vrot.lane.b32.xlu0 %v3846, 32
      %v4133 = vpop.permute.xlu0 %4132
      %4134 = vrot.lane.b32.xlu0 %v3847, 32
      %v4135 = vpop.permute.xlu0 %4134
      %v4168 = vmul.f32 %v3753, %v4073
      %v4169 = vmul.f32 %v3755, %v4075
      %v4170 = vmul.f32 %v3757, %v4077
      %v4171 = vmul.f32 %v3759, %v4079
      %v4172 = vmul.f32 %v3761, %v4081
      %v4173 = vmul.f32 %v3763, %v4083
      %v4174 = vmul.f32 %v3765, %v4085
      %v4175 = vmul.f32 %v3767, %v4087
      %v4176 = vmul.f32 %v3769, %v4089
      %v4177 = vmul.f32 %v3771, %v4091
      %v4178 = vmul.f32 %v3773, %v4093
      %v4179 = vmul.f32 %v3775, %v4095
      %v4180 = vmul.f32 %v3777, %v4097
      %v4181 = vmul.f32 %v3779, %v4099
      %v4182 = vmul.f32 %v3781, %v4101
      %v4183 = vmul.f32 %v3783, %v4103
      %v4184 = vmul.f32 %v3785, %v4105
      %v4185 = vmul.f32 %v3787, %v4107
      %v4186 = vmul.f32 %v3789, %v4109
      %v4187 = vmul.f32 %v3791, %v4111
      %v4188 = vmul.f32 %v3793, %v4113
      %v4189 = vmul.f32 %v3795, %v4115
      %v4190 = vmul.f32 %v3797, %v4117
      %v4191 = vmul.f32 %v3799, %v4119
      %v4192 = vmul.f32 %v3801, %v4121
      %v4193 = vmul.f32 %v3803, %v4123
      %v4194 = vmul.f32 %v3805, %v4125
      %v4195 = vmul.f32 %v3807, %v4127
      %v4196 = vmul.f32 %v3809, %v4129
      %v4197 = vmul.f32 %v3811, %v4131
      %v4198 = vmul.f32 %v3813, %v4133
      %v4199 = vmul.f32 %v3815, %v4135
      %4232 = vrot.lane.b32.xlu0 %v4168, 32
      %v4233 = vpop.permute.xlu0 %4232
      %4234 = vrot.lane.b32.xlu0 %v4169, 32
      %v4235 = vpop.permute.xlu0 %4234
      %4236 = vrot.lane.b32.xlu0 %v4170, 32
      %v4237 = vpop.permute.xlu0 %4236
      %4238 = vrot.lane.b32.xlu0 %v4171, 32
      %v4239 = vpop.permute.xlu0 %4238
      %4240 = vrot.lane.b32.xlu0 %v4172, 32
      %v4241 = vpop.permute.xlu0 %4240
      %4242 = vrot.lane.b32.xlu0 %v4173, 32
      %v4243 = vpop.permute.xlu0 %4242
      %4244 = vrot.lane.b32.xlu0 %v4174, 32
      %v4245 = vpop.permute.xlu0 %4244
      %4246 = vrot.lane.b32.xlu0 %v4175, 32
      %v4247 = vpop.permute.xlu0 %4246
      %4248 = vrot.lane.b32.xlu0 %v4176, 32
      %v4249 = vpop.permute.xlu0 %4248
      %4250 = vrot.lane.b32.xlu0 %v4177, 32
      %v4251 = vpop.permute.xlu0 %4250
      %4252 = vrot.lane.b32.xlu0 %v4178, 32
      %v4253 = vpop.permute.xlu0 %4252
      %4254 = vrot.lane.b32.xlu0 %v4179, 32
      %v4255 = vpop.permute.xlu0 %4254
      %4256 = vrot.lane.b32.xlu0 %v4180, 32
      %v4257 = vpop.permute.xlu0 %4256
      %4258 = vrot.lane.b32.xlu0 %v4181, 32
      %v4259 = vpop.permute.xlu0 %4258
      %4260 = vrot.lane.b32.xlu0 %v4182, 32
      %v4261 = vpop.permute.xlu0 %4260
      %4262 = vrot.lane.b32.xlu0 %v4183, 32
      %v4263 = vpop.permute.xlu0 %4262
      %4264 = vrot.lane.b32.xlu0 %v4184, 32
      %v4265 = vpop.permute.xlu0 %4264
      %4266 = vrot.lane.b32.xlu0 %v4185, 32
      %v4267 = vpop.permute.xlu0 %4266
      %4268 = vrot.lane.b32.xlu0 %v4186, 32
      %v4269 = vpop.permute.xlu0 %4268
      %4270 = vrot.lane.b32.xlu0 %v4187, 32
      %v4271 = vpop.permute.xlu0 %4270
      %4272 = vrot.lane.b32.xlu0 %v4188, 32
      %v4273 = vpop.permute.xlu0 %4272
      %4274 = vrot.lane.b32.xlu0 %v4189, 32
      %v4275 = vpop.permute.xlu0 %4274
      %4276 = vrot.lane.b32.xlu0 %v4190, 32
      %v4277 = vpop.permute.xlu0 %4276
      %4278 = vrot.lane.b32.xlu0 %v4191, 32
      %v4279 = vpop.permute.xlu0 %4278
      %4280 = vrot.lane.b32.xlu0 %v4192, 32
      %v4281 = vpop.permute.xlu0 %4280
      %4282 = vrot.lane.b32.xlu0 %v4193, 32
      %v4283 = vpop.permute.xlu0 %4282
      %4284 = vrot.lane.b32.xlu0 %v4194, 32
      %v4285 = vpop.permute.xlu0 %4284
      %4286 = vrot.lane.b32.xlu0 %v4195, 32
      %v4287 = vpop.permute.xlu0 %4286
      %4288 = vrot.lane.b32.xlu0 %v4196, 32
      %v4289 = vpop.permute.xlu0 %4288
      %4290 = vrot.lane.b32.xlu0 %v4197, 32
      %v4291 = vpop.permute.xlu0 %4290
      %4292 = vrot.lane.b32.xlu0 %v4198, 32
      %v4293 = vpop.permute.xlu0 %4292
      %4294 = vrot.lane.b32.xlu0 %v4199, 32
      %v4295 = vpop.permute.xlu0 %4294
      %v4328 = vadd.f32 %v4008, %v4233
      %v4329 = vadd.f32 %v4009, %v4235
      %v4330 = vadd.f32 %v4010, %v4237
      %v4331 = vadd.f32 %v4011, %v4239
      %v4332 = vadd.f32 %v4012, %v4241
      %v4333 = vadd.f32 %v4013, %v4243
      %v4334 = vadd.f32 %v4014, %v4245
      %v4335 = vadd.f32 %v4015, %v4247
      %v4336 = vadd.f32 %v4016, %v4249
      %v4337 = vadd.f32 %v4017, %v4251
      %v4338 = vadd.f32 %v4018, %v4253
      %v4339 = vadd.f32 %v4019, %v4255
      %v4340 = vadd.f32 %v4020, %v4257
      %v4341 = vadd.f32 %v4021, %v4259
      %v4342 = vadd.f32 %v4022, %v4261
      %v4343 = vadd.f32 %v4023, %v4263
      %v4344 = vadd.f32 %v4024, %v4265
      %v4345 = vadd.f32 %v4025, %v4267
      %v4346 = vadd.f32 %v4026, %v4269
      %v4347 = vadd.f32 %v4027, %v4271
      %v4348 = vadd.f32 %v4028, %v4273
      %v4349 = vadd.f32 %v4029, %v4275
      %v4350 = vadd.f32 %v4030, %v4277
      %v4351 = vadd.f32 %v4031, %v4279
      %v4352 = vadd.f32 %v4032, %v4281
      %v4353 = vadd.f32 %v4033, %v4283
      %v4354 = vadd.f32 %v4034, %v4285
      %v4355 = vadd.f32 %v4035, %v4287
      %v4356 = vadd.f32 %v4036, %v4289
      %v4357 = vadd.f32 %v4037, %v4291
      %v4358 = vadd.f32 %v4038, %v4293
      %v4359 = vadd.f32 %v4039, %v4295
      %v4360 = vtanh.pop %v4328
      %v4361 = vtanh.pop %v4329
      %v4362 = vtanh.pop %v4330
      %v4363 = vtanh.pop %v4331
      %v4364 = vtanh.pop %v4332
      %v4365 = vtanh.pop %v4333
      %v4366 = vtanh.pop %v4334
      %v4367 = vtanh.pop %v4335
      %v4368 = vtanh.pop %v4336
      %v4369 = vtanh.pop %v4337
      %v4370 = vtanh.pop %v4338
      %v4371 = vtanh.pop %v4339
      %v4372 = vtanh.pop %v4340
      %v4373 = vtanh.pop %v4341
      %v4374 = vtanh.pop %v4342
      %v4375 = vtanh.pop %v4343
      %v4376 = vtanh.pop %v4344
      %v4377 = vtanh.pop %v4345
      %v4378 = vtanh.pop %v4346
      %v4379 = vtanh.pop %v4347
      %v4380 = vtanh.pop %v4348
      %v4381 = vtanh.pop %v4349
      %v4382 = vtanh.pop %v4350
      %v4383 = vtanh.pop %v4351
      %v4384 = vtanh.pop %v4352
      %v4385 = vtanh.pop %v4353
      %v4386 = vtanh.pop %v4354
      %v4387 = vtanh.pop %v4355
      %v4388 = vtanh.pop %v4356
      %v4389 = vtanh.pop %v4357
      %v4390 = vtanh.pop %v4358
      %v4391 = vtanh.pop %v4359
      %4424 = vrot.lane.b32.xlu0 %v4360, 32
      %v4425 = vpop.permute.xlu0 %4424
      %4426 = vrot.lane.b32.xlu0 %v4361, 32
      %v4427 = vpop.permute.xlu0 %4426
      %4428 = vrot.lane.b32.xlu0 %v4362, 32
      %v4429 = vpop.permute.xlu0 %4428
      %4430 = vrot.lane.b32.xlu0 %v4363, 32
      %v4431 = vpop.permute.xlu0 %4430
      %4432 = vrot.lane.b32.xlu0 %v4364, 32
      %v4433 = vpop.permute.xlu0 %4432
      %4434 = vrot.lane.b32.xlu0 %v4365, 32
      %v4435 = vpop.permute.xlu0 %4434
      %4436 = vrot.lane.b32.xlu0 %v4366, 32
      %v4437 = vpop.permute.xlu0 %4436
      %4438 = vrot.lane.b32.xlu0 %v4367, 32
      %v4439 = vpop.permute.xlu0 %4438
      %4440 = vrot.lane.b32.xlu0 %v4368, 32
      %v4441 = vpop.permute.xlu0 %4440
      %4442 = vrot.lane.b32.xlu0 %v4369, 32
      %v4443 = vpop.permute.xlu0 %4442
      %4444 = vrot.lane.b32.xlu0 %v4370, 32
      %v4445 = vpop.permute.xlu0 %4444
      %4446 = vrot.lane.b32.xlu0 %v4371, 32
      %v4447 = vpop.permute.xlu0 %4446
      %4448 = vrot.lane.b32.xlu0 %v4372, 32
      %v4449 = vpop.permute.xlu0 %4448
      %4450 = vrot.lane.b32.xlu0 %v4373, 32
      %v4451 = vpop.permute.xlu0 %4450
      %4452 = vrot.lane.b32.xlu0 %v4374, 32
      %v4453 = vpop.permute.xlu0 %4452
      %4454 = vrot.lane.b32.xlu0 %v4375, 32
      %v4455 = vpop.permute.xlu0 %4454
      %4456 = vrot.lane.b32.xlu0 %v4376, 32
      %v4457 = vpop.permute.xlu0 %4456
      %4458 = vrot.lane.b32.xlu0 %v4377, 32
      %v4459 = vpop.permute.xlu0 %4458
      %4460 = vrot.lane.b32.xlu0 %v4378, 32
      %v4461 = vpop.permute.xlu0 %4460
      %4462 = vrot.lane.b32.xlu0 %v4379, 32
      %v4463 = vpop.permute.xlu0 %4462
      %4464 = vrot.lane.b32.xlu0 %v4380, 32
      %v4465 = vpop.permute.xlu0 %4464
      %4466 = vrot.lane.b32.xlu0 %v4381, 32
      %v4467 = vpop.permute.xlu0 %4466
      %4468 = vrot.lane.b32.xlu0 %v4382, 32
      %v4469 = vpop.permute.xlu0 %4468
      %4470 = vrot.lane.b32.xlu0 %v4383, 32
      %v4471 = vpop.permute.xlu0 %4470
      %4472 = vrot.lane.b32.xlu0 %v4384, 32
      %v4473 = vpop.permute.xlu0 %4472
      %4474 = vrot.lane.b32.xlu0 %v4385, 32
      %v4475 = vpop.permute.xlu0 %4474
      %4476 = vrot.lane.b32.xlu0 %v4386, 32
      %v4477 = vpop.permute.xlu0 %4476
      %4478 = vrot.lane.b32.xlu0 %v4387, 32
      %v4479 = vpop.permute.xlu0 %4478
      %4480 = vrot.lane.b32.xlu0 %v4388, 32
      %v4481 = vpop.permute.xlu0 %4480
      %4482 = vrot.lane.b32.xlu0 %v4389, 32
      %v4483 = vpop.permute.xlu0 %4482
      %4484 = vrot.lane.b32.xlu0 %v4390, 32
      %v4485 = vpop.permute.xlu0 %4484
      %4486 = vrot.lane.b32.xlu0 %v4391, 32
      %v4487 = vpop.permute.xlu0 %4486
      %v4520 = vmul.f32 %v3753, %v4425
      %v4521 = vmul.f32 %v3755, %v4427
      %v4522 = vmul.f32 %v3757, %v4429
      %v4523 = vmul.f32 %v3759, %v4431
      %v4524 = vmul.f32 %v3761, %v4433
      %v4525 = vmul.f32 %v3763, %v4435
      %v4526 = vmul.f32 %v3765, %v4437
      %v4527 = vmul.f32 %v3767, %v4439
      %v4528 = vmul.f32 %v3769, %v4441
      %v4529 = vmul.f32 %v3771, %v4443
      %v4530 = vmul.f32 %v3773, %v4445
      %v4531 = vmul.f32 %v3775, %v4447
      %v4532 = vmul.f32 %v3777, %v4449
      %v4533 = vmul.f32 %v3779, %v4451
      %v4534 = vmul.f32 %v3781, %v4453
      %v4535 = vmul.f32 %v3783, %v4455
      %v4536 = vmul.f32 %v3785, %v4457
      %v4537 = vmul.f32 %v3787, %v4459
      %v4538 = vmul.f32 %v3789, %v4461
      %v4539 = vmul.f32 %v3791, %v4463
      %v4540 = vmul.f32 %v3793, %v4465
      %v4541 = vmul.f32 %v3795, %v4467
      %v4542 = vmul.f32 %v3797, %v4469
      %v4543 = vmul.f32 %v3799, %v4471
      %v4544 = vmul.f32 %v3801, %v4473
      %v4545 = vmul.f32 %v3803, %v4475
      %v4546 = vmul.f32 %v3805, %v4477
      %v4547 = vmul.f32 %v3807, %v4479
      %v4548 = vmul.f32 %v3809, %v4481
      %v4549 = vmul.f32 %v3811, %v4483
      %v4550 = vmul.f32 %v3813, %v4485
      %v4551 = vmul.f32 %v3815, %v4487
      %v4568 = vrot.slane %v4522, 7
      %vm4569 = vcmask 1041409
      %v4570 = vsel %vm4569, %v4568, %v4520
      %v4571 = vrot.slane %v4524, 6
      %vm4572 = vcmask 1042434
      %v4573 = vsel %vm4572, %v4571, %v4570
      %v4574 = vrot.slane %v4526, 5
      %vm4575 = vcmask 1043459
      %v4576 = vsel %vm4575, %v4574, %v4573
      %v4577 = vrot.slane %v4528, 4
      %vm4578 = vcmask 1044484
      %v4579 = vsel %vm4578, %v4577, %v4576
      %v4580 = vrot.slane %v4530, 3
      %vm4581 = vcmask 1045509
      %v4582 = vsel %vm4581, %v4580, %v4579
      %v4583 = vrot.slane %v4532, 2
      %vm4584 = vcmask 1046534
      %v4585 = vsel %vm4584, %v4583, %v4582
      %v4586 = vrot.slane %v4534, 1
      %vm4587 = vcmask 1047559
      %v4588 = vsel %vm4587, %v4586, %v4585
      %v4589 = vrot.slane %v4538, 7
      %v4590 = vsel %vm4569, %v4589, %v4536
      %v4591 = vrot.slane %v4540, 6
      %v4592 = vsel %vm4572, %v4591, %v4590
      %v4593 = vrot.slane %v4542, 5
      %v4594 = vsel %vm4575, %v4593, %v4592
      %v4595 = vrot.slane %v4544, 4
      %v4596 = vsel %vm4578, %v4595, %v4594
      %v4597 = vrot.slane %v4546, 3
      %v4598 = vsel %vm4581, %v4597, %v4596
      %v4599 = vrot.slane %v4548, 2
      %v4600 = vsel %vm4584, %v4599, %v4598
      %v4601 = vrot.slane %v4550, 1
      %v4602 = vsel %vm4587, %v4601, %v4600
      %4603 = vrot.lane.b32.xlu0 %v4588, 64
      %v4604 = vpop.permute.xlu0 %4603
      %4605 = vrot.lane.b32.xlu0 %v4602, 64
      %v4606 = vpop.permute.xlu0 %4605
      %v4609 = vrot.slane %v4520, 1
      %v4610 = vsel %vm4569, %v4522, %v4609
      %v4611 = vrot.slane %v4524, 7
      %v4612 = vsel %vm4572, %v4611, %v4610
      %v4613 = vrot.slane %v4526, 6
      %v4614 = vsel %vm4575, %v4613, %v4612
      %v4615 = vrot.slane %v4528, 5
      %v4616 = vsel %vm4578, %v4615, %v4614
      %v4617 = vrot.slane %v4530, 4
      %v4618 = vsel %vm4581, %v4617, %v4616
      %v4619 = vrot.slane %v4532, 3
      %v4620 = vsel %vm4584, %v4619, %v4618
      %v4621 = vrot.slane %v4534, 2
      %v4622 = vsel %vm4587, %v4621, %v4620
      %v4623 = vrot.slane %v4536, 1
      %v4624 = vsel %vm4569, %v4538, %v4623
      %v4625 = vrot.slane %v4540, 7
      %v4626 = vsel %vm4572, %v4625, %v4624
      %v4627 = vrot.slane %v4542, 6
      %v4628 = vsel %vm4575, %v4627, %v4626
      %v4629 = vrot.slane %v4544, 5
      %v4630 = vsel %vm4578, %v4629, %v4628
      %v4631 = vrot.slane %v4546, 4
      %v4632 = vsel %vm4581, %v4631, %v4630
      %v4633 = vrot.slane %v4548, 3
      %v4634 = vsel %vm4584, %v4633, %v4632
      %v4635 = vrot.slane %v4550, 2
      %v4636 = vsel %vm4587, %v4635, %v4634
      %4637 = vrot.lane.b32.xlu0 %v4622, 96
      %v4638 = vpop.permute.xlu0 %4637
      %4639 = vrot.lane.b32.xlu0 %v4636, 96
      %v4640 = vpop.permute.xlu0 %4639
      %v4643 = vrot.slane %v4520, 2
      %v4644 = vrot.slane %v4522, 1
      %v4645 = vsel %vm4569, %v4644, %v4643
      %v4646 = vsel %vm4572, %v4524, %v4645
      %v4647 = vrot.slane %v4526, 7
      %v4648 = vsel %vm4575, %v4647, %v4646
      %v4649 = vrot.slane %v4528, 6
      %v4650 = vsel %vm4578, %v4649, %v4648
      %v4651 = vrot.slane %v4530, 5
      %v4652 = vsel %vm4581, %v4651, %v4650
      %v4653 = vrot.slane %v4532, 4
      %v4654 = vsel %vm4584, %v4653, %v4652
      %v4655 = vrot.slane %v4534, 3
      %v4656 = vsel %vm4587, %v4655, %v4654
      %v4657 = vrot.slane %v4536, 2
      %v4658 = vrot.slane %v4538, 1
      %v4659 = vsel %vm4569, %v4658, %v4657
      %v4660 = vsel %vm4572, %v4540, %v4659
      %v4661 = vrot.slane %v4542, 7
      %v4662 = vsel %vm4575, %v4661, %v4660
      %v4663 = vrot.slane %v4544, 6
      %v4664 = vsel %vm4578, %v4663, %v4662
      %v4665 = vrot.slane %v4546, 5
      %v4666 = vsel %vm4581, %v4665, %v4664
      %v4667 = vrot.slane %v4548, 4
      %v4668 = vsel %vm4584, %v4667, %v4666
      %v4669 = vrot.slane %v4550, 3
      %v4670 = vsel %vm4587, %v4669, %v4668
      %v4673 = vrot.slane %v4520, 3
      %v4674 = vrot.slane %v4522, 2
      %v4675 = vsel %vm4569, %v4674, %v4673
      %v4676 = vrot.slane %v4524, 1
      %v4677 = vsel %vm4572, %v4676, %v4675
      %v4678 = vsel %vm4575, %v4526, %v4677
      %v4679 = vrot.slane %v4528, 7
      %v4680 = vsel %vm4578, %v4679, %v4678
      %v4681 = vrot.slane %v4530, 6
      %v4682 = vsel %vm4581, %v4681, %v4680
      %v4683 = vrot.slane %v4532, 5
      %v4684 = vsel %vm4584, %v4683, %v4682
      %v4685 = vrot.slane %v4534, 4
      %v4686 = vsel %vm4587, %v4685, %v4684
      %v4687 = vrot.slane %v4536, 3
      %v4688 = vrot.slane %v4538, 2
      %v4689 = vsel %vm4569, %v4688, %v4687
      %v4690 = vrot.slane %v4540, 1
      %v4691 = vsel %vm4572, %v4690, %v4689
      %v4692 = vsel %vm4575, %v4542, %v4691
      %v4693 = vrot.slane %v4544, 7
      %v4694 = vsel %vm4578, %v4693, %v4692
      %v4695 = vrot.slane %v4546, 6
      %v4696 = vsel %vm4581, %v4695, %v4694
      %v4697 = vrot.slane %v4548, 5
      %v4698 = vsel %vm4584, %v4697, %v4696
      %v4699 = vrot.slane %v4550, 4
      %v4700 = vsel %vm4587, %v4699, %v4698
      %4701 = vrot.lane.b32.xlu0 %v4686, 32
      %v4702 = vpop.permute.xlu0 %4701
      %4703 = vrot.lane.b32.xlu0 %v4700, 32
      %v4704 = vpop.permute.xlu0 %4703
      %v4707 = vrot.slane %v4520, 4
      %v4708 = vrot.slane %v4522, 3
      %v4709 = vsel %vm4569, %v4708, %v4707
      %v4710 = vrot.slane %v4524, 2
      %v4711 = vsel %vm4572, %v4710, %v4709
      %v4712 = vrot.slane %v4526, 1
      %v4713 = vsel %vm4575, %v4712, %v4711
      %v4714 = vsel %vm4578, %v4528, %v4713
      %v4715 = vrot.slane %v4530, 7
      %v4716 = vsel %vm4581, %v4715, %v4714
      %v4717 = vrot.slane %v4532, 6
      %v4718 = vsel %vm4584, %v4717, %v4716
      %v4719 = vrot.slane %v4534, 5
      %v4720 = vsel %vm4587, %v4719, %v4718
      %v4721 = vrot.slane %v4536, 4
      %v4722 = vrot.slane %v4538, 3
      %v4723 = vsel %vm4569, %v4722, %v4721
      %v4724 = vrot.slane %v4540, 2
      %v4725 = vsel %vm4572, %v4724, %v4723
      %v4726 = vrot.slane %v4542, 1
      %v4727 = vsel %vm4575, %v4726, %v4725
      %v4728 = vsel %vm4578, %v4544, %v4727
      %v4729 = vrot.slane %v4546, 7
      %v4730 = vsel %vm4581, %v4729, %v4728
      %v4731 = vrot.slane %v4548, 6
      %v4732 = vsel %vm4584, %v4731, %v4730
      %v4733 = vrot.slane %v4550, 5
      %v4734 = vsel %vm4587, %v4733, %v4732
      %4735 = vrot.lane.b32.xlu0 %v4720, 64
      %v4736 = vpop.permute.xlu0 %4735
      %4737 = vrot.lane.b32.xlu0 %v4734, 64
      %v4738 = vpop.permute.xlu0 %4737
      %v4741 = vrot.slane %v4520, 5
      %v4742 = vrot.slane %v4522, 4
      %v4743 = vsel %vm4569, %v4742, %v4741
      %v4744 = vrot.slane %v4524, 3
      %v4745 = vsel %vm4572, %v4744, %v4743
      %v4746 = vrot.slane %v4526, 2
      %v4747 = vsel %vm4575, %v4746, %v4745
      %v4748 = vrot.slane %v4528, 1
      %v4749 = vsel %vm4578, %v4748, %v4747
      %v4750 = vsel %vm4581, %v4530, %v4749
      %v4751 = vrot.slane %v4532, 7
      %v4752 = vsel %vm4584, %v4751, %v4750
      %v4753 = vrot.slane %v4534, 6
      %v4754 = vsel %vm4587, %v4753, %v4752
      %v4755 = vrot.slane %v4536, 5
      %v4756 = vrot.slane %v4538, 4
      %v4757 = vsel %vm4569, %v4756, %v4755
      %v4758 = vrot.slane %v4540, 3
      %v4759 = vsel %vm4572, %v4758, %v4757
      %v4760 = vrot.slane %v4542, 2
      %v4761 = vsel %vm4575, %v4760, %v4759
      %v4762 = vrot.slane %v4544, 1
      %v4763 = vsel %vm4578, %v4762, %v4761
      %v4764 = vsel %vm4581, %v4546, %v4763
      %v4765 = vrot.slane %v4548, 7
      %v4766 = vsel %vm4584, %v4765, %v4764
      %v4767 = vrot.slane %v4550, 6
      %v4768 = vsel %vm4587, %v4767, %v4766
      %4769 = vrot.lane.b32.xlu0 %v4754, 96
      %v4770 = vpop.permute.xlu0 %4769
      %4771 = vrot.lane.b32.xlu0 %v4768, 96
      %v4772 = vpop.permute.xlu0 %4771
      %v4775 = vrot.slane %v4520, 6
      %v4776 = vrot.slane %v4522, 5
      %v4777 = vsel %vm4569, %v4776, %v4775
      %v4778 = vrot.slane %v4524, 4
      %v4779 = vsel %vm4572, %v4778, %v4777
      %v4780 = vrot.slane %v4526, 3
      %v4781 = vsel %vm4575, %v4780, %v4779
      %v4782 = vrot.slane %v4528, 2
      %v4783 = vsel %vm4578, %v4782, %v4781
      %v4784 = vrot.slane %v4530, 1
      %v4785 = vsel %vm4581, %v4784, %v4783
      %v4786 = vsel %vm4584, %v4532, %v4785
      %v4787 = vrot.slane %v4534, 7
      %v4788 = vsel %vm4587, %v4787, %v4786
      %v4789 = vrot.slane %v4536, 6
      %v4790 = vrot.slane %v4538, 5
      %v4791 = vsel %vm4569, %v4790, %v4789
      %v4792 = vrot.slane %v4540, 4
      %v4793 = vsel %vm4572, %v4792, %v4791
      %v4794 = vrot.slane %v4542, 3
      %v4795 = vsel %vm4575, %v4794, %v4793
      %v4796 = vrot.slane %v4544, 2
      %v4797 = vsel %vm4578, %v4796, %v4795
      %v4798 = vrot.slane %v4546, 1
      %v4799 = vsel %vm4581, %v4798, %v4797
      %v4800 = vsel %vm4584, %v4548, %v4799
      %v4801 = vrot.slane %v4550, 7
      %v4802 = vsel %vm4587, %v4801, %v4800
      %v4805 = vrot.slane %v4520, 7
      %v4806 = vrot.slane %v4522, 6
      %v4807 = vsel %vm4569, %v4806, %v4805
      %v4808 = vrot.slane %v4524, 5
      %v4809 = vsel %vm4572, %v4808, %v4807
      %v4810 = vrot.slane %v4526, 4
      %v4811 = vsel %vm4575, %v4810, %v4809
      %v4812 = vrot.slane %v4528, 3
      %v4813 = vsel %vm4578, %v4812, %v4811
      %v4814 = vrot.slane %v4530, 2
      %v4815 = vsel %vm4581, %v4814, %v4813
      %v4816 = vrot.slane %v4532, 1
      %v4817 = vsel %vm4584, %v4816, %v4815
      %v4818 = vsel %vm4587, %v4534, %v4817
      %v4819 = vrot.slane %v4536, 7
      %v4820 = vrot.slane %v4538, 6
      %v4821 = vsel %vm4569, %v4820, %v4819
      %v4822 = vrot.slane %v4540, 5
      %v4823 = vsel %vm4572, %v4822, %v4821
      %v4824 = vrot.slane %v4542, 4
      %v4825 = vsel %vm4575, %v4824, %v4823
      %v4826 = vrot.slane %v4544, 3
      %v4827 = vsel %vm4578, %v4826, %v4825
      %v4828 = vrot.slane %v4546, 2
      %v4829 = vsel %vm4581, %v4828, %v4827
      %v4830 = vrot.slane %v4548, 1
      %v4831 = vsel %vm4584, %v4830, %v4829
      %v4832 = vsel %vm4587, %v4550, %v4831
      %4833 = vrot.lane.b32.xlu0 %v4818, 32
      %v4834 = vpop.permute.xlu0 %4833
      %4835 = vrot.lane.b32.xlu0 %v4832, 32
      %v4836 = vpop.permute.xlu0 %4835
      %v4855 = vrot.slane %v4523, 7
      %v4856 = vsel %vm4569, %v4855, %v4521
      %v4857 = vrot.slane %v4525, 6
      %v4858 = vsel %vm4572, %v4857, %v4856
      %v4859 = vrot.slane %v4527, 5
      %v4860 = vsel %vm4575, %v4859, %v4858
      %v4861 = vrot.slane %v4529, 4
      %v4862 = vsel %vm4578, %v4861, %v4860
      %v4863 = vrot.slane %v4531, 3
      %v4864 = vsel %vm4581, %v4863, %v4862
      %v4865 = vrot.slane %v4533, 2
      %v4866 = vsel %vm4584, %v4865, %v4864
      %v4867 = vrot.slane %v4535, 1
      %v4868 = vsel %vm4587, %v4867, %v4866
      %v4869 = vrot.slane %v4539, 7
      %v4870 = vsel %vm4569, %v4869, %v4537
      %v4871 = vrot.slane %v4541, 6
      %v4872 = vsel %vm4572, %v4871, %v4870
      %v4873 = vrot.slane %v4543, 5
      %v4874 = vsel %vm4575, %v4873, %v4872
      %v4875 = vrot.slane %v4545, 4
      %v4876 = vsel %vm4578, %v4875, %v4874
      %v4877 = vrot.slane %v4547, 3
      %v4878 = vsel %vm4581, %v4877, %v4876
      %v4879 = vrot.slane %v4549, 2
      %v4880 = vsel %vm4584, %v4879, %v4878
      %v4881 = vrot.slane %v4551, 1
      %v4882 = vsel %vm4587, %v4881, %v4880
      %4883 = vrot.lane.b32.xlu0 %v4868, 64
      %v4884 = vpop.permute.xlu0 %4883
      %4885 = vrot.lane.b32.xlu0 %v4882, 64
      %v4886 = vpop.permute.xlu0 %4885
      %v4889 = vrot.slane %v4521, 1
      %v4890 = vsel %vm4569, %v4523, %v4889
      %v4891 = vrot.slane %v4525, 7
      %v4892 = vsel %vm4572, %v4891, %v4890
      %v4893 = vrot.slane %v4527, 6
      %v4894 = vsel %vm4575, %v4893, %v4892
      %v4895 = vrot.slane %v4529, 5
      %v4896 = vsel %vm4578, %v4895, %v4894
      %v4897 = vrot.slane %v4531, 4
      %v4898 = vsel %vm4581, %v4897, %v4896
      %v4899 = vrot.slane %v4533, 3
      %v4900 = vsel %vm4584, %v4899, %v4898
      %v4901 = vrot.slane %v4535, 2
      %v4902 = vsel %vm4587, %v4901, %v4900
      %v4903 = vrot.slane %v4537, 1
      %v4904 = vsel %vm4569, %v4539, %v4903
      %v4905 = vrot.slane %v4541, 7
      %v4906 = vsel %vm4572, %v4905, %v4904
      %v4907 = vrot.slane %v4543, 6
      %v4908 = vsel %vm4575, %v4907, %v4906
      %v4909 = vrot.slane %v4545, 5
      %v4910 = vsel %vm4578, %v4909, %v4908
      %v4911 = vrot.slane %v4547, 4
      %v4912 = vsel %vm4581, %v4911, %v4910
      %v4913 = vrot.slane %v4549, 3
      %v4914 = vsel %vm4584, %v4913, %v4912
      %v4915 = vrot.slane %v4551, 2
      %v4916 = vsel %vm4587, %v4915, %v4914
      %4917 = vrot.lane.b32.xlu0 %v4902, 96
      %v4918 = vpop.permute.xlu0 %4917
      %4919 = vrot.lane.b32.xlu0 %v4916, 96
      %v4920 = vpop.permute.xlu0 %4919
      %v4923 = vrot.slane %v4521, 2
      %v4924 = vrot.slane %v4523, 1
      %v4925 = vsel %vm4569, %v4924, %v4923
      %v4926 = vsel %vm4572, %v4525, %v4925
      %v4927 = vrot.slane %v4527, 7
      %v4928 = vsel %vm4575, %v4927, %v4926
      %v4929 = vrot.slane %v4529, 6
      %v4930 = vsel %vm4578, %v4929, %v4928
      %v4931 = vrot.slane %v4531, 5
      %v4932 = vsel %vm4581, %v4931, %v4930
      %v4933 = vrot.slane %v4533, 4
      %v4934 = vsel %vm4584, %v4933, %v4932
      %v4935 = vrot.slane %v4535, 3
      %v4936 = vsel %vm4587, %v4935, %v4934
      %v4937 = vrot.slane %v4537, 2
      %v4938 = vrot.slane %v4539, 1
      %v4939 = vsel %vm4569, %v4938, %v4937
      %v4940 = vsel %vm4572, %v4541, %v4939
      %v4941 = vrot.slane %v4543, 7
      %v4942 = vsel %vm4575, %v4941, %v4940
      %v4943 = vrot.slane %v4545, 6
      %v4944 = vsel %vm4578, %v4943, %v4942
      %v4945 = vrot.slane %v4547, 5
      %v4946 = vsel %vm4581, %v4945, %v4944
      %v4947 = vrot.slane %v4549, 4
      %v4948 = vsel %vm4584, %v4947, %v4946
      %v4949 = vrot.slane %v4551, 3
      %v4950 = vsel %vm4587, %v4949, %v4948
      %v4953 = vrot.slane %v4521, 3
      %v4954 = vrot.slane %v4523, 2
      %v4955 = vsel %vm4569, %v4954, %v4953
      %v4956 = vrot.slane %v4525, 1
      %v4957 = vsel %vm4572, %v4956, %v4955
      %v4958 = vsel %vm4575, %v4527, %v4957
      %v4959 = vrot.slane %v4529, 7
      %v4960 = vsel %vm4578, %v4959, %v4958
      %v4961 = vrot.slane %v4531, 6
      %v4962 = vsel %vm4581, %v4961, %v4960
      %v4963 = vrot.slane %v4533, 5
      %v4964 = vsel %vm4584, %v4963, %v4962
      %v4965 = vrot.slane %v4535, 4
      %v4966 = vsel %vm4587, %v4965, %v4964
      %v4967 = vrot.slane %v4537, 3
      %v4968 = vrot.slane %v4539, 2
      %v4969 = vsel %vm4569, %v4968, %v4967
      %v4970 = vrot.slane %v4541, 1
      %v4971 = vsel %vm4572, %v4970, %v4969
      %v4972 = vsel %vm4575, %v4543, %v4971
      %v4973 = vrot.slane %v4545, 7
      %v4974 = vsel %vm4578, %v4973, %v4972
      %v4975 = vrot.slane %v4547, 6
      %v4976 = vsel %vm4581, %v4975, %v4974
      %v4977 = vrot.slane %v4549, 5
      %v4978 = vsel %vm4584, %v4977, %v4976
      %v4979 = vrot.slane %v4551, 4
      %v4980 = vsel %vm4587, %v4979, %v4978
      %4981 = vrot.lane.b32.xlu0 %v4966, 32
      %v4982 = vpop.permute.xlu0 %4981
      %4983 = vrot.lane.b32.xlu0 %v4980, 32
      %v4984 = vpop.permute.xlu0 %4983
      %v4987 = vrot.slane %v4521, 4
      %v4988 = vrot.slane %v4523, 3
      %v4989 = vsel %vm4569, %v4988, %v4987
      %v4990 = vrot.slane %v4525, 2
      %v4991 = vsel %vm4572, %v4990, %v4989
      %v4992 = vrot.slane %v4527, 1
      %v4993 = vsel %vm4575, %v4992, %v4991
      %v4994 = vsel %vm4578, %v4529, %v4993
      %v4995 = vrot.slane %v4531, 7
      %v4996 = vsel %vm4581, %v4995, %v4994
      %v4997 = vrot.slane %v4533, 6
      %v4998 = vsel %vm4584, %v4997, %v4996
      %v4999 = vrot.slane %v4535, 5
      %v5000 = vsel %vm4587, %v4999, %v4998
      %v5001 = vrot.slane %v4537, 4
      %v5002 = vrot.slane %v4539, 3
      %v5003 = vsel %vm4569, %v5002, %v5001
      %v5004 = vrot.slane %v4541, 2
      %v5005 = vsel %vm4572, %v5004, %v5003
      %v5006 = vrot.slane %v4543, 1
      %v5007 = vsel %vm4575, %v5006, %v5005
      %v5008 = vsel %vm4578, %v4545, %v5007
      %v5009 = vrot.slane %v4547, 7
      %v5010 = vsel %vm4581, %v5009, %v5008
      %v5011 = vrot.slane %v4549, 6
      %v5012 = vsel %vm4584, %v5011, %v5010
      %v5013 = vrot.slane %v4551, 5
      %v5014 = vsel %vm4587, %v5013, %v5012
      %5015 = vrot.lane.b32.xlu0 %v5000, 64
      %v5016 = vpop.permute.xlu0 %5015
      %5017 = vrot.lane.b32.xlu0 %v5014, 64
      %v5018 = vpop.permute.xlu0 %5017
      %v5021 = vrot.slane %v4521, 5
      %v5022 = vrot.slane %v4523, 4
      %v5023 = vsel %vm4569, %v5022, %v5021
      %v5024 = vrot.slane %v4525, 3
      %v5025 = vsel %vm4572, %v5024, %v5023
      %v5026 = vrot.slane %v4527, 2
      %v5027 = vsel %vm4575, %v5026, %v5025
      %v5028 = vrot.slane %v4529, 1
      %v5029 = vsel %vm4578, %v5028, %v5027
      %v5030 = vsel %vm4581, %v4531, %v5029
      %v5031 = vrot.slane %v4533, 7
      %v5032 = vsel %vm4584, %v5031, %v5030
      %v5033 = vrot.slane %v4535, 6
      %v5034 = vsel %vm4587, %v5033, %v5032
      %v5035 = vrot.slane %v4537, 5
      %v5036 = vrot.slane %v4539, 4
      %v5037 = vsel %vm4569, %v5036, %v5035
      %v5038 = vrot.slane %v4541, 3
      %v5039 = vsel %vm4572, %v5038, %v5037
      %v5040 = vrot.slane %v4543, 2
      %v5041 = vsel %vm4575, %v5040, %v5039
      %v5042 = vrot.slane %v4545, 1
      %v5043 = vsel %vm4578, %v5042, %v5041
      %v5044 = vsel %vm4581, %v4547, %v5043
      %v5045 = vrot.slane %v4549, 7
      %v5046 = vsel %vm4584, %v5045, %v5044
      %v5047 = vrot.slane %v4551, 6
      %v5048 = vsel %vm4587, %v5047, %v5046
      %5049 = vrot.lane.b32.xlu0 %v5034, 96
      %v5050 = vpop.permute.xlu0 %5049
      %5051 = vrot.lane.b32.xlu0 %v5048, 96
      %v5052 = vpop.permute.xlu0 %5051
      %v5055 = vrot.slane %v4521, 6
      %v5056 = vrot.slane %v4523, 5
      %v5057 = vsel %vm4569, %v5056, %v5055
      %v5058 = vrot.slane %v4525, 4
      %v5059 = vsel %vm4572, %v5058, %v5057
      %v5060 = vrot.slane %v4527, 3
      %v5061 = vsel %vm4575, %v5060, %v5059
      %v5062 = vrot.slane %v4529, 2
      %v5063 = vsel %vm4578, %v5062, %v5061
      %v5064 = vrot.slane %v4531, 1
      %v5065 = vsel %vm4581, %v5064, %v5063
      %v5066 = vsel %vm4584, %v4533, %v5065
      %v5067 = vrot.slane %v4535, 7
      %v5068 = vsel %vm4587, %v5067, %v5066
      %v5069 = vrot.slane %v4537, 6
      %v5070 = vrot.slane %v4539, 5
      %v5071 = vsel %vm4569, %v5070, %v5069
      %v5072 = vrot.slane %v4541, 4
      %v5073 = vsel %vm4572, %v5072, %v5071
      %v5074 = vrot.slane %v4543, 3
      %v5075 = vsel %vm4575, %v5074, %v5073
      %v5076 = vrot.slane %v4545, 2
      %v5077 = vsel %vm4578, %v5076, %v5075
      %v5078 = vrot.slane %v4547, 1
      %v5079 = vsel %vm4581, %v5078, %v5077
      %v5080 = vsel %vm4584, %v4549, %v5079
      %v5081 = vrot.slane %v4551, 7
      %v5082 = vsel %vm4587, %v5081, %v5080
      %v5085 = vrot.slane %v4521, 7
      %v5086 = vrot.slane %v4523, 6
      %v5087 = vsel %vm4569, %v5086, %v5085
      %v5088 = vrot.slane %v4525, 5
      %v5089 = vsel %vm4572, %v5088, %v5087
      %v5090 = vrot.slane %v4527, 4
      %v5091 = vsel %vm4575, %v5090, %v5089
      %v5092 = vrot.slane %v4529, 3
      %v5093 = vsel %vm4578, %v5092, %v5091
      %v5094 = vrot.slane %v4531, 2
      %v5095 = vsel %vm4581, %v5094, %v5093
      %v5096 = vrot.slane %v4533, 1
      %v5097 = vsel %vm4584, %v5096, %v5095
      %v5098 = vsel %vm4587, %v4535, %v5097
      %v5099 = vrot.slane %v4537, 7
      %v5100 = vrot.slane %v4539, 6
      %v5101 = vsel %vm4569, %v5100, %v5099
      %v5102 = vrot.slane %v4541, 5
      %v5103 = vsel %vm4572, %v5102, %v5101
      %v5104 = vrot.slane %v4543, 4
      %v5105 = vsel %vm4575, %v5104, %v5103
      %v5106 = vrot.slane %v4545, 3
      %v5107 = vsel %vm4578, %v5106, %v5105
      %v5108 = vrot.slane %v4547, 2
      %v5109 = vsel %vm4581, %v5108, %v5107
      %v5110 = vrot.slane %v4549, 1
      %v5111 = vsel %vm4584, %v5110, %v5109
      %v5112 = vsel %vm4587, %v4551, %v5111
      %5113 = vrot.lane.b32.xlu0 %v5098, 32
      %v5114 = vpop.permute.xlu0 %5113
      %5115 = vrot.lane.b32.xlu0 %v5112, 32
      %v5116 = vpop.permute.xlu0 %5115
      %v5119 = vsel %vm2709, %v4604, %v4638
      %v5120 = vsel %vm2709, %v4606, %v4640
      %vm5121 = vcmask 523264
      %v5122 = vsel %vm5121, %v5119, %v4656
      %v5123 = vsel %vm5121, %v5120, %v4670
      %vm5124 = vcmask 785408
      %v5125 = vsel %vm5124, %v5122, %v4702
      %v5126 = vsel %vm5124, %v5123, %v4704
      %v5127 = vsel %vm2709, %v4736, %v4770
      %v5128 = vsel %vm2709, %v4738, %v4772
      %v5129 = vsel %vm5121, %v5127, %v4788
      %v5130 = vsel %vm5121, %v5128, %v4802
      %v5131 = vsel %vm5124, %v5129, %v4834
      %v5132 = vsel %vm5124, %v5130, %v4836
      %v5133 = vsel %vm2709, %v4884, %v4918
      %v5134 = vsel %vm2709, %v4886, %v4920
      %v5135 = vsel %vm5121, %v5133, %v4936
      %v5136 = vsel %vm5121, %v5134, %v4950
      %v5137 = vsel %vm5124, %v5135, %v4982
      %v5138 = vsel %vm5124, %v5136, %v4984
      %v5139 = vsel %vm2709, %v5016, %v5050
      %v5140 = vsel %vm2709, %v5018, %v5052
      %v5141 = vsel %vm5121, %v5139, %v5068
      %v5142 = vsel %vm5121, %v5140, %v5082
      %v5143 = vsel %vm5124, %v5141, %v5114
      %v5144 = vsel %vm5124, %v5142, %v5116
      %5145 = vst [vmem:[%s313] sm:$0xff] %v5125
      %5146 = vst [vmem:[%s313 + $0x8] sm:$0xff] %v5131
      %5147 = vst [vmem:[%s313 + $0x10] sm:$0xff] %v5137
      %5148 = vst [vmem:[%s313 + $0x18] sm:$0xff] %v5143
      %5149 = vst [vmem:[%s313 + $0x20] sm:$0xff] %v5126
      %5150 = vst [vmem:[%s313 + $0x28] sm:$0xff] %v5132
      %5151 = vst [vmem:[%s313 + $0x30] sm:$0xff] %v5138
      %5152 = vst [vmem:[%s313 + $0x38] sm:$0xff] %v5144
      %v5169 = vrot.slane %v4330, 7
      %v5170 = vsel %vm4569, %v5169, %v4328
      %v5171 = vrot.slane %v4332, 6
      %v5172 = vsel %vm4572, %v5171, %v5170
      %v5173 = vrot.slane %v4334, 5
      %v5174 = vsel %vm4575, %v5173, %v5172
      %v5175 = vrot.slane %v4336, 4
      %v5176 = vsel %vm4578, %v5175, %v5174
      %v5177 = vrot.slane %v4338, 3
      %v5178 = vsel %vm4581, %v5177, %v5176
      %v5179 = vrot.slane %v4340, 2
      %v5180 = vsel %vm4584, %v5179, %v5178
      %v5181 = vrot.slane %v4342, 1
      %v5182 = vsel %vm4587, %v5181, %v5180
      %v5183 = vrot.slane %v4346, 7
      %v5184 = vsel %vm4569, %v5183, %v4344
      %v5185 = vrot.slane %v4348, 6
      %v5186 = vsel %vm4572, %v5185, %v5184
      %v5187 = vrot.slane %v4350, 5
      %v5188 = vsel %vm4575, %v5187, %v5186
      %v5189 = vrot.slane %v4352, 4
      %v5190 = vsel %vm4578, %v5189, %v5188
      %v5191 = vrot.slane %v4354, 3
      %v5192 = vsel %vm4581, %v5191, %v5190
      %v5193 = vrot.slane %v4356, 2
      %v5194 = vsel %vm4584, %v5193, %v5192
      %v5195 = vrot.slane %v4358, 1
      %v5196 = vsel %vm4587, %v5195, %v5194
      %5197 = vrot.lane.b32.xlu0 %v5182, 96
      %v5198 = vpop.permute.xlu0 %5197
      %5199 = vrot.lane.b32.xlu0 %v5196, 96
      %v5200 = vpop.permute.xlu0 %5199
      %v5203 = vrot.slane %v4328, 1
      %v5204 = vsel %vm4569, %v4330, %v5203
      %v5205 = vrot.slane %v4332, 7
      %v5206 = vsel %vm4572, %v5205, %v5204
      %v5207 = vrot.slane %v4334, 6
      %v5208 = vsel %vm4575, %v5207, %v5206
      %v5209 = vrot.slane %v4336, 5
      %v5210 = vsel %vm4578, %v5209, %v5208
      %v5211 = vrot.slane %v4338, 4
      %v5212 = vsel %vm4581, %v5211, %v5210
      %v5213 = vrot.slane %v4340, 3
      %v5214 = vsel %vm4584, %v5213, %v5212
      %v5215 = vrot.slane %v4342, 2
      %v5216 = vsel %vm4587, %v5215, %v5214
      %v5217 = vrot.slane %v4344, 1
      %v5218 = vsel %vm4569, %v4346, %v5217
      %v5219 = vrot.slane %v4348, 7
      %v5220 = vsel %vm4572, %v5219, %v5218
      %v5221 = vrot.slane %v4350, 6
      %v5222 = vsel %vm4575, %v5221, %v5220
      %v5223 = vrot.slane %v4352, 5
      %v5224 = vsel %vm4578, %v5223, %v5222
      %v5225 = vrot.slane %v4354, 4
      %v5226 = vsel %vm4581, %v5225, %v5224
      %v5227 = vrot.slane %v4356, 3
      %v5228 = vsel %vm4584, %v5227, %v5226
      %v5229 = vrot.slane %v4358, 2
      %v5230 = vsel %vm4587, %v5229, %v5228
      %v5233 = vrot.slane %v4328, 2
      %v5234 = vrot.slane %v4330, 1
      %v5235 = vsel %vm4569, %v5234, %v5233
      %v5236 = vsel %vm4572, %v4332, %v5235
      %v5237 = vrot.slane %v4334, 7
      %v5238 = vsel %vm4575, %v5237, %v5236
      %v5239 = vrot.slane %v4336, 6
      %v5240 = vsel %vm4578, %v5239, %v5238
      %v5241 = vrot.slane %v4338, 5
      %v5242 = vsel %vm4581, %v5241, %v5240
      %v5243 = vrot.slane %v4340, 4
      %v5244 = vsel %vm4584, %v5243, %v5242
      %v5245 = vrot.slane %v4342, 3
      %v5246 = vsel %vm4587, %v5245, %v5244
      %v5247 = vrot.slane %v4344, 2
      %v5248 = vrot.slane %v4346, 1
      %v5249 = vsel %vm4569, %v5248, %v5247
      %v5250 = vsel %vm4572, %v4348, %v5249
      %v5251 = vrot.slane %v4350, 7
      %v5252 = vsel %vm4575, %v5251, %v5250
      %v5253 = vrot.slane %v4352, 6
      %v5254 = vsel %vm4578, %v5253, %v5252
      %v5255 = vrot.slane %v4354, 5
      %v5256 = vsel %vm4581, %v5255, %v5254
      %v5257 = vrot.slane %v4356, 4
      %v5258 = vsel %vm4584, %v5257, %v5256
      %v5259 = vrot.slane %v4358, 3
      %v5260 = vsel %vm4587, %v5259, %v5258
      %5261 = vrot.lane.b32.xlu0 %v5246, 32
      %v5262 = vpop.permute.xlu0 %5261
      %5263 = vrot.lane.b32.xlu0 %v5260, 32
      %v5264 = vpop.permute.xlu0 %5263
      %v5267 = vrot.slane %v4328, 3
      %v5268 = vrot.slane %v4330, 2
      %v5269 = vsel %vm4569, %v5268, %v5267
      %v5270 = vrot.slane %v4332, 1
      %v5271 = vsel %vm4572, %v5270, %v5269
      %v5272 = vsel %vm4575, %v4334, %v5271
      %v5273 = vrot.slane %v4336, 7
      %v5274 = vsel %vm4578, %v5273, %v5272
      %v5275 = vrot.slane %v4338, 6
      %v5276 = vsel %vm4581, %v5275, %v5274
      %v5277 = vrot.slane %v4340, 5
      %v5278 = vsel %vm4584, %v5277, %v5276
      %v5279 = vrot.slane %v4342, 4
      %v5280 = vsel %vm4587, %v5279, %v5278
      %v5281 = vrot.slane %v4344, 3
      %v5282 = vrot.slane %v4346, 2
      %v5283 = vsel %vm4569, %v5282, %v5281
      %v5284 = vrot.slane %v4348, 1
      %v5285 = vsel %vm4572, %v5284, %v5283
      %v5286 = vsel %vm4575, %v4350, %v5285
      %v5287 = vrot.slane %v4352, 7
      %v5288 = vsel %vm4578, %v5287, %v5286
      %v5289 = vrot.slane %v4354, 6
      %v5290 = vsel %vm4581, %v5289, %v5288
      %v5291 = vrot.slane %v4356, 5
      %v5292 = vsel %vm4584, %v5291, %v5290
      %v5293 = vrot.slane %v4358, 4
      %v5294 = vsel %vm4587, %v5293, %v5292
      %5295 = vrot.lane.b32.xlu0 %v5280, 64
      %v5296 = vpop.permute.xlu0 %5295
      %5297 = vrot.lane.b32.xlu0 %v5294, 64
      %v5298 = vpop.permute.xlu0 %5297
      %v5301 = vrot.slane %v4328, 4
      %v5302 = vrot.slane %v4330, 3
      %v5303 = vsel %vm4569, %v5302, %v5301
      %v5304 = vrot.slane %v4332, 2
      %v5305 = vsel %vm4572, %v5304, %v5303
      %v5306 = vrot.slane %v4334, 1
      %v5307 = vsel %vm4575, %v5306, %v5305
      %v5308 = vsel %vm4578, %v4336, %v5307
      %v5309 = vrot.slane %v4338, 7
      %v5310 = vsel %vm4581, %v5309, %v5308
      %v5311 = vrot.slane %v4340, 6
      %v5312 = vsel %vm4584, %v5311, %v5310
      %v5313 = vrot.slane %v4342, 5
      %v5314 = vsel %vm4587, %v5313, %v5312
      %v5315 = vrot.slane %v4344, 4
      %v5316 = vrot.slane %v4346, 3
      %v5317 = vsel %vm4569, %v5316, %v5315
      %v5318 = vrot.slane %v4348, 2
      %v5319 = vsel %vm4572, %v5318, %v5317
      %v5320 = vrot.slane %v4350, 1
      %v5321 = vsel %vm4575, %v5320, %v5319
      %v5322 = vsel %vm4578, %v4352, %v5321
      %v5323 = vrot.slane %v4354, 7
      %v5324 = vsel %vm4581, %v5323, %v5322
      %v5325 = vrot.slane %v4356, 6
      %v5326 = vsel %vm4584, %v5325, %v5324
      %v5327 = vrot.slane %v4358, 5
      %v5328 = vsel %vm4587, %v5327, %v5326
      %5329 = vrot.lane.b32.xlu0 %v5314, 96
      %v5330 = vpop.permute.xlu0 %5329
      %5331 = vrot.lane.b32.xlu0 %v5328, 96
      %v5332 = vpop.permute.xlu0 %5331
      %v5335 = vrot.slane %v4328, 5
      %v5336 = vrot.slane %v4330, 4
      %v5337 = vsel %vm4569, %v5336, %v5335
      %v5338 = vrot.slane %v4332, 3
      %v5339 = vsel %vm4572, %v5338, %v5337
      %v5340 = vrot.slane %v4334, 2
      %v5341 = vsel %vm4575, %v5340, %v5339
      %v5342 = vrot.slane %v4336, 1
      %v5343 = vsel %vm4578, %v5342, %v5341
      %v5344 = vsel %vm4581, %v4338, %v5343
      %v5345 = vrot.slane %v4340, 7
      %v5346 = vsel %vm4584, %v5345, %v5344
      %v5347 = vrot.slane %v4342, 6
      %v5348 = vsel %vm4587, %v5347, %v5346
      %v5349 = vrot.slane %v4344, 5
      %v5350 = vrot.slane %v4346, 4
      %v5351 = vsel %vm4569, %v5350, %v5349
      %v5352 = vrot.slane %v4348, 3
      %v5353 = vsel %vm4572, %v5352, %v5351
      %v5354 = vrot.slane %v4350, 2
      %v5355 = vsel %vm4575, %v5354, %v5353
      %v5356 = vrot.slane %v4352, 1
      %v5357 = vsel %vm4578, %v5356, %v5355
      %v5358 = vsel %vm4581, %v4354, %v5357
      %v5359 = vrot.slane %v4356, 7
      %v5360 = vsel %vm4584, %v5359, %v5358
      %v5361 = vrot.slane %v4358, 6
      %v5362 = vsel %vm4587, %v5361, %v5360
      %v5365 = vrot.slane %v4328, 6
      %v5366 = vrot.slane %v4330, 5
      %v5367 = vsel %vm4569, %v5366, %v5365
      %v5368 = vrot.slane %v4332, 4
      %v5369 = vsel %vm4572, %v5368, %v5367
      %v5370 = vrot.slane %v4334, 3
      %v5371 = vsel %vm4575, %v5370, %v5369
      %v5372 = vrot.slane %v4336, 2
      %v5373 = vsel %vm4578, %v5372, %v5371
      %v5374 = vrot.slane %v4338, 1
      %v5375 = vsel %vm4581, %v5374, %v5373
      %v5376 = vsel %vm4584, %v4340, %v5375
      %v5377 = vrot.slane %v4342, 7
      %v5378 = vsel %vm4587, %v5377, %v5376
      %v5379 = vrot.slane %v4344, 6
      %v5380 = vrot.slane %v4346, 5
      %v5381 = vsel %vm4569, %v5380, %v5379
      %v5382 = vrot.slane %v4348, 4
      %v5383 = vsel %vm4572, %v5382, %v5381
      %v5384 = vrot.slane %v4350, 3
      %v5385 = vsel %vm4575, %v5384, %v5383
      %v5386 = vrot.slane %v4352, 2
      %v5387 = vsel %vm4578, %v5386, %v5385
      %v5388 = vrot.slane %v4354, 1
      %v5389 = vsel %vm4581, %v5388, %v5387
      %v5390 = vsel %vm4584, %v4356, %v5389
      %v5391 = vrot.slane %v4358, 7
      %v5392 = vsel %vm4587, %v5391, %v5390
      %5393 = vrot.lane.b32.xlu0 %v5378, 32
      %v5394 = vpop.permute.xlu0 %5393
      %5395 = vrot.lane.b32.xlu0 %v5392, 32
      %v5396 = vpop.permute.xlu0 %5395
      %v5399 = vrot.slane %v4328, 7
      %v5400 = vrot.slane %v4330, 6
      %v5401 = vsel %vm4569, %v5400, %v5399
      %v5402 = vrot.slane %v4332, 5
      %v5403 = vsel %vm4572, %v5402, %v5401
      %v5404 = vrot.slane %v4334, 4
      %v5405 = vsel %vm4575, %v5404, %v5403
      %v5406 = vrot.slane %v4336, 3
      %v5407 = vsel %vm4578, %v5406, %v5405
      %v5408 = vrot.slane %v4338, 2
      %v5409 = vsel %vm4581, %v5408, %v5407
      %v5410 = vrot.slane %v4340, 1
      %v5411 = vsel %vm4584, %v5410, %v5409
      %v5412 = vsel %vm4587, %v4342, %v5411
      %v5413 = vrot.slane %v4344, 7
      %v5414 = vrot.slane %v4346, 6
      %v5415 = vsel %vm4569, %v5414, %v5413
      %v5416 = vrot.slane %v4348, 5
      %v5417 = vsel %vm4572, %v5416, %v5415
      %v5418 = vrot.slane %v4350, 4
      %v5419 = vsel %vm4575, %v5418, %v5417
      %v5420 = vrot.slane %v4352, 3
      %v5421 = vsel %vm4578, %v5420, %v5419
      %v5422 = vrot.slane %v4354, 2
      %v5423 = vsel %vm4581, %v5422, %v5421
      %v5424 = vrot.slane %v4356, 1
      %v5425 = vsel %vm4584, %v5424, %v5423
      %v5426 = vsel %vm4587, %v4358, %v5425
      %5427 = vrot.lane.b32.xlu0 %v5412, 64
      %v5428 = vpop.permute.xlu0 %5427
      %5429 = vrot.lane.b32.xlu0 %v5426, 64
      %v5430 = vpop.permute.xlu0 %5429
      %v5449 = vrot.slane %v4331, 7
      %v5450 = vsel %vm4569, %v5449, %v4329
      %v5451 = vrot.slane %v4333, 6
      %v5452 = vsel %vm4572, %v5451, %v5450
      %v5453 = vrot.slane %v4335, 5
      %v5454 = vsel %vm4575, %v5453, %v5452
      %v5455 = vrot.slane %v4337, 4
      %v5456 = vsel %vm4578, %v5455, %v5454
      %v5457 = vrot.slane %v4339, 3
      %v5458 = vsel %vm4581, %v5457, %v5456
      %v5459 = vrot.slane %v4341, 2
      %v5460 = vsel %vm4584, %v5459, %v5458
      %v5461 = vrot.slane %v4343, 1
      %v5462 = vsel %vm4587, %v5461, %v5460
      %v5463 = vrot.slane %v4347, 7
      %v5464 = vsel %vm4569, %v5463, %v4345
      %v5465 = vrot.slane %v4349, 6
      %v5466 = vsel %vm4572, %v5465, %v5464
      %v5467 = vrot.slane %v4351, 5
      %v5468 = vsel %vm4575, %v5467, %v5466
      %v5469 = vrot.slane %v4353, 4
      %v5470 = vsel %vm4578, %v5469, %v5468
      %v5471 = vrot.slane %v4355, 3
      %v5472 = vsel %vm4581, %v5471, %v5470
      %v5473 = vrot.slane %v4357, 2
      %v5474 = vsel %vm4584, %v5473, %v5472
      %v5475 = vrot.slane %v4359, 1
      %v5476 = vsel %vm4587, %v5475, %v5474
      %5477 = vrot.lane.b32.xlu0 %v5462, 96
      %v5478 = vpop.permute.xlu0 %5477
      %5479 = vrot.lane.b32.xlu0 %v5476, 96
      %v5480 = vpop.permute.xlu0 %5479
      %v5483 = vrot.slane %v4329, 1
      %v5484 = vsel %vm4569, %v4331, %v5483
      %v5485 = vrot.slane %v4333, 7
      %v5486 = vsel %vm4572, %v5485, %v5484
      %v5487 = vrot.slane %v4335, 6
      %v5488 = vsel %vm4575, %v5487, %v5486
      %v5489 = vrot.slane %v4337, 5
      %v5490 = vsel %vm4578, %v5489, %v5488
      %v5491 = vrot.slane %v4339, 4
      %v5492 = vsel %vm4581, %v5491, %v5490
      %v5493 = vrot.slane %v4341, 3
      %v5494 = vsel %vm4584, %v5493, %v5492
      %v5495 = vrot.slane %v4343, 2
      %v5496 = vsel %vm4587, %v5495, %v5494
      %v5497 = vrot.slane %v4345, 1
      %v5498 = vsel %vm4569, %v4347, %v5497
      %v5499 = vrot.slane %v4349, 7
      %v5500 = vsel %vm4572, %v5499, %v5498
      %v5501 = vrot.slane %v4351, 6
      %v5502 = vsel %vm4575, %v5501, %v5500
      %v5503 = vrot.slane %v4353, 5
      %v5504 = vsel %vm4578, %v5503, %v5502
      %v5505 = vrot.slane %v4355, 4
      %v5506 = vsel %vm4581, %v5505, %v5504
      %v5507 = vrot.slane %v4357, 3
      %v5508 = vsel %vm4584, %v5507, %v5506
      %v5509 = vrot.slane %v4359, 2
      %v5510 = vsel %vm4587, %v5509, %v5508
      %v5513 = vrot.slane %v4329, 2
      %v5514 = vrot.slane %v4331, 1
      %v5515 = vsel %vm4569, %v5514, %v5513
      %v5516 = vsel %vm4572, %v4333, %v5515
      %v5517 = vrot.slane %v4335, 7
      %v5518 = vsel %vm4575, %v5517, %v5516
      %v5519 = vrot.slane %v4337, 6
      %v5520 = vsel %vm4578, %v5519, %v5518
      %v5521 = vrot.slane %v4339, 5
      %v5522 = vsel %vm4581, %v5521, %v5520
      %v5523 = vrot.slane %v4341, 4
      %v5524 = vsel %vm4584, %v5523, %v5522
      %v5525 = vrot.slane %v4343, 3
      %v5526 = vsel %vm4587, %v5525, %v5524
      %v5527 = vrot.slane %v4345, 2
      %v5528 = vrot.slane %v4347, 1
      %v5529 = vsel %vm4569, %v5528, %v5527
      %v5530 = vsel %vm4572, %v4349, %v5529
      %v5531 = vrot.slane %v4351, 7
      %v5532 = vsel %vm4575, %v5531, %v5530
      %v5533 = vrot.slane %v4353, 6
      %v5534 = vsel %vm4578, %v5533, %v5532
      %v5535 = vrot.slane %v4355, 5
      %v5536 = vsel %vm4581, %v5535, %v5534
      %v5537 = vrot.slane %v4357, 4
      %v5538 = vsel %vm4584, %v5537, %v5536
      %v5539 = vrot.slane %v4359, 3
      %v5540 = vsel %vm4587, %v5539, %v5538
      %5541 = vrot.lane.b32.xlu0 %v5526, 32
      %v5542 = vpop.permute.xlu0 %5541
      %5543 = vrot.lane.b32.xlu0 %v5540, 32
      %v5544 = vpop.permute.xlu0 %5543
      %v5547 = vrot.slane %v4329, 3
      %v5548 = vrot.slane %v4331, 2
      %v5549 = vsel %vm4569, %v5548, %v5547
      %v5550 = vrot.slane %v4333, 1
      %v5551 = vsel %vm4572, %v5550, %v5549
      %v5552 = vsel %vm4575, %v4335, %v5551
      %v5553 = vrot.slane %v4337, 7
      %v5554 = vsel %vm4578, %v5553, %v5552
      %v5555 = vrot.slane %v4339, 6
      %v5556 = vsel %vm4581, %v5555, %v5554
      %v5557 = vrot.slane %v4341, 5
      %v5558 = vsel %vm4584, %v5557, %v5556
      %v5559 = vrot.slane %v4343, 4
      %v5560 = vsel %vm4587, %v5559, %v5558
      %v5561 = vrot.slane %v4345, 3
      %v5562 = vrot.slane %v4347, 2
      %v5563 = vsel %vm4569, %v5562, %v5561
      %v5564 = vrot.slane %v4349, 1
      %v5565 = vsel %vm4572, %v5564, %v5563
      %v5566 = vsel %vm4575, %v4351, %v5565
      %v5567 = vrot.slane %v4353, 7
      %v5568 = vsel %vm4578, %v5567, %v5566
      %v5569 = vrot.slane %v4355, 6
      %v5570 = vsel %vm4581, %v5569, %v5568
      %v5571 = vrot.slane %v4357, 5
      %v5572 = vsel %vm4584, %v5571, %v5570
      %v5573 = vrot.slane %v4359, 4
      %v5574 = vsel %vm4587, %v5573, %v5572
      %5575 = vrot.lane.b32.xlu0 %v5560, 64
      %v5576 = vpop.permute.xlu0 %5575
      %5577 = vrot.lane.b32.xlu0 %v5574, 64
      %v5578 = vpop.permute.xlu0 %5577
      %v5581 = vrot.slane %v4329, 4
      %v5582 = vrot.slane %v4331, 3
      %v5583 = vsel %vm4569, %v5582, %v5581
      %v5584 = vrot.slane %v4333, 2
      %v5585 = vsel %vm4572, %v5584, %v5583
      %v5586 = vrot.slane %v4335, 1
      %v5587 = vsel %vm4575, %v5586, %v5585
      %v5588 = vsel %vm4578, %v4337, %v5587
      %v5589 = vrot.slane %v4339, 7
      %v5590 = vsel %vm4581, %v5589, %v5588
      %v5591 = vrot.slane %v4341, 6
      %v5592 = vsel %vm4584, %v5591, %v5590
      %v5593 = vrot.slane %v4343, 5
      %v5594 = vsel %vm4587, %v5593, %v5592
      %v5595 = vrot.slane %v4345, 4
      %v5596 = vrot.slane %v4347, 3
      %v5597 = vsel %vm4569, %v5596, %v5595
      %v5598 = vrot.slane %v4349, 2
      %v5599 = vsel %vm4572, %v5598, %v5597
      %v5600 = vrot.slane %v4351, 1
      %v5601 = vsel %vm4575, %v5600, %v5599
      %v5602 = vsel %vm4578, %v4353, %v5601
      %v5603 = vrot.slane %v4355, 7
      %v5604 = vsel %vm4581, %v5603, %v5602
      %v5605 = vrot.slane %v4357, 6
      %v5606 = vsel %vm4584, %v5605, %v5604
      %v5607 = vrot.slane %v4359, 5
      %v5608 = vsel %vm4587, %v5607, %v5606
      %5609 = vrot.lane.b32.xlu0 %v5594, 96
      %v5610 = vpop.permute.xlu0 %5609
      %5611 = vrot.lane.b32.xlu0 %v5608, 96
      %v5612 = vpop.permute.xlu0 %5611
      %v5615 = vrot.slane %v4329, 5
      %v5616 = vrot.slane %v4331, 4
      %v5617 = vsel %vm4569, %v5616, %v5615
      %v5618 = vrot.slane %v4333, 3
      %v5619 = vsel %vm4572, %v5618, %v5617
      %v5620 = vrot.slane %v4335, 2
      %v5621 = vsel %vm4575, %v5620, %v5619
      %v5622 = vrot.slane %v4337, 1
      %v5623 = vsel %vm4578, %v5622, %v5621
      %v5624 = vsel %vm4581, %v4339, %v5623
      %v5625 = vrot.slane %v4341, 7
      %v5626 = vsel %vm4584, %v5625, %v5624
      %v5627 = vrot.slane %v4343, 6
      %v5628 = vsel %vm4587, %v5627, %v5626
      %v5629 = vrot.slane %v4345, 5
      %v5630 = vrot.slane %v4347, 4
      %v5631 = vsel %vm4569, %v5630, %v5629
      %v5632 = vrot.slane %v4349, 3
      %v5633 = vsel %vm4572, %v5632, %v5631
      %v5634 = vrot.slane %v4351, 2
      %v5635 = vsel %vm4575, %v5634, %v5633
      %v5636 = vrot.slane %v4353, 1
      %v5637 = vsel %vm4578, %v5636, %v5635
      %v5638 = vsel %vm4581, %v4355, %v5637
      %v5639 = vrot.slane %v4357, 7
      %v5640 = vsel %vm4584, %v5639, %v5638
      %v5641 = vrot.slane %v4359, 6
      %v5642 = vsel %vm4587, %v5641, %v5640
      %v5645 = vrot.slane %v4329, 6
      %v5646 = vrot.slane %v4331, 5
      %v5647 = vsel %vm4569, %v5646, %v5645
      %v5648 = vrot.slane %v4333, 4
      %v5649 = vsel %vm4572, %v5648, %v5647
      %v5650 = vrot.slane %v4335, 3
      %v5651 = vsel %vm4575, %v5650, %v5649
      %v5652 = vrot.slane %v4337, 2
      %v5653 = vsel %vm4578, %v5652, %v5651
      %v5654 = vrot.slane %v4339, 1
      %v5655 = vsel %vm4581, %v5654, %v5653
      %v5656 = vsel %vm4584, %v4341, %v5655
      %v5657 = vrot.slane %v4343, 7
      %v5658 = vsel %vm4587, %v5657, %v5656
      %v5659 = vrot.slane %v4345, 6
      %v5660 = vrot.slane %v4347, 5
      %v5661 = vsel %vm4569, %v5660, %v5659
      %v5662 = vrot.slane %v4349, 4
      %v5663 = vsel %vm4572, %v5662, %v5661
      %v5664 = vrot.slane %v4351, 3
      %v5665 = vsel %vm4575, %v5664, %v5663
      %v5666 = vrot.slane %v4353, 2
      %v5667 = vsel %vm4578, %v5666, %v5665
      %v5668 = vrot.slane %v4355, 1
      %v5669 = vsel %vm4581, %v5668, %v5667
      %v5670 = vsel %vm4584, %v4357, %v5669
      %v5671 = vrot.slane %v4359, 7
      %v5672 = vsel %vm4587, %v5671, %v5670
      %5673 = vrot.lane.b32.xlu0 %v5658, 32
      %v5674 = vpop.permute.xlu0 %5673
      %5675 = vrot.lane.b32.xlu0 %v5672, 32
      %v5676 = vpop.permute.xlu0 %5675
      %v5679 = vrot.slane %v4329, 7
      %v5680 = vrot.slane %v4331, 6
      %v5681 = vsel %vm4569, %v5680, %v5679
      %v5682 = vrot.slane %v4333, 5
      %v5683 = vsel %vm4572, %v5682, %v5681
      %v5684 = vrot.slane %v4335, 4
      %v5685 = vsel %vm4575, %v5684, %v5683
      %v5686 = vrot.slane %v4337, 3
      %v5687 = vsel %vm4578, %v5686, %v5685
      %v5688 = vrot.slane %v4339, 2
      %v5689 = vsel %vm4581, %v5688, %v5687
      %v5690 = vrot.slane %v4341, 1
      %v5691 = vsel %vm4584, %v5690, %v5689
      %v5692 = vsel %vm4587, %v4343, %v5691
      %v5693 = vrot.slane %v4345, 7
      %v5694 = vrot.slane %v4347, 6
      %v5695 = vsel %vm4569, %v5694, %v5693
      %v5696 = vrot.slane %v4349, 5
      %v5697 = vsel %vm4572, %v5696, %v5695
      %v5698 = vrot.slane %v4351, 4
      %v5699 = vsel %vm4575, %v5698, %v5697
      %v5700 = vrot.slane %v4353, 3
      %v5701 = vsel %vm4578, %v5700, %v5699
      %v5702 = vrot.slane %v4355, 2
      %v5703 = vsel %vm4581, %v5702, %v5701
      %v5704 = vrot.slane %v4357, 1
      %v5705 = vsel %vm4584, %v5704, %v5703
      %v5706 = vsel %vm4587, %v4359, %v5705
      %5707 = vrot.lane.b32.xlu0 %v5692, 64
      %v5708 = vpop.permute.xlu0 %5707
      %5709 = vrot.lane.b32.xlu0 %v5706, 64
      %v5710 = vpop.permute.xlu0 %5709
      %v5713 = vsel %vm2709, %v5198, %v5216
      %v5714 = vsel %vm2709, %v5200, %v5230
      %v5715 = vsel %vm5121, %v5713, %v5262
      %v5716 = vsel %vm5121, %v5714, %v5264
      %v5717 = vsel %vm5124, %v5715, %v5296
      %v5718 = vsel %vm5124, %v5716, %v5298
      %v5719 = vsel %vm2709, %v5330, %v5348
      %v5720 = vsel %vm2709, %v5332, %v5362
      %v5721 = vsel %vm5121, %v5719, %v5394
      %v5722 = vsel %vm5121, %v5720, %v5396
      %v5723 = vsel %vm5124, %v5721, %v5428
      %v5724 = vsel %vm5124, %v5722, %v5430
      %v5725 = vsel %vm2709, %v5478, %v5496
      %v5726 = vsel %vm2709, %v5480, %v5510
      %v5727 = vsel %vm5121, %v5725, %v5542
      %v5728 = vsel %vm5121, %v5726, %v5544
      %v5729 = vsel %vm5124, %v5727, %v5576
      %v5730 = vsel %vm5124, %v5728, %v5578
      %v5731 = vsel %vm2709, %v5610, %v5628
      %v5732 = vsel %vm2709, %v5612, %v5642
      %v5733 = vsel %vm5121, %v5731, %v5674
      %v5734 = vsel %vm5121, %v5732, %v5676
      %v5735 = vsel %vm5124, %v5733, %v5708
      %v5736 = vsel %vm5124, %v5734, %v5710
      %5737 = vst [vmem:[%s324] sm:$0xff] %v5717
      %5738 = vst [vmem:[%s324 + $0x8] sm:$0xff] %v5723
      %5739 = vst [vmem:[%s324 + $0x10] sm:$0xff] %v5729
      %5740 = vst [vmem:[%s324 + $0x18] sm:$0xff] %v5735
      %5741 = vst [vmem:[%s324 + $0x20] sm:$0xff] %v5718
      %5742 = vst [vmem:[%s324 + $0x28] sm:$0xff] %v5724
      %5743 = vst [vmem:[%s324 + $0x30] sm:$0xff] %v5730
      %5744 = vst [vmem:[%s324 + $0x38] sm:$0xff] %v5736
      %s5745 = smul.u32 2, %s22
      %p5746 = scmp.lt.s32.totalorder %s21, 1
      %s5747 = scalar_select %p5746, %s21, 1
      %p5748 = scmp.lt.s32.totalorder %s5745, 1
      %s5749 = scalar_select %p5748, %s5745, 1
      %s5750 = smul.addr %s5749, 4
      %s5751 = smul.addr %s5747, 8
      %s5752 = sadd.s32 %s5750, %s5751
      %s5753 = smul.addr %s5752, 8
      %s5754 = scalar_lea.vmem %s4, %s5753
      %s5755 = smul.u32 2, %s22
      %p5756 = scmp.lt.s32.totalorder %s21, 1
      %s5757 = scalar_select %p5756, %s21, 1
      %p5758 = scmp.lt.s32.totalorder %s5755, 1
      %s5759 = scalar_select %p5758, %s5755, 1
      %s5760 = smul.addr %s5759, 4
      %s5761 = smul.addr %s5757, 8
      %s5762 = sadd.s32 %s5760, %s5761
      %s5763 = smul.addr %s5762, 8
      %s5764 = scalar_lea.vmem %s5, %s5763
      // Predicated region
      $region37: #{conv_lstm_cell.1} parent=35 // pred_check
        %p5765 = pneg %p147
      $region38: #{conv_lstm_cell.1} parent=35 // pred_check_branch
        %5767 = sbr.rel (%p5765) target = $region40
      $region39: #{conv_lstm_cell.1} parent=35 // pred_region
        %s5768 = smul.u32 2, %s22
      $region40: #{conv_lstm_cell.1} parent=35 // pred_fallthru
        _
      // Predicated region
      $region41: #{conv_lstm_cell.1} parent=35 // pred_check
        %p5769 = pneg %p175
      $region42: #{conv_lstm_cell.1} parent=35 // pred_check_branch
        %5771 = sbr.rel (%p5769) target = $region44
      $region43: #{conv_lstm_cell.1} parent=35 // pred_region
        %s5772 = smul.u32 2, %s22
      $region44: #{conv_lstm_cell.1} parent=35 // pred_fallthru
        _
    $region36: #{conv_lstm_cell.1} parent=5 // pred_fallthru
      _
    %p5773 = scmp.le.s32.totalorder 2, %s12
    // Predicated region
    $region45: #{conv_lstm_cell.1} parent=5 // pred_check
      %p5774 = pneg %p5773
    $region46: #{conv_lstm_cell.1} parent=5 // pred_check_branch
      %5776 = sbr.rel (%p5774) target = $region48
    $region47: #{conv_lstm_cell.1} parent=5 // pred_region
      %s5777 = ssub.s32 %s12, 2
      // Predicated region
      $region49: #{conv_lstm_cell.1} parent=47 // pred_check
        %p5778 = pneg %p153
      $region50: #{conv_lstm_cell.1} parent=47 // pred_check_branch
        %5780 = sbr.rel (%p5778) target = $region52
      $region51: #{conv_lstm_cell.1} parent=47 // pred_region
        %s5781 = smul.u32 2, %s24
        %p5782 = scmp.lt.s32.totalorder %s23, 1
        %s5783 = scalar_select %p5782, %s23, 1
        %p5784 = scmp.lt.s32.totalorder %s5781, 1
        %s5785 = scalar_select %p5784, %s5781, 1
        %s5786 = smul.addr %s5785, 4
        %s5787 = smul.addr %s5783, 8
        %s5788 = sadd.s32 %s5786, %s5787
        %s5789 = smul.addr %s5788, 8
        %s5790 = scalar_lea.vmem %s4, %s5789
      $region52: #{conv_lstm_cell.1} parent=47 // pred_fallthru
        _
      // Predicated region
      $region53: #{conv_lstm_cell.1} parent=47 // pred_check
        %p5791 = pneg %p181
      $region54: #{conv_lstm_cell.1} parent=47 // pred_check_branch
        %5793 = sbr.rel (%p5791) target = $region56
      $region55: #{conv_lstm_cell.1} parent=47 // pred_region
        %s5794 = smul.u32 2, %s24
        %p5795 = scmp.lt.s32.totalorder %s23, 1
        %s5796 = scalar_select %p5795, %s23, 1
        %p5797 = scmp.lt.s32.totalorder %s5794, 1
        %s5798 = scalar_select %p5797, %s5794, 1
        %s5799 = smul.addr %s5798, 4
        %s5800 = smul.addr %s5796, 8
        %s5801 = sadd.s32 %s5799, %s5800
        %s5802 = smul.addr %s5801, 8
        %s5803 = scalar_lea.vmem %s5, %s5802
      $region56: #{conv_lstm_cell.1} parent=47 // pred_fallthru
        _
    $region48: #{conv_lstm_cell.1} parent=5 // pred_fallthru
      _
  $region6: #{conv_lstm_cell.1} parent=0 // loop_footer
    %s16 = sadd.s32 1, %s12
  $region7: #{conv_lstm_cell.1} parent=0 // loop_footer_branch
    %11 = sbr.rel target = $region3
  $region8: #{conv_lstm_cell.1} parent=0 // loop_exit
    _

</llo_original>
